<compile_context>
chip_gen: v5e
topology: v5e:2x2
jax: 0.10.0
libtpu: 0.0.40
codegen_flags: <defaults>
</compile_context>

<pallas_src>
import functools

import jax
import jax.numpy as jnp
from jax import lax
from jax.experimental import pallas as pl
from jax.experimental.pallas import tpu as pltpu

# ----------------------------- config ---------------------------------------
CTX = 8            # context length (77 in real CLIP; pad to a multiple of 8 at scale)
D = 32             # transformer width
H = 4              # attention heads
DH = D // H        # head dim
FF = 4 * D         # MLP hidden width (== 128 here)
LAYERS = 2
EMBED = 16         # text_projection output dim
OUT_PAD = 128      # lane-dense padded output width
PREFIX = 3         # soft-prompt prefix tokens (num_token = PREFIX + 1)
EPS = 1e-5
NEG = -1e9         # additive causal-mask bias (f32 scores)

# rows of the per-layer "vector slab" (LN params + biases packed into one array)
_R_LN1W, _R_LN1B, _R_LN2W, _R_LN2B, _R_BQKV, _R_BO, _R_B1, _R_B2 = range(8)
VEC_ROWS = 8
VEC_W = 128        # slab lane width (>= FF, 3*D)


def _layernorm(x, w, b):
    mu = jnp.mean(x, axis=-1, keepdims=True)
    var = jnp.mean((x - mu) ** 2, axis=-1, keepdims=True)
    return (x - mu) * lax.rsqrt(var + EPS) * w + b


# ------------------------------ fused kernel ---------------------------------
def _encoder_kernel(x_ref, vec_ref, wqkv_ref, wo_ref, w1_ref, w2_ref,
                    poslnf_ref, proj_ref, o_ref, *, bc):
    """Whole CLIP-text-encoder forward for one batch chunk of `bc` examples."""
    M = bc * CTX

    # positional embedding, then flatten rows so every linear layer is one matmul
    pos = poslnf_ref[0:CTX, :]                                 # [CTX, D]
    x = x_ref[...] + pos[None]                                 # [bc, CTX, D]
    xf = x.reshape(M, D)                                       # [M, D]

    # causal additive bias: built & broadcast ONCE (hoisted out of all loops)
    row = lax.broadcasted_iota(jnp.int32, (CTX, CTX), 0)
    col = lax.broadcasted_iota(jnp.int32, (CTX, CTX), 1)
    causal = jnp.where(col > row, NEG, 0.0).astype(jnp.float32)
    causal_b = jnp.broadcast_to(causal[None], (H * bc, CTX, CTX))

    for l in range(LAYERS):                                    # static unroll over layers
        vec = vec_ref[l]                                       # [8, 128]: LN params + biases

        # ---- causal multi-head self-attention --------------------------------
        xn = _layernorm(xf, vec[_R_LN1W:_R_LN1W + 1, :D], vec[_R_LN1B:_R_LN1B + 1, :D])
        # single [M, D] @ [D, 3D] matmul; columns are HEAD-MAJOR (q_h|k_h|v_h per
        # head) and the Q columns/bias are pre-scaled by 1/sqrt(DH) (pack time)
        qkv = jnp.dot(xn, wqkv_ref[l], preferred_element_type=jnp.float32)
        qkv = qkv + vec[_R_BQKV:_R_BQKV + 1, :3 * D]           # [M, 3D]

        # move heads to a leading batch axis once (H slices + 1 stack), then all
        # heads share ONE batched score einsum and ONE batched PV einsum
        qkv_h = jnp.stack(
            [qkv[:, h * 3 * DH:(h + 1) * 3 * DH] for h in range(H)], axis=0)  # [H, M, 3DH]
        q = qkv_h[:, :, 0 * DH:1 * DH].reshape(H * bc, CTX, DH)
        k = qkv_h[:, :, 1 * DH:2 * DH].reshape(H * bc, CTX, DH)
        v = qkv_h[:, :, 2 * DH:3 * DH].reshape(H * bc, CTX, DH)

        s = jnp.einsum('bqd,bkd->bqk', q, k,
                       preferred_element_type=jnp.float32) + causal_b  # [H*bc, CTX, CTX]
        m = jnp.max(s, axis=-1, keepdims=True)
        e = jnp.exp(s - m)
        p = e * pl.reciprocal(jnp.sum(e, axis=-1, keepdims=True), approx=True)
        o = jnp.einsum('bqk,bkd->bqd', p, v,
                       preferred_element_type=jnp.float32)              # [H*bc, CTX, DH]

        # output projection without concatenating heads along lanes:
        #   concat_h(o_h) @ Wo == sum_h o_h @ Wo[h*DH:(h+1)*DH, :]
        o_h = o.reshape(H, M, DH)
        attn = jnp.einsum('hmd,hde->hme', o_h, wo_ref[l],
                          preferred_element_type=jnp.float32)           # [H, M, D]
        attn = jnp.sum(attn, axis=0) + vec[_R_BO:_R_BO + 1, :D]
        xf = xf + attn

        # ---- MLP with QuickGELU ----------------------------------------------
        xn = _layernorm(xf, vec[_R_LN2W:_R_LN2W + 1, :D], vec[_R_LN2B:_R_LN2B + 1, :D])
        h1 = jnp.dot(xn, w1_ref[l], preferred_element_type=jnp.float32)
        h1 = h1 + vec[_R_B1:_R_B1 + 1, :FF]
        h1 = h1 * jax.nn.sigmoid(1.702 * h1)                   # QuickGELU
        xf = xf + jnp.dot(h1, w2_ref[l],
                          preferred_element_type=jnp.float32) + vec[_R_B2:_R_B2 + 1, :D]

    # ---- ln_final at the last token + (lane-padded) text projection ----------
    x_last = xf.reshape(bc, CTX, D)[:, CTX - 1, :]             # [bc, D]
    lnf_w = poslnf_ref[CTX:CTX + 1, :]
    lnf_b = poslnf_ref[CTX + 1:CTX + 2, :]
    xn = _layernorm(x_last, lnf_w, lnf_b)
    # proj is zero-padded to 128 lanes so this final store is an unmasked vst
    o_ref[0] = jnp.dot(xn, proj_ref[...], preferred_element_type=jnp.float32)


# ------------------------- weight packing (one-time prep) ---------------------
def pack_params(p):
    """Reorganize canonical (PyTorch-layout) params into packed kernel operands."""
    scale = 1.0 / (DH ** 0.5)

    # qkv weight/bias: fold attention scale into Q and permute columns to
    # head-major [q_h | k_h | v_h] blocks so heads move to a leading batch axis
    # with H contiguous lane slices.
    wqkv = p['wqkv'].reshape(LAYERS, D, 3, H, DH)
    wqkv = wqkv.at[:, :, 0].multiply(scale)
    wqkv = wqkv.transpose(0, 1, 3, 2, 4).reshape(LAYERS, D, 3 * D)
    bqkv = p['bqkv'].reshape(LAYERS, 3, H, DH)
    bqkv = bqkv.at[:, 0].multiply(scale)
    bqkv = bqkv.transpose(0, 2, 1, 3).reshape(LAYERS, 3 * D)

    # out-projection split per head (for the sum-of-per-head-matmuls identity)
    wo_h = p['wo'].reshape(LAYERS, H, DH, D)

    # one [L, 8, 128] slab with all LN params + biases (one DMA, stays resident)
    def pad_row(v):
        return jnp.pad(v, ((0, 0), (0, VEC_W - v.shape[-1])))
    vec = jnp.stack([
        pad_row(p['ln1_w']), pad_row(p['ln1_b']),
        pad_row(p['ln2_w']), pad_row(p['ln2_b']),
        pad_row(bqkv), pad_row(p['bo']),
        pad_row(p['b1']), pad_row(p['b2']),
    ], axis=1)                                                 # [L, 8, 128]

    # positional embedding + final-LN params in one small array
    poslnf = jnp.concatenate(
        [p['pos'], p['lnf_w'][None], p['lnf_b'][None]], axis=0)  # [CTX+2, D]

    # text projection zero-padded to 128 lanes -> lane-dense output store
    proj_pad = jnp.pad(p['proj'], ((0, 0), (0, OUT_PAD - EMBED)))

    return dict(vec=vec, wqkv=wqkv, wo=wo_h, w1=p['w1'], w2=p['w2'],
                poslnf=poslnf, proj=proj_pad)


# ------------------------------- wrapper --------------------------------------
def custom_text_encode(text_feature, text_prefix, params, *, num_chunks=1):
    """Pallas forward matching CustomTextEncoder.forward.

    num_chunks=1 (default): one grid step — best on single-TensorCore v5e/v6e.
    On v7x use a multiple of 2 so the "parallel" batch axis shards across both
    TensorCores, keeping bc*CTX >= ~256 rows per core.
    """
    B = text_feature.shape[0]
    nb = num_chunks if (1 <= num_chunks <= B and B % num_chunks == 0) else 1
    bc = B // nb

    kp = pack_params(params)   # pure one-time weight reorganization

    # glue: concat prefix + feature and left-pad to CTX tokens (pure input prep)
    x = jnp.concatenate([text_prefix, text_feature[:, None, :]], axis=1)
    pad_len = CTX - x.shape[1]
    x = jnp.pad(x.astype(jnp.float32), ((0, 0), (pad_len, 0), (0, 0)))

    weights = [kp['vec'], kp['wqkv'], kp['wo'], kp['w1'], kp['w2'],
               kp['poslnf'], kp['proj']]

    def const_spec(arr):
        nd = arr.ndim
        return pl.BlockSpec(arr.shape, lambda i, _nd=nd: (0,) * _nd)

    out = pl.pallas_call(
        functools.partial(_encoder_kernel, bc=bc),
        out_shape=jax.ShapeDtypeStruct((nb, bc, OUT_PAD), jnp.float32),
        grid=(nb,),
        in_specs=[pl.BlockSpec((bc, CTX, D), lambda i: (i, 0, 0))]
                 + [const_spec(w) for w in weights],
        out_specs=pl.BlockSpec((1, bc, OUT_PAD), lambda i: (i, 0, 0)),
        compiler_params=pltpu.CompilerParams(
            dimension_semantics=("parallel",),
            vmem_limit_bytes=32 * 1024 * 1024),
    )(x, *weights)
    return out.reshape(B, OUT_PAD)[:, :EMBED]


# ------------------------ deterministic params --------------------------------
def init_params(key):
    ks = jax.random.split(key, 16)

    def n(k, shape, scale):
        return (scale * jax.random.normal(k, shape)).astype(jnp.float32)

    return {
        'pos':   n(ks[0], (CTX, D), 0.01),
        'ln1_w': (1.0 + n(ks[1], (LAYERS, D), 0.1)),
        'ln1_b': n(ks[2], (LAYERS, D), 0.05),
        'ln2_w': (1.0 + n(ks[3], (LAYERS, D), 0.1)),
        'ln2_b': n(ks[4], (LAYERS, D), 0.05),
        'wqkv':  n(ks[5], (LAYERS, D, 3 * D), D ** -0.5),   # in_proj_weight.T
        'bqkv':  n(ks[6], (LAYERS, 3 * D), 0.02),
        'wo':    n(ks[7], (LAYERS, D, D), D ** -0.5),       # out_proj.weight.T
        'bo':    n(ks[8], (LAYERS, D), 0.02),
        'w1':    n(ks[9], (LAYERS, D, FF), D ** -0.5),      # c_fc.weight.T
        'b1':    n(ks[10], (LAYERS, FF), 0.02),
        'w2':    n(ks[11], (LAYERS, FF, D), FF ** -0.5),    # c_proj.weight.T
        'b2':    n(ks[12], (LAYERS, D), 0.02),
        'lnf_w': (1.0 + n(ks[13], (D,), 0.1)),
        'lnf_b': n(ks[14], (D,), 0.05),
        'proj':  n(ks[15], (D, EMBED), D ** -0.5),
    }


# ------------------------ pure-JAX reference -----------------------------------
def custom_text_encode_ref(text_feature, text_prefix, params):
    B = text_feature.shape[0]
    x = jnp.concatenate([text_prefix, text_feature[:, None, :]], axis=1)
    x = jnp.pad(x.astype(jnp.float32), ((0, 0), (CTX - x.shape[1], 0), (0, 0)))
    x = x + params['pos'][None]
    mask = jnp.where(jnp.triu(jnp.ones((CTX, CTX), bool), k=1), NEG, 0.0)
    for l in range(LAYERS):
        xn = _layernorm(x, params['ln1_w'][l], params['ln1_b'][l])
        qkv = xn @ params['wqkv'][l] + params['bqkv'][l]
        q, k, v = jnp.split(qkv, 3, axis=-1)
        qh = q.reshape(B, CTX, H, DH).transpose(0, 2, 1, 3)
        kh = k.reshape(B, CTX, H, DH).transpose(0, 2, 1, 3)
        vh = v.reshape(B, CTX, H, DH).transpose(0, 2, 1, 3)
        s = jnp.einsum('bhqd,bhkd->bhqk', qh, kh) / (DH ** 0.5) + mask
        a = jax.nn.softmax(s, axis=-1)
        o = jnp.einsum('bhqk,bhkd->bhqd', a, vh).transpose(0, 2, 1, 3).reshape(B, CTX, D)
        x = x + o @ params['wo'][l] + params['bo'][l]
        xn = _layernorm(x, params['ln2_w'][l], params['ln2_b'][l])
        h1 = xn @ params['w1'][l] + params['b1'][l]
        h1 = h1 * jax.nn.sigmoid(1.702 * h1)
        x = x + h1 @ params['w2'][l] + params['b2'][l]
    xn = _layernorm(x[:, -1, :], params['lnf_w'], params['lnf_b'])
    return xn @ params['proj']


# ------------------------------- main ------------------------------------------
if __name__ == "__main__":
    key = jax.random.PRNGKey(0)
    pkey, fkey, xkey = jax.random.split(key, 3)
    params = init_params(pkey)

    B = 4
    text_feature = (0.02 * jax.random.normal(fkey, (B, D))).astype(jnp.float32)
    text_prefix = (0.02 * jax.random.normal(xkey, (B, PREFIX, D))).astype(jnp.float32)

    out = custom_text_encode(text_feature, text_prefix, params)   # num_chunks=1 default
    out = jax.block_until_ready(out)

    ref = custom_text_encode_ref(text_feature, text_prefix, params)
    assert out.shape == (B, EMBED), out.shape
    err = float(jnp.max(jnp.abs(out - ref)))
    # tolerance allows the approximate-reciprocal softmax normalization
    assert jnp.allclose(out, ref, atol=5e-3, rtol=5e-3), err
    print("KERNEL_OK")
</pallas_src>

<mosaic_0001>
module attributes {stable_mosaic.version = 11 : i64} {
  func.func @_encoder_kernel(%arg0: i32, %arg1: memref<4x8x32xf32, #tpu.memory_space<vmem>>, %arg2: memref<2x8x128xf32, #tpu.memory_space<vmem>>, %arg3: memref<2x32x96xf32, #tpu.memory_space<vmem>>, %arg4: memref<2x4x8x32xf32, #tpu.memory_space<vmem>>, %arg5: memref<2x32x128xf32, #tpu.memory_space<vmem>>, %arg6: memref<2x128x32xf32, #tpu.memory_space<vmem>>, %arg7: memref<10x32xf32, #tpu.memory_space<vmem>>, %arg8: memref<32x128xf32, #tpu.memory_space<vmem>>, %arg9: memref<1x4x128xf32, #tpu.memory_space<vmem>>) attributes {dimension_semantics = [#tpu.dimension_semantics<parallel>], iteration_bounds = array<i64: 1>, scalar_prefetch = 0 : i64, scratch_operands = 0 : i64, tpu.core_type = #tpu.core_type<tc>, window_params = [{transform_indices = @transform_0, window_bounds = array<i64: 4, 8, 32>}, {pipeline_mode = #tpu.pipeline_mode<synchronous>, transform_indices = @transform_1, window_bounds = array<i64: 2, 8, 128>}, {pipeline_mode = #tpu.pipeline_mode<synchronous>, transform_indices = @transform_2, window_bounds = array<i64: 2, 32, 96>}, {pipeline_mode = #tpu.pipeline_mode<synchronous>, transform_indices = @transform_3, window_bounds = array<i64: 2, 4, 8, 32>}, {pipeline_mode = #tpu.pipeline_mode<synchronous>, transform_indices = @transform_4, window_bounds = array<i64: 2, 32, 128>}, {pipeline_mode = #tpu.pipeline_mode<synchronous>, transform_indices = @transform_5, window_bounds = array<i64: 2, 128, 32>}, {pipeline_mode = #tpu.pipeline_mode<synchronous>, transform_indices = @transform_6, window_bounds = array<i64: 10, 32>}, {pipeline_mode = #tpu.pipeline_mode<synchronous>, transform_indices = @transform_7, window_bounds = array<i64: 32, 128>}, {transform_indices = @transform_8, window_bounds = array<i64: 1, 4, 128>}]} {
    %c0 = arith.constant 0 : index
    %c0_0 = arith.constant 0 : index
    %0 = vector.load %arg7[%c0, %c0_0] : memref<10x32xf32, #tpu.memory_space<vmem>>, vector<8x32xf32>
    %c0_1 = arith.constant 0 : index
    %c0_2 = arith.constant 0 : index
    %c0_3 = arith.constant 0 : index
    %1 = vector.load %arg1[%c0_1, %c0_2, %c0_3] : memref<4x8x32xf32, #tpu.memory_space<vmem>>, vector<4x8x32xf32>
    %2 = vector.shape_cast %0 : vector<8x32xf32> to vector<1x8x32xf32>
    %3 = vector.broadcast %2 : vector<1x8x32xf32> to vector<4x8x32xf32>
    %4 = arith.addf %1, %3 : vector<4x8x32xf32>
    %5 = vector.shape_cast %4 : vector<4x8x32xf32> to vector<32x32xf32>
    %6 = tpu.iota {dimensions = array<i32: 0>} : vector<8x8xi32>
    %7 = tpu.iota {dimensions = array<i32: 1>} : vector<8x8xi32>
    %8 = arith.cmpi sgt, %7, %6 : vector<8x8xi32>
    %cst = arith.constant -1.000000e+09 : f32
    %cst_4 = arith.constant 0.000000e+00 : f32
    %9 = vector.broadcast %cst : f32 to vector<8x8xf32>
    %10 = vector.broadcast %cst_4 : f32 to vector<8x8xf32>
    %11 = arith.select %8, %9, %10 : vector<8x8xi1>, vector<8x8xf32>
    %12 = vector.shape_cast %11 : vector<8x8xf32> to vector<1x8x8xf32>
    %13 = vector.shape_cast %12 : vector<1x8x8xf32> to vector<1x8x8xf32>
    %14 = vector.broadcast %13 : vector<1x8x8xf32> to vector<16x8x8xf32>
    %c0_5 = arith.constant 0 : index
    %c0_6 = arith.constant 0 : index
    %c0_7 = arith.constant 0 : index
    %15 = vector.load %arg2[%c0_5, %c0_6, %c0_7] : memref<2x8x128xf32, #tpu.memory_space<vmem>>, vector<1x8x128xf32>
    %16 = vector.shape_cast %15 : vector<1x8x128xf32> to vector<8x128xf32>
    %17 = vector.extract_strided_slice %16 {offsets = [0, 0], sizes = [1, 32], strides = [1, 1]} : vector<8x128xf32> to vector<1x32xf32>
    %18 = vector.extract_strided_slice %16 {offsets = [1, 0], sizes = [1, 32], strides = [1, 1]} : vector<8x128xf32> to vector<1x32xf32>
    %cst_8 = arith.constant dense<0.000000e+00> : vector<32xf32>
    %19 = vector.multi_reduction <add>, %5, %cst_8 [1] : vector<32x32xf32> to vector<32xf32>
    %20 = vector.shape_cast %19 : vector<32xf32> to vector<32x1xf32>
    %cst_9 = arith.constant 3.200000e+01 : f32
    %21 = vector.broadcast %cst_9 : f32 to vector<32x1xf32>
    %22 = arith.divf %20, %21 : vector<32x1xf32>
    %23 = vector.broadcast %22 : vector<32x1xf32> to vector<32x32xf32>
    %24 = arith.subf %5, %23 : vector<32x32xf32>
    %25 = arith.mulf %24, %24 : vector<32x32xf32>
    %cst_10 = arith.constant dense<0.000000e+00> : vector<32xf32>
    %26 = vector.multi_reduction <add>, %25, %cst_10 [1] : vector<32x32xf32> to vector<32xf32>
    %27 = vector.shape_cast %26 : vector<32xf32> to vector<32x1xf32>
    %cst_11 = arith.constant 3.200000e+01 : f32
    %28 = vector.broadcast %cst_11 : f32 to vector<32x1xf32>
    %29 = arith.divf %27, %28 : vector<32x1xf32>
    %30 = vector.broadcast %22 : vector<32x1xf32> to vector<32x32xf32>
    %31 = arith.subf %5, %30 : vector<32x32xf32>
    %cst_12 = arith.constant 9.99999974E-6 : f32
    %32 = vector.broadcast %cst_12 : f32 to vector<32x1xf32>
    %33 = arith.addf %29, %32 : vector<32x1xf32>
    %34 = math.rsqrt %33 : vector<32x1xf32>
    %35 = vector.broadcast %34 : vector<32x1xf32> to vector<32x32xf32>
    %36 = arith.mulf %31, %35 : vector<32x32xf32>
    %37 = vector.broadcast %17 : vector<1x32xf32> to vector<32x32xf32>
    %38 = arith.mulf %36, %37 : vector<32x32xf32>
    %39 = vector.broadcast %18 : vector<1x32xf32> to vector<32x32xf32>
    %40 = arith.addf %38, %39 : vector<32x32xf32>
    %c0_13 = arith.constant 0 : index
    %c0_14 = arith.constant 0 : index
    %c0_15 = arith.constant 0 : index
    %41 = vector.load %arg3[%c0_13, %c0_14, %c0_15] : memref<2x32x96xf32, #tpu.memory_space<vmem>>, vector<1x32x96xf32>
    %42 = vector.shape_cast %41 : vector<1x32x96xf32> to vector<32x96xf32>
    %cst_16 = arith.constant dense<0.000000e+00> : vector<32x96xf32>
    %43 = tpu.matmul %40, %42, %cst_16 {dimension_numbers = #tpu.dot_dimension_numbers<[1], [0], [0], [1], [0, 0, 1, 1], [], []>} : vector<32x32xf32>, vector<32x96xf32>, vector<32x96xf32> -> vector<32x96xf32>
    %44 = vector.extract_strided_slice %16 {offsets = [4, 0], sizes = [1, 96], strides = [1, 1]} : vector<8x128xf32> to vector<1x96xf32>
    %45 = vector.broadcast %44 : vector<1x96xf32> to vector<32x96xf32>
    %46 = arith.addf %43, %45 : vector<32x96xf32>
    %47 = vector.extract_strided_slice %46 {offsets = [0, 0], sizes = [32, 24], strides = [1, 1]} : vector<32x96xf32> to vector<32x24xf32>
    %48 = vector.extract_strided_slice %46 {offsets = [0, 24], sizes = [32, 24], strides = [1, 1]} : vector<32x96xf32> to vector<32x24xf32>
    %49 = vector.extract_strided_slice %46 {offsets = [0, 48], sizes = [32, 24], strides = [1, 1]} : vector<32x96xf32> to vector<32x24xf32>
    %50 = vector.extract_strided_slice %46 {offsets = [0, 72], sizes = [32, 24], strides = [1, 1]} : vector<32x96xf32> to vector<32x24xf32>
    %51 = vector.shape_cast %47 : vector<32x24xf32> to vector<1x32x24xf32>
    %52 = vector.shape_cast %48 : vector<32x24xf32> to vector<1x32x24xf32>
    %53 = vector.shape_cast %49 : vector<32x24xf32> to vector<1x32x24xf32>
    %54 = vector.shape_cast %50 : vector<32x24xf32> to vector<1x32x24xf32>
    %55 = tpu.concatenate %51, %52, %53, %54 in 0 : vector<1x32x24xf32>, vector<1x32x24xf32>, vector<1x32x24xf32>, vector<1x32x24xf32> -> vector<4x32x24xf32>
    %56 = vector.extract_strided_slice %55 {offsets = [0, 0, 0], sizes = [4, 32, 8], strides = [1, 1, 1]} : vector<4x32x24xf32> to vector<4x32x8xf32>
    %57 = vector.shape_cast %56 : vector<4x32x8xf32> to vector<16x8x8xf32>
    %58 = vector.extract_strided_slice %55 {offsets = [0, 0, 8], sizes = [4, 32, 8], strides = [1, 1, 1]} : vector<4x32x24xf32> to vector<4x32x8xf32>
    %59 = vector.shape_cast %58 : vector<4x32x8xf32> to vector<16x8x8xf32>
    %60 = vector.extract_strided_slice %55 {offsets = [0, 0, 16], sizes = [4, 32, 8], strides = [1, 1, 1]} : vector<4x32x24xf32> to vector<4x32x8xf32>
    %61 = vector.shape_cast %60 : vector<4x32x8xf32> to vector<16x8x8xf32>
    "tpu.trace_start"() <{level = 10 : i32, message = "bqd,bkd->bqk"}> : () -> ()
    %cst_17 = arith.constant dense<0.000000e+00> : vector<16x8x8xf32>
    %62 = tpu.matmul %57, %59, %cst_17 {dimension_numbers = #tpu.dot_dimension_numbers<[2], [2], [1], [1], [0, 0, 0, 1, 1, 1], [0], [0]>} : vector<16x8x8xf32>, vector<16x8x8xf32>, vector<16x8x8xf32> -> vector<16x8x8xf32>
    "tpu.trace_stop"() : () -> ()
    %63 = arith.addf %62, %14 : vector<16x8x8xf32>
    %cst_18 = arith.constant dense<0xFF800000> : vector<16x8xf32>
    %64 = vector.multi_reduction <maximumf>, %63, %cst_18 [2] : vector<16x8x8xf32> to vector<16x8xf32>
    %65 = vector.shape_cast %64 : vector<16x8xf32> to vector<16x8x1xf32>
    %66 = vector.broadcast %65 : vector<16x8x1xf32> to vector<16x8x8xf32>
    %67 = arith.subf %63, %66 : vector<16x8x8xf32>
    %68 = math.exp %67 : vector<16x8x8xf32>
    %cst_19 = arith.constant dense<0.000000e+00> : vector<16x8xf32>
    %69 = vector.multi_reduction <add>, %68, %cst_19 [2] : vector<16x8x8xf32> to vector<16x8xf32>
    %70 = vector.shape_cast %69 : vector<16x8xf32> to vector<16x8x1xf32>
    %71 = tpu.reciprocal %70 {approx = true} : vector<16x8x1xf32> -> vector<16x8x1xf32>
    %72 = vector.broadcast %71 : vector<16x8x1xf32> to vector<16x8x8xf32>
    %73 = arith.mulf %68, %72 : vector<16x8x8xf32>
    "tpu.trace_start"() <{level = 10 : i32, message = "bqk,bkd->bqd"}> : () -> ()
    %cst_20 = arith.constant dense<0.000000e+00> : vector<16x8x8xf32>
    %74 = tpu.matmul %73, %61, %cst_20 {dimension_numbers = #tpu.dot_dimension_numbers<[2], [1], [1], [2], [0, 0, 0, 1, 1, 2], [0], [0]>} : vector<16x8x8xf32>, vector<16x8x8xf32>, vector<16x8x8xf32> -> vector<16x8x8xf32>
    "tpu.trace_stop"() : () -> ()
    %75 = vector.shape_cast %74 : vector<16x8x8xf32> to vector<4x32x8xf32>
    %c0_21 = arith.constant 0 : index
    %c0_22 = arith.constant 0 : index
    %c0_23 = arith.constant 0 : index
    %c0_24 = arith.constant 0 : index
    %76 = vector.load %arg4[%c0_21, %c0_22, %c0_23, %c0_24] : memref<2x4x8x32xf32, #tpu.memory_space<vmem>>, vector<1x4x8x32xf32>
    %77 = vector.shape_cast %76 : vector<1x4x8x32xf32> to vector<4x8x32xf32>
    "tpu.trace_start"() <{level = 10 : i32, message = "hmd,hde->hme"}> : () -> ()
    %cst_25 = arith.constant dense<0.000000e+00> : vector<4x32x32xf32>
    %78 = tpu.matmul %75, %77, %cst_25 {dimension_numbers = #tpu.dot_dimension_numbers<[2], [1], [1], [2], [0, 0, 0, 1, 1, 2], [0], [0]>} : vector<4x32x8xf32>, vector<4x8x32xf32>, vector<4x32x32xf32> -> vector<4x32x32xf32>
    "tpu.trace_stop"() : () -> ()
    %cst_26 = arith.constant dense<0.000000e+00> : vector<32x32xf32>
    %79 = vector.multi_reduction <add>, %78, %cst_26 [0] : vector<4x32x32xf32> to vector<32x32xf32>
    %80 = vector.extract_strided_slice %16 {offsets = [5, 0], sizes = [1, 32], strides = [1, 1]} : vector<8x128xf32> to vector<1x32xf32>
    %81 = vector.broadcast %80 : vector<1x32xf32> to vector<32x32xf32>
    %82 = arith.addf %79, %81 : vector<32x32xf32>
    %83 = arith.addf %5, %82 : vector<32x32xf32>
    %84 = vector.extract_strided_slice %16 {offsets = [2, 0], sizes = [1, 32], strides = [1, 1]} : vector<8x128xf32> to vector<1x32xf32>
    %85 = vector.extract_strided_slice %16 {offsets = [3, 0], sizes = [1, 32], strides = [1, 1]} : vector<8x128xf32> to vector<1x32xf32>
    %cst_27 = arith.constant dense<0.000000e+00> : vector<32xf32>
    %86 = vector.multi_reduction <add>, %83, %cst_27 [1] : vector<32x32xf32> to vector<32xf32>
    %87 = vector.shape_cast %86 : vector<32xf32> to vector<32x1xf32>
    %cst_28 = arith.constant 3.200000e+01 : f32
    %88 = vector.broadcast %cst_28 : f32 to vector<32x1xf32>
    %89 = arith.divf %87, %88 : vector<32x1xf32>
    %90 = vector.broadcast %89 : vector<32x1xf32> to vector<32x32xf32>
    %91 = arith.subf %83, %90 : vector<32x32xf32>
    %92 = arith.mulf %91, %91 : vector<32x32xf32>
    %cst_29 = arith.constant dense<0.000000e+00> : vector<32xf32>
    %93 = vector.multi_reduction <add>, %92, %cst_29 [1] : vector<32x32xf32> to vector<32xf32>
    %94 = vector.shape_cast %93 : vector<32xf32> to vector<32x1xf32>
    %cst_30 = arith.constant 3.200000e+01 : f32
    %95 = vector.broadcast %cst_30 : f32 to vector<32x1xf32>
    %96 = arith.divf %94, %95 : vector<32x1xf32>
    %97 = vector.broadcast %89 : vector<32x1xf32> to vector<32x32xf32>
    %98 = arith.subf %83, %97 : vector<32x32xf32>
    %cst_31 = arith.constant 9.99999974E-6 : f32
    %99 = vector.broadcast %cst_31 : f32 to vector<32x1xf32>
    %100 = arith.addf %96, %99 : vector<32x1xf32>
    %101 = math.rsqrt %100 : vector<32x1xf32>
    %102 = vector.broadcast %101 : vector<32x1xf32> to vector<32x32xf32>
    %103 = arith.mulf %98, %102 : vector<32x32xf32>
    %104 = vector.broadcast %84 : vector<1x32xf32> to vector<32x32xf32>
    %105 = arith.mulf %103, %104 : vector<32x32xf32>
    %106 = vector.broadcast %85 : vector<1x32xf32> to vector<32x32xf32>
    %107 = arith.addf %105, %106 : vector<32x32xf32>
    %c0_32 = arith.constant 0 : index
    %c0_33 = arith.constant 0 : index
    %c0_34 = arith.constant 0 : index
    %108 = vector.load %arg5[%c0_32, %c0_33, %c0_34] : memref<2x32x128xf32, #tpu.memory_space<vmem>>, vector<1x32x128xf32>
    %109 = vector.shape_cast %108 : vector<1x32x128xf32> to vector<32x128xf32>
    %cst_35 = arith.constant dense<0.000000e+00> : vector<32x128xf32>
    %110 = tpu.matmul %107, %109, %cst_35 {dimension_numbers = #tpu.dot_dimension_numbers<[1], [0], [0], [1], [0, 0, 1, 1], [], []>} : vector<32x32xf32>, vector<32x128xf32>, vector<32x128xf32> -> vector<32x128xf32>
    %111 = vector.extract_strided_slice %16 {offsets = [6, 0], sizes = [1, 128], strides = [1, 1]} : vector<8x128xf32> to vector<1x128xf32>
    %112 = vector.broadcast %111 : vector<1x128xf32> to vector<32x128xf32>
    %113 = arith.addf %110, %112 : vector<32x128xf32>
    %cst_36 = arith.constant 1.702000e+00 : f32
    %114 = vector.broadcast %cst_36 : f32 to vector<32x128xf32>
    %115 = arith.mulf %114, %113 : vector<32x128xf32>
    %116 = arith.negf %115 : vector<32x128xf32>
    %117 = math.exp %116 : vector<32x128xf32>
    %cst_37 = arith.constant 1.000000e+00 : f32
    %118 = vector.broadcast %cst_37 : f32 to vector<32x128xf32>
    %119 = arith.addf %118, %117 : vector<32x128xf32>
    %120 = arith.divf %118, %119 : vector<32x128xf32>
    %121 = arith.mulf %113, %120 : vector<32x128xf32>
    %c0_38 = arith.constant 0 : index
    %c0_39 = arith.constant 0 : index
    %c0_40 = arith.constant 0 : index
    %122 = vector.load %arg6[%c0_38, %c0_39, %c0_40] : memref<2x128x32xf32, #tpu.memory_space<vmem>>, vector<1x128x32xf32>
    %123 = vector.shape_cast %122 : vector<1x128x32xf32> to vector<128x32xf32>
    %cst_41 = arith.constant dense<0.000000e+00> : vector<32x32xf32>
    %124 = tpu.matmul %121, %123, %cst_41 {dimension_numbers = #tpu.dot_dimension_numbers<[1], [0], [0], [1], [0, 0, 1, 1], [], []>} : vector<32x128xf32>, vector<128x32xf32>, vector<32x32xf32> -> vector<32x32xf32>
    %125 = arith.addf %83, %124 : vector<32x32xf32>
    %126 = vector.extract_strided_slice %16 {offsets = [7, 0], sizes = [1, 32], strides = [1, 1]} : vector<8x128xf32> to vector<1x32xf32>
    %127 = vector.broadcast %126 : vector<1x32xf32> to vector<32x32xf32>
    %128 = arith.addf %125, %127 : vector<32x32xf32>
    %c1 = arith.constant 1 : index
    %c0_42 = arith.constant 0 : index
    %c0_43 = arith.constant 0 : index
    %129 = vector.load %arg2[%c1, %c0_42, %c0_43] : memref<2x8x128xf32, #tpu.memory_space<vmem>>, vector<1x8x128xf32>
    %130 = vector.shape_cast %129 : vector<1x8x128xf32> to vector<8x128xf32>
    %131 = vector.extract_strided_slice %130 {offsets = [0, 0], sizes = [1, 32], strides = [1, 1]} : vector<8x128xf32> to vector<1x32xf32>
    %132 = vector.extract_strided_slice %130 {offsets = [1, 0], sizes = [1, 32], strides = [1, 1]} : vector<8x128xf32> to vector<1x32xf32>
    %cst_44 = arith.constant dense<0.000000e+00> : vector<32xf32>
    %133 = vector.multi_reduction <add>, %128, %cst_44 [1] : vector<32x32xf32> to vector<32xf32>
    %134 = vector.shape_cast %133 : vector<32xf32> to vector<32x1xf32>
    %cst_45 = arith.constant 3.200000e+01 : f32
    %135 = vector.broadcast %cst_45 : f32 to vector<32x1xf32>
    %136 = arith.divf %134, %135 : vector<32x1xf32>
    %137 = vector.broadcast %136 : vector<32x1xf32> to vector<32x32xf32>
    %138 = arith.subf %128, %137 : vector<32x32xf32>
    %139 = arith.mulf %138, %138 : vector<32x32xf32>
    %cst_46 = arith.constant dense<0.000000e+00> : vector<32xf32>
    %140 = vector.multi_reduction <add>, %139, %cst_46 [1] : vector<32x32xf32> to vector<32xf32>
    %141 = vector.shape_cast %140 : vector<32xf32> to vector<32x1xf32>
    %cst_47 = arith.constant 3.200000e+01 : f32
    %142 = vector.broadcast %cst_47 : f32 to vector<32x1xf32>
    %143 = arith.divf %141, %142 : vector<32x1xf32>
    %144 = vector.broadcast %136 : vector<32x1xf32> to vector<32x32xf32>
    %145 = arith.subf %128, %144 : vector<32x32xf32>
    %cst_48 = arith.constant 9.99999974E-6 : f32
    %146 = vector.broadcast %cst_48 : f32 to vector<32x1xf32>
    %147 = arith.addf %143, %146 : vector<32x1xf32>
    %148 = math.rsqrt %147 : vector<32x1xf32>
    %149 = vector.broadcast %148 : vector<32x1xf32> to vector<32x32xf32>
    %150 = arith.mulf %145, %149 : vector<32x32xf32>
    %151 = vector.broadcast %131 : vector<1x32xf32> to vector<32x32xf32>
    %152 = arith.mulf %150, %151 : vector<32x32xf32>
    %153 = vector.broadcast %132 : vector<1x32xf32> to vector<32x32xf32>
    %154 = arith.addf %152, %153 : vector<32x32xf32>
    %c1_49 = arith.constant 1 : index
    %c0_50 = arith.constant 0 : index
    %c0_51 = arith.constant 0 : index
    %155 = vector.load %arg3[%c1_49, %c0_50, %c0_51] : memref<2x32x96xf32, #tpu.memory_space<vmem>>, vector<1x32x96xf32>
    %156 = vector.shape_cast %155 : vector<1x32x96xf32> to vector<32x96xf32>
    %cst_52 = arith.constant dense<0.000000e+00> : vector<32x96xf32>
    %157 = tpu.matmul %154, %156, %cst_52 {dimension_numbers = #tpu.dot_dimension_numbers<[1], [0], [0], [1], [0, 0, 1, 1], [], []>} : vector<32x32xf32>, vector<32x96xf32>, vector<32x96xf32> -> vector<32x96xf32>
    %158 = vector.extract_strided_slice %130 {offsets = [4, 0], sizes = [1, 96], strides = [1, 1]} : vector<8x128xf32> to vector<1x96xf32>
    %159 = vector.broadcast %158 : vector<1x96xf32> to vector<32x96xf32>
    %160 = arith.addf %157, %159 : vector<32x96xf32>
    %161 = vector.extract_strided_slice %160 {offsets = [0, 0], sizes = [32, 24], strides = [1, 1]} : vector<32x96xf32> to vector<32x24xf32>
    %162 = vector.extract_strided_slice %160 {offsets = [0, 24], sizes = [32, 24], strides = [1, 1]} : vector<32x96xf32> to vector<32x24xf32>
    %163 = vector.extract_strided_slice %160 {offsets = [0, 48], sizes = [32, 24], strides = [1, 1]} : vector<32x96xf32> to vector<32x24xf32>
    %164 = vector.extract_strided_slice %160 {offsets = [0, 72], sizes = [32, 24], strides = [1, 1]} : vector<32x96xf32> to vector<32x24xf32>
    %165 = vector.shape_cast %161 : vector<32x24xf32> to vector<1x32x24xf32>
    %166 = vector.shape_cast %162 : vector<32x24xf32> to vector<1x32x24xf32>
    %167 = vector.shape_cast %163 : vector<32x24xf32> to vector<1x32x24xf32>
    %168 = vector.shape_cast %164 : vector<32x24xf32> to vector<1x32x24xf32>
    %169 = tpu.concatenate %165, %166, %167, %168 in 0 : vector<1x32x24xf32>, vector<1x32x24xf32>, vector<1x32x24xf32>, vector<1x32x24xf32> -> vector<4x32x24xf32>
    %170 = vector.extract_strided_slice %169 {offsets = [0, 0, 0], sizes = [4, 32, 8], strides = [1, 1, 1]} : vector<4x32x24xf32> to vector<4x32x8xf32>
    %171 = vector.shape_cast %170 : vector<4x32x8xf32> to vector<16x8x8xf32>
    %172 = vector.extract_strided_slice %169 {offsets = [0, 0, 8], sizes = [4, 32, 8], strides = [1, 1, 1]} : vector<4x32x24xf32> to vector<4x32x8xf32>
    %173 = vector.shape_cast %172 : vector<4x32x8xf32> to vector<16x8x8xf32>
    %174 = vector.extract_strided_slice %169 {offsets = [0, 0, 16], sizes = [4, 32, 8], strides = [1, 1, 1]} : vector<4x32x24xf32> to vector<4x32x8xf32>
    %175 = vector.shape_cast %174 : vector<4x32x8xf32> to vector<16x8x8xf32>
    "tpu.trace_start"() <{level = 10 : i32, message = "bqd,bkd->bqk"}> : () -> ()
    %cst_53 = arith.constant dense<0.000000e+00> : vector<16x8x8xf32>
    %176 = tpu.matmul %171, %173, %cst_53 {dimension_numbers = #tpu.dot_dimension_numbers<[2], [2], [1], [1], [0, 0, 0, 1, 1, 1], [0], [0]>} : vector<16x8x8xf32>, vector<16x8x8xf32>, vector<16x8x8xf32> -> vector<16x8x8xf32>
    "tpu.trace_stop"() : () -> ()
    %177 = arith.addf %176, %14 : vector<16x8x8xf32>
    %cst_54 = arith.constant dense<0xFF800000> : vector<16x8xf32>
    %178 = vector.multi_reduction <maximumf>, %177, %cst_54 [2] : vector<16x8x8xf32> to vector<16x8xf32>
    %179 = vector.shape_cast %178 : vector<16x8xf32> to vector<16x8x1xf32>
    %180 = vector.broadcast %179 : vector<16x8x1xf32> to vector<16x8x8xf32>
    %181 = arith.subf %177, %180 : vector<16x8x8xf32>
    %182 = math.exp %181 : vector<16x8x8xf32>
    %cst_55 = arith.constant dense<0.000000e+00> : vector<16x8xf32>
    %183 = vector.multi_reduction <add>, %182, %cst_55 [2] : vector<16x8x8xf32> to vector<16x8xf32>
    %184 = vector.shape_cast %183 : vector<16x8xf32> to vector<16x8x1xf32>
    %185 = tpu.reciprocal %184 {approx = true} : vector<16x8x1xf32> -> vector<16x8x1xf32>
    %186 = vector.broadcast %185 : vector<16x8x1xf32> to vector<16x8x8xf32>
    %187 = arith.mulf %182, %186 : vector<16x8x8xf32>
    "tpu.trace_start"() <{level = 10 : i32, message = "bqk,bkd->bqd"}> : () -> ()
    %cst_56 = arith.constant dense<0.000000e+00> : vector<16x8x8xf32>
    %188 = tpu.matmul %187, %175, %cst_56 {dimension_numbers = #tpu.dot_dimension_numbers<[2], [1], [1], [2], [0, 0, 0, 1, 1, 2], [0], [0]>} : vector<16x8x8xf32>, vector<16x8x8xf32>, vector<16x8x8xf32> -> vector<16x8x8xf32>
    "tpu.trace_stop"() : () -> ()
    %189 = vector.shape_cast %188 : vector<16x8x8xf32> to vector<4x32x8xf32>
    %c1_57 = arith.constant 1 : index
    %c0_58 = arith.constant 0 : index
    %c0_59 = arith.constant 0 : index
    %c0_60 = arith.constant 0 : index
    %190 = vector.load %arg4[%c1_57, %c0_58, %c0_59, %c0_60] : memref<2x4x8x32xf32, #tpu.memory_space<vmem>>, vector<1x4x8x32xf32>
    %191 = vector.shape_cast %190 : vector<1x4x8x32xf32> to vector<4x8x32xf32>
    "tpu.trace_start"() <{level = 10 : i32, message = "hmd,hde->hme"}> : () -> ()
    %cst_61 = arith.constant dense<0.000000e+00> : vector<4x32x32xf32>
    %192 = tpu.matmul %189, %191, %cst_61 {dimension_numbers = #tpu.dot_dimension_numbers<[2], [1], [1], [2], [0, 0, 0, 1, 1, 2], [0], [0]>} : vector<4x32x8xf32>, vector<4x8x32xf32>, vector<4x32x32xf32> -> vector<4x32x32xf32>
    "tpu.trace_stop"() : () -> ()
    %cst_62 = arith.constant dense<0.000000e+00> : vector<32x32xf32>
    %193 = vector.multi_reduction <add>, %192, %cst_62 [0] : vector<4x32x32xf32> to vector<32x32xf32>
    %194 = vector.extract_strided_slice %130 {offsets = [5, 0], sizes = [1, 32], strides = [1, 1]} : vector<8x128xf32> to vector<1x32xf32>
    %195 = vector.broadcast %194 : vector<1x32xf32> to vector<32x32xf32>
    %196 = arith.addf %193, %195 : vector<32x32xf32>
    %197 = arith.addf %128, %196 : vector<32x32xf32>
    %198 = vector.extract_strided_slice %130 {offsets = [2, 0], sizes = [1, 32], strides = [1, 1]} : vector<8x128xf32> to vector<1x32xf32>
    %199 = vector.extract_strided_slice %130 {offsets = [3, 0], sizes = [1, 32], strides = [1, 1]} : vector<8x128xf32> to vector<1x32xf32>
    %cst_63 = arith.constant dense<0.000000e+00> : vector<32xf32>
    %200 = vector.multi_reduction <add>, %197, %cst_63 [1] : vector<32x32xf32> to vector<32xf32>
    %201 = vector.shape_cast %200 : vector<32xf32> to vector<32x1xf32>
    %cst_64 = arith.constant 3.200000e+01 : f32
    %202 = vector.broadcast %cst_64 : f32 to vector<32x1xf32>
    %203 = arith.divf %201, %202 : vector<32x1xf32>
    %204 = vector.broadcast %203 : vector<32x1xf32> to vector<32x32xf32>
    %205 = arith.subf %197, %204 : vector<32x32xf32>
    %206 = arith.mulf %205, %205 : vector<32x32xf32>
    %cst_65 = arith.constant dense<0.000000e+00> : vector<32xf32>
    %207 = vector.multi_reduction <add>, %206, %cst_65 [1] : vector<32x32xf32> to vector<32xf32>
    %208 = vector.shape_cast %207 : vector<32xf32> to vector<32x1xf32>
    %cst_66 = arith.constant 3.200000e+01 : f32
    %209 = vector.broadcast %cst_66 : f32 to vector<32x1xf32>
    %210 = arith.divf %208, %209 : vector<32x1xf32>
    %211 = vector.broadcast %203 : vector<32x1xf32> to vector<32x32xf32>
    %212 = arith.subf %197, %211 : vector<32x32xf32>
    %cst_67 = arith.constant 9.99999974E-6 : f32
    %213 = vector.broadcast %cst_67 : f32 to vector<32x1xf32>
    %214 = arith.addf %210, %213 : vector<32x1xf32>
    %215 = math.rsqrt %214 : vector<32x1xf32>
    %216 = vector.broadcast %215 : vector<32x1xf32> to vector<32x32xf32>
    %217 = arith.mulf %212, %216 : vector<32x32xf32>
    %218 = vector.broadcast %198 : vector<1x32xf32> to vector<32x32xf32>
    %219 = arith.mulf %217, %218 : vector<32x32xf32>
    %220 = vector.broadcast %199 : vector<1x32xf32> to vector<32x32xf32>
    %221 = arith.addf %219, %220 : vector<32x32xf32>
    %c1_68 = arith.constant 1 : index
    %c0_69 = arith.constant 0 : index
    %c0_70 = arith.constant 0 : index
    %222 = vector.load %arg5[%c1_68, %c0_69, %c0_70] : memref<2x32x128xf32, #tpu.memory_space<vmem>>, vector<1x32x128xf32>
    %223 = vector.shape_cast %222 : vector<1x32x128xf32> to vector<32x128xf32>
    %cst_71 = arith.constant dense<0.000000e+00> : vector<32x128xf32>
    %224 = tpu.matmul %221, %223, %cst_71 {dimension_numbers = #tpu.dot_dimension_numbers<[1], [0], [0], [1], [0, 0, 1, 1], [], []>} : vector<32x32xf32>, vector<32x128xf32>, vector<32x128xf32> -> vector<32x128xf32>
    %225 = vector.extract_strided_slice %130 {offsets = [6, 0], sizes = [1, 128], strides = [1, 1]} : vector<8x128xf32> to vector<1x128xf32>
    %226 = vector.broadcast %225 : vector<1x128xf32> to vector<32x128xf32>
    %227 = arith.addf %224, %226 : vector<32x128xf32>
    %cst_72 = arith.constant 1.702000e+00 : f32
    %228 = vector.broadcast %cst_72 : f32 to vector<32x128xf32>
    %229 = arith.mulf %228, %227 : vector<32x128xf32>
    %230 = arith.negf %229 : vector<32x128xf32>
    %231 = math.exp %230 : vector<32x128xf32>
    %cst_73 = arith.constant 1.000000e+00 : f32
    %232 = vector.broadcast %cst_73 : f32 to vector<32x128xf32>
    %233 = arith.addf %232, %231 : vector<32x128xf32>
    %234 = arith.divf %232, %233 : vector<32x128xf32>
    %235 = arith.mulf %227, %234 : vector<32x128xf32>
    %c1_74 = arith.constant 1 : index
    %c0_75 = arith.constant 0 : index
    %c0_76 = arith.constant 0 : index
    %236 = vector.load %arg6[%c1_74, %c0_75, %c0_76] : memref<2x128x32xf32, #tpu.memory_space<vmem>>, vector<1x128x32xf32>
    %237 = vector.shape_cast %236 : vector<1x128x32xf32> to vector<128x32xf32>
    %cst_77 = arith.constant dense<0.000000e+00> : vector<32x32xf32>
    %238 = tpu.matmul %235, %237, %cst_77 {dimension_numbers = #tpu.dot_dimension_numbers<[1], [0], [0], [1], [0, 0, 1, 1], [], []>} : vector<32x128xf32>, vector<128x32xf32>, vector<32x32xf32> -> vector<32x32xf32>
    %239 = arith.addf %197, %238 : vector<32x32xf32>
    %240 = vector.extract_strided_slice %130 {offsets = [7, 0], sizes = [1, 32], strides = [1, 1]} : vector<8x128xf32> to vector<1x32xf32>
    %241 = vector.broadcast %240 : vector<1x32xf32> to vector<32x32xf32>
    %242 = arith.addf %239, %241 : vector<32x32xf32>
    %243 = vector.shape_cast %242 : vector<32x32xf32> to vector<4x8x32xf32>
    %244 = vector.extract_strided_slice %243 {offsets = [0, 7, 0], sizes = [4, 1, 32], strides = [1, 1, 1]} : vector<4x8x32xf32> to vector<4x1x32xf32>
    %245 = vector.shape_cast %244 : vector<4x1x32xf32> to vector<4x32xf32>
    %c8 = arith.constant 8 : index
    %c0_78 = arith.constant 0 : index
    %246 = vector.load %arg7[%c8, %c0_78] : memref<10x32xf32, #tpu.memory_space<vmem>>, vector<1x32xf32>
    %c9 = arith.constant 9 : index
    %c0_79 = arith.constant 0 : index
    %247 = vector.load %arg7[%c9, %c0_79] : memref<10x32xf32, #tpu.memory_space<vmem>>, vector<1x32xf32>
    %cst_80 = arith.constant dense<0.000000e+00> : vector<4xf32>
    %248 = vector.multi_reduction <add>, %245, %cst_80 [1] : vector<4x32xf32> to vector<4xf32>
    %249 = vector.shape_cast %248 : vector<4xf32> to vector<4x1xf32>
    %cst_81 = arith.constant 3.200000e+01 : f32
    %250 = vector.broadcast %cst_81 : f32 to vector<4x1xf32>
    %251 = arith.divf %249, %250 : vector<4x1xf32>
    %252 = vector.broadcast %251 : vector<4x1xf32> to vector<4x32xf32>
    %253 = arith.subf %245, %252 : vector<4x32xf32>
    %254 = arith.mulf %253, %253 : vector<4x32xf32>
    %cst_82 = arith.constant dense<0.000000e+00> : vector<4xf32>
    %255 = vector.multi_reduction <add>, %254, %cst_82 [1] : vector<4x32xf32> to vector<4xf32>
    %256 = vector.shape_cast %255 : vector<4xf32> to vector<4x1xf32>
    %cst_83 = arith.constant 3.200000e+01 : f32
    %257 = vector.broadcast %cst_83 : f32 to vector<4x1xf32>
    %258 = arith.divf %256, %257 : vector<4x1xf32>
    %259 = vector.broadcast %251 : vector<4x1xf32> to vector<4x32xf32>
    %260 = arith.subf %245, %259 : vector<4x32xf32>
    %cst_84 = arith.constant 9.99999974E-6 : f32
    %261 = vector.broadcast %cst_84 : f32 to vector<4x1xf32>
    %262 = arith.addf %258, %261 : vector<4x1xf32>
    %263 = math.rsqrt %262 : vector<4x1xf32>
    %264 = vector.broadcast %263 : vector<4x1xf32> to vector<4x32xf32>
    %265 = arith.mulf %260, %264 : vector<4x32xf32>
    %266 = vector.broadcast %246 : vector<1x32xf32> to vector<4x32xf32>
    %267 = arith.mulf %265, %266 : vector<4x32xf32>
    %268 = vector.broadcast %247 : vector<1x32xf32> to vector<4x32xf32>
    %269 = arith.addf %267, %268 : vector<4x32xf32>
    %c0_85 = arith.constant 0 : index
    %c0_86 = arith.constant 0 : index
    %270 = vector.load %arg8[%c0_85, %c0_86] : memref<32x128xf32, #tpu.memory_space<vmem>>, vector<32x128xf32>
    %cst_87 = arith.constant dense<0.000000e+00> : vector<4x128xf32>
    %271 = tpu.matmul %269, %270, %cst_87 {dimension_numbers = #tpu.dot_dimension_numbers<[1], [0], [0], [1], [0, 0, 1, 1], [], []>} : vector<4x32xf32>, vector<32x128xf32>, vector<4x128xf32> -> vector<4x128xf32>
    %c0_88 = arith.constant 0 : index
    %c0_89 = arith.constant 0 : index
    %c0_90 = arith.constant 0 : index
    %272 = vector.load %arg9[%c0_88, %c0_89, %c0_90] : memref<1x4x128xf32, #tpu.memory_space<vmem>>, vector<1x4x128xf32>
    %273 = vector.shape_cast %272 : vector<1x4x128xf32> to vector<4x128xf32>
    %274 = vector.shape_cast %271 : vector<4x128xf32> to vector<1x4x128xf32>
    tpu.vector_store %arg9[%c0_88, %c0_89, %c0_90], %274 {strides = array<i32>} : memref<1x4x128xf32, #tpu.memory_space<vmem>>, vector<1x4x128xf32>,
    return
  }
  func.func @transform_0(%arg0: i32) -> (i32, i32, i32) {
    %c0_i32 = arith.constant 0 : i32
    %c0_i32_0 = arith.constant 0 : i32
    %c0_i32_1 = arith.constant 0 : i32
    return %arg0, %c0_i32, %c0_i32_0 : i32, i32, i32
  }
  func.func @transform_1(%arg0: i32) -> (i32, i32, i32) {
    %c0_i32 = arith.constant 0 : i32
    %c0_i32_0 = arith.constant 0 : i32
    %c0_i32_1 = arith.constant 0 : i32
    %c0_i32_2 = arith.constant 0 : i32
    return %c0_i32, %c0_i32_0, %c0_i32_1 : i32, i32, i32
  }
  func.func @transform_2(%arg0: i32) -> (i32, i32, i32) {
    %c0_i32 = arith.constant 0 : i32
    %c0_i32_0 = arith.constant 0 : i32
    %c0_i32_1 = arith.constant 0 : i32
    %c0_i32_2 = arith.constant 0 : i32
    return %c0_i32, %c0_i32_0, %c0_i32_1 : i32, i32, i32
  }
  func.func @transform_3(%arg0: i32) -> (i32, i32, i32, i32) {
    %c0_i32 = arith.constant 0 : i32
    %c0_i32_0 = arith.constant 0 : i32
    %c0_i32_1 = arith.constant 0 : i32
    %c0_i32_2 = arith.constant 0 : i32
    %c0_i32_3 = arith.constant 0 : i32
    return %c0_i32, %c0_i32_0, %c0_i32_1, %c0_i32_2 : i32, i32, i32, i32
  }
  func.func @transform_4(%arg0: i32) -> (i32, i32, i32) {
    %c0_i32 = arith.constant 0 : i32
    %c0_i32_0 = arith.constant 0 : i32
    %c0_i32_1 = arith.constant 0 : i32
    %c0_i32_2 = arith.constant 0 : i32
    return %c0_i32, %c0_i32_0, %c0_i32_1 : i32, i32, i32
  }
  func.func @transform_5(%arg0: i32) -> (i32, i32, i32) {
    %c0_i32 = arith.constant 0 : i32
    %c0_i32_0 = arith.constant 0 : i32
    %c0_i32_1 = arith.constant 0 : i32
    %c0_i32_2 = arith.constant 0 : i32
    return %c0_i32, %c0_i32_0, %c0_i32_1 : i32, i32, i32
  }
  func.func @transform_6(%arg0: i32) -> (i32, i32) {
    %c0_i32 = arith.constant 0 : i32
    %c0_i32_0 = arith.constant 0 : i32
    %c0_i32_1 = arith.constant 0 : i32
    return %c0_i32, %c0_i32_0 : i32, i32
  }
  func.func @transform_7(%arg0: i32) -> (i32, i32) {
    %c0_i32 = arith.constant 0 : i32
    %c0_i32_0 = arith.constant 0 : i32
    %c0_i32_1 = arith.constant 0 : i32
    return %c0_i32, %c0_i32_0 : i32, i32
  }
  func.func @transform_8(%arg0: i32) -> (i32, i32, i32) {
    %c0_i32 = arith.constant 0 : i32
    %c0_i32_0 = arith.constant 0 : i32
    %c0_i32_1 = arith.constant 0 : i32
    return %arg0, %c0_i32, %c0_i32_0 : i32, i32, i32
  }
}

</mosaic_0001>

<llo_original>
// kernel: tpu_custom_call.1
$region0: #{tpu_custom_call.1}
  #allocation0 [shape = 'u32[]', space=smem, size = 0x4, offset = 0x4, fixed_abs, tag = 'smem constant byte address 0x4 - core index']
  #allocation1 [shape = 'u32[72,128]{1,0:T(1,128)}', space=vmem, size = 0x9000, scoped, tag = 'internal scratch']
  %s0 = inlined_call_operand.vmem [shape: f32[4,8,32], index: 0, kind: input, shape index: {}]
  %s1 = inlined_call_operand.vmem [shape: f32[2,8,128], index: 1, kind: input, shape index: {}]
  %s2 = inlined_call_operand.vmem [shape: f32[2,32,96], index: 2, kind: input, shape index: {}]
  %s3 = inlined_call_operand.vmem [shape: f32[2,4,8,32], index: 3, kind: input, shape index: {}]
  %s4 = inlined_call_operand.vmem [shape: f32[2,32,128], index: 4, kind: input, shape index: {}]
  %s5 = inlined_call_operand.vmem [shape: f32[2,128,32], index: 5, kind: input, shape index: {}]
  %s6 = inlined_call_operand.vmem [shape: f32[10,32], index: 6, kind: input, shape index: {}]
  %s7 = inlined_call_operand.vmem [shape: f32[32,128], index: 7, kind: input, shape index: {}]
  %s8 = inlined_call_operand.hbm [shape: f32[1,4,128], index: 8, kind: output, shape index: {}]
  %s9 = sld [smem:[#allocation0]]
  $region42: #{tpu_custom_call.1} parent=0
    _
  %s11 = ssub.s32 1, %s9
  %s12 = scalar_select 0, %s11, %s9
  $region1: #{tpu_custom_call.1} parent=0
    #allocation2 [shape = 'u8[2048]{0}', space=vmem, size = 0x800, scoped, tag = 'output window, operand 0, single buffered']
    #allocation3 [shape = 's32[1]{0}', space=sflag, size = 0x4, scoped, tag = 'scoped memory for tpu_custom_call.1']
    %13 = vsyncpa [#allocation3], 0
    // Predicated region
    $region2: #{tpu_custom_call.1} parent=1 // pred_check
      _
    $region3: #{tpu_custom_call.1} parent=1 // pred_check_branch
      %15 = sbr.rel (0) target = $region5
    $region4: #{tpu_custom_call.1} parent=1 // pred_region
      _
    $region5: #{tpu_custom_call.1} parent=1 // pred_fallthru
      _
    // Predicated region
    $region6: #{tpu_custom_call.1} parent=1 // pred_check
      _
    $region7: #{tpu_custom_call.1} parent=1 // pred_check_branch
      %17 = sbr.rel (0) target = $region9
    $region8: #{tpu_custom_call.1} parent=1 // pred_region
      _
    $region9: #{tpu_custom_call.1} parent=1 // pred_fallthru
      _
    // Predicated region
    $region10: #{tpu_custom_call.1} parent=1 // pred_check
      _
    $region11: #{tpu_custom_call.1} parent=1 // pred_check_branch
      %19 = sbr.rel (0) target = $region13
    $region12: #{tpu_custom_call.1} parent=1 // pred_region
      _
    $region13: #{tpu_custom_call.1} parent=1 // pred_fallthru
      _
    // Predicated region
    $region14: #{tpu_custom_call.1} parent=1 // pred_check
      _
    $region15: #{tpu_custom_call.1} parent=1 // pred_check_branch
      %21 = sbr.rel (0) target = $region17
    $region16: #{tpu_custom_call.1} parent=1 // pred_region
      _
    $region17: #{tpu_custom_call.1} parent=1 // pred_fallthru
      _
    // Predicated region
    $region18: #{tpu_custom_call.1} parent=1 // pred_check
      _
    $region19: #{tpu_custom_call.1} parent=1 // pred_check_branch
      %23 = sbr.rel (0) target = $region21
    $region20: #{tpu_custom_call.1} parent=1 // pred_region
      _
    $region21: #{tpu_custom_call.1} parent=1 // pred_fallthru
      _
    // Predicated region
    $region22: #{tpu_custom_call.1} parent=1 // pred_check
      _
    $region23: #{tpu_custom_call.1} parent=1 // pred_check_branch
      %25 = sbr.rel (0) target = $region25
    $region24: #{tpu_custom_call.1} parent=1 // pred_region
      _
    $region25: #{tpu_custom_call.1} parent=1 // pred_fallthru
      _
    // Predicated region
    $region26: #{tpu_custom_call.1} parent=1 // pred_check
      _
    $region27: #{tpu_custom_call.1} parent=1 // pred_check_branch
      %27 = sbr.rel (0) target = $region29
    $region28: #{tpu_custom_call.1} parent=1 // pred_region
      _
    $region29: #{tpu_custom_call.1} parent=1 // pred_fallthru
      _
    // Predicated region
    $region30: #{tpu_custom_call.1} parent=1 // pred_check
      _
    $region31: #{tpu_custom_call.1} parent=1 // pred_check_branch
      %29 = sbr.rel (0) target = $region33
    $region32: #{tpu_custom_call.1} parent=1 // pred_region
      _
    $region33: #{tpu_custom_call.1} parent=1 // pred_fallthru
      _
    %v30 = vld [vmem:[%s6] sm:$0xff]
    %v31 = vld [vmem:[%s0] sm:$0xff]
    %v32 = vld [vmem:[%s0 + $0x8] sm:$0xff]
    %v33 = vld [vmem:[%s0 + $0x10] sm:$0xff]
    %v34 = vld [vmem:[%s0 + $0x18] sm:$0xff]
    %v35 = vadd.f32 %v31, %v30
    %v36 = vadd.f32 %v32, %v30
    %v37 = vadd.f32 %v33, %v30
    %v38 = vadd.f32 %v34, %v30
    %v39 = vlaneseq
    %v40 = vshrl.u32 %v39, 7
    %v41 = vlaneseq
    %v42 = vand.u32 %v41, 127
    %vm43 = vcmp.gt.s32.totalorder %v42, %v40
    %v44 = vsel %vm43, -1e+09, 0.0
    %v45 = vld [vmem:[%s1] sm:$0xff]
    %vm46 = vcmask 261120
    %v47 = vsel %vm46, %v35, 0.0
    %48 = vadd.xlane.f32.xlu0 %v47
    %v49 = vpop.xlane.xlu0 %48
    %v50 = vsel %vm46, %v36, 0.0
    %51 = vadd.xlane.f32.xlu0 %v50
    %v52 = vpop.xlane.xlu0 %51
    %v53 = vsel %vm46, %v37, 0.0
    %54 = vadd.xlane.f32.xlu0 %v53
    %v55 = vpop.xlane.xlu0 %54
    %v56 = vsel %vm46, %v38, 0.0
    %57 = vadd.xlane.f32.xlu0 %v56
    %v58 = vpop.xlane.xlu0 %57
    %v59 = vrcp.pop 32.0
    %v60 = vmul.f32 32.0, %v59
    %v61 = vsub.f32 1.0, %v60
    %v62 = vmul.f32 %v59, %v61
    %v63 = vadd.f32 %v59, %v62
    %vm64 = vweird.f32 %v59
    %v65 = vsel %vm64, %v59, %v63
    %v66 = vmul.f32 %v49, %v65
    %v67 = vmul.f32 %v52, %v65
    %v68 = vmul.f32 %v55, %v65
    %v69 = vmul.f32 %v58, %v65
    %v70 = vsub.f32 %v35, %v66
    %v71 = vsub.f32 %v36, %v67
    %v72 = vsub.f32 %v37, %v68
    %v73 = vsub.f32 %v38, %v69
    %v74 = vmul.f32 %v70, %v70
    %v75 = vmul.f32 %v71, %v71
    %v76 = vmul.f32 %v72, %v72
    %v77 = vmul.f32 %v73, %v73
    %v78 = vsel %vm46, %v74, 0.0
    %79 = vadd.xlane.f32.xlu0 %v78
    %v80 = vpop.xlane.xlu0 %79
    %v81 = vsel %vm46, %v75, 0.0
    %82 = vadd.xlane.f32.xlu0 %v81
    %v83 = vpop.xlane.xlu0 %82
    %v84 = vsel %vm46, %v76, 0.0
    %85 = vadd.xlane.f32.xlu0 %v84
    %v86 = vpop.xlane.xlu0 %85
    %v87 = vsel %vm46, %v77, 0.0
    %88 = vadd.xlane.f32.xlu0 %v87
    %v89 = vpop.xlane.xlu0 %88
    %v90 = vmul.f32 %v80, %v65
    %v91 = vmul.f32 %v83, %v65
    %v92 = vmul.f32 %v86, %v65
    %v93 = vmul.f32 %v89, %v65
    %v94 = vadd.f32 %v90, 1e-05
    %v95 = vadd.f32 %v91, 1e-05
    %v96 = vadd.f32 %v92, 1e-05
    %v97 = vadd.f32 %v93, 1e-05
    %v98 = vrsqrt.pop %v94
    %v99 = vmul.f32 %v98, %v94
    %v100 = vmul.f32 %v99, %v98
    %v101 = vmul.f32 0.5, %v100
    %v102 = vsub.f32 1.5, %v101
    %v103 = vmul.f32 %v98, %v102
    %vm104 = vweird.f32 %v94
    %vm105 = vweird.f32 %v98
    %vm106 = vmor %vm104, %vm105
    %v107 = vsel %vm106, %v98, %v103
    %v108 = vrsqrt.pop %v95
    %v109 = vmul.f32 %v108, %v95
    %v110 = vmul.f32 %v109, %v108
    %v111 = vmul.f32 0.5, %v110
    %v112 = vsub.f32 1.5, %v111
    %v113 = vmul.f32 %v108, %v112
    %vm114 = vweird.f32 %v95
    %vm115 = vweird.f32 %v108
    %vm116 = vmor %vm114, %vm115
    %v117 = vsel %vm116, %v108, %v113
    %v118 = vrsqrt.pop %v96
    %v119 = vmul.f32 %v118, %v96
    %v120 = vmul.f32 %v119, %v118
    %v121 = vmul.f32 0.5, %v120
    %v122 = vsub.f32 1.5, %v121
    %v123 = vmul.f32 %v118, %v122
    %vm124 = vweird.f32 %v96
    %vm125 = vweird.f32 %v118
    %vm126 = vmor %vm124, %vm125
    %v127 = vsel %vm126, %v118, %v123
    %v128 = vrsqrt.pop %v97
    %v129 = vmul.f32 %v128, %v97
    %v130 = vmul.f32 %v129, %v128
    %v131 = vmul.f32 0.5, %v130
    %v132 = vsub.f32 1.5, %v131
    %v133 = vmul.f32 %v128, %v132
    %vm134 = vweird.f32 %v97
    %vm135 = vweird.f32 %v128
    %vm136 = vmor %vm134, %vm135
    %v137 = vsel %vm136, %v128, %v133
    %v138 = vmul.f32 %v70, %v107
    %v139 = vmul.f32 %v71, %v117
    %v140 = vmul.f32 %v72, %v127
    %v141 = vmul.f32 %v73, %v137
    %v142 = vperm.slane %v45, 0
    %v143 = vmul.f32 %v138, %v142
    %v144 = vmul.f32 %v139, %v142
    %v145 = vmul.f32 %v140, %v142
    %v146 = vmul.f32 %v141, %v142
    %v147 = vperm.slane %v45, 1
    %v148 = vadd.f32 %v143, %v147
    %v149 = vadd.f32 %v144, %v147
    %v150 = vadd.f32 %v145, %v147
    %v151 = vadd.f32 %v146, %v147
    %v152 = vld [vmem:[%s2] sm:$0xff]
    %v153 = vld [vmem:[%s2 + $0x8] sm:$0xff]
    %v154 = vld [vmem:[%s2 + $0x10] sm:$0xff]
    %v155 = vld [vmem:[%s2 + $0x18] sm:$0xff]
    %v156 = vperm.slane %v45, 4
    %v158 = vsel %vm46, %v148, 0
    %v161 = vsel %vm46, %v149, 0
    %v164 = vsel %vm46, %v150, 0
    %v167 = vsel %vm46, %v151, 0
    %169 = vmatpush.msra.mxu0 0.0
    %170 = vmatpush.msra.mxu0 0.0
    %171 = vmatpush.msra.mxu0 0.0
    %172 = vmatpush.msra.mxu0 0.0
    %173 = vmatpush.msra.mxu0 0.0
    %174 = vmatpush.msra.mxu0 0.0
    %175 = vmatpush.msra.mxu0 0.0
    %176 = vmatpush.msra.mxu0 0.0
    %177 = vmatpush.msra.mxu0 0.0
    %178 = vmatpush.msra.mxu0 0.0
    %179 = vmatpush.msra.mxu0 0.0
    %180 = vmatpush.msra.mxu0 0.0
    %181 = vmatpush.msra.mxu0 %v155
    %182 = vmatpush.msra.mxu0 %v154
    %183 = vmatpush.msra.mxu0 %v153
    %184 = vmatpush.msra.mxu0 %v152
    %185 = vmatmul.f32.gmra.mxu0 %v158
    %v186 = vpop.f32.mrf.mxu0
    %v187 = vadd.f32 %v156, %v186
    %188 = vmatmul.f32.gmra.mxu0 %v161
    %v189 = vpop.f32.mrf.mxu0
    %v190 = vadd.f32 %v156, %v189
    %191 = vmatmul.f32.gmra.mxu0 %v164
    %v192 = vpop.f32.mrf.mxu0
    %v193 = vadd.f32 %v156, %v192
    %194 = vmatmul.f32.gmra.mxu0 %v167
    %v195 = vpop.f32.mrf.mxu0
    %v196 = vadd.f32 %v156, %v195
    %197 = vdwg.mxu0
    %202 = vrot.lane.b32.xlu0 %v187, 104
    %v203 = vpop.permute.xlu0 %202
    %204 = vrot.lane.b32.xlu0 %v190, 104
    %v205 = vpop.permute.xlu0 %204
    %206 = vrot.lane.b32.xlu0 %v193, 104
    %v207 = vpop.permute.xlu0 %206
    %208 = vrot.lane.b32.xlu0 %v196, 104
    %v209 = vpop.permute.xlu0 %208
    %210 = vrot.lane.b32.xlu0 %v187, 80
    %v211 = vpop.permute.xlu0 %210
    %212 = vrot.lane.b32.xlu0 %v190, 80
    %v213 = vpop.permute.xlu0 %212
    %214 = vrot.lane.b32.xlu0 %v193, 80
    %v215 = vpop.permute.xlu0 %214
    %216 = vrot.lane.b32.xlu0 %v196, 80
    %v217 = vpop.permute.xlu0 %216
    %218 = vrot.lane.b32.xlu0 %v187, 56
    %v219 = vpop.permute.xlu0 %218
    %220 = vrot.lane.b32.xlu0 %v190, 56
    %v221 = vpop.permute.xlu0 %220
    %222 = vrot.lane.b32.xlu0 %v193, 56
    %v223 = vpop.permute.xlu0 %222
    %224 = vrot.lane.b32.xlu0 %v196, 56
    %v225 = vpop.permute.xlu0 %224
    %226 = vrot.lane.b32.xlu0 %v187, 120
    %v227 = vpop.permute.xlu0 %226
    %vm228 = vcmask 64512
    %v229 = vsel %vm228, %v187, 0
    %v231 = vsel %vm228, %v227, 0
    %233 = vmatpush.xpose.msra.mxu0 0.0
    %234 = vmatpush.xpose.msra.mxu0 0.0
    %235 = vmatpush.xpose.msra.mxu0 0.0
    %236 = vmatpush.xpose.msra.mxu0 0.0
    %237 = vmatpush.xpose.msra.mxu0 0.0
    %238 = vmatpush.xpose.msra.mxu0 0.0
    %239 = vmatpush.xpose.msra.mxu0 0.0
    %240 = vmatpush.xpose.msra.mxu0 0.0
    %241 = vmatpush.xpose.msra.mxu0 0.0
    %242 = vmatpush.xpose.msra.mxu0 0.0
    %243 = vmatpush.xpose.msra.mxu0 0.0
    %244 = vmatpush.xpose.msra.mxu0 0.0
    %245 = vmatpush.xpose.msra.mxu0 0.0
    %246 = vmatpush.xpose.msra.mxu0 0.0
    %247 = vmatpush.xpose.msra.mxu0 0.0
    %248 = vmatpush.xpose.msra.mxu0 %v231
    %249 = vmatmul.f32.gmra.mxu0 %v229
    %v250 = vpop.f32.mrf.mxu0
    %v251 = vadd.f32 %v44, %v250
    %252 = vdwg.mxu0
    %253 = vrot.lane.b32.xlu0 %v190, 120
    %v254 = vpop.permute.xlu0 %253
    %v255 = vsel %vm228, %v190, 0
    %v257 = vsel %vm228, %v254, 0
    %259 = vmatpush.xpose.msra.mxu0 0.0
    %260 = vmatpush.xpose.msra.mxu0 0.0
    %261 = vmatpush.xpose.msra.mxu0 0.0
    %262 = vmatpush.xpose.msra.mxu0 0.0
    %263 = vmatpush.xpose.msra.mxu0 0.0
    %264 = vmatpush.xpose.msra.mxu0 0.0
    %265 = vmatpush.xpose.msra.mxu0 0.0
    %266 = vmatpush.xpose.msra.mxu0 0.0
    %267 = vmatpush.xpose.msra.mxu0 0.0
    %268 = vmatpush.xpose.msra.mxu0 0.0
    %269 = vmatpush.xpose.msra.mxu0 0.0
    %270 = vmatpush.xpose.msra.mxu0 0.0
    %271 = vmatpush.xpose.msra.mxu0 0.0
    %272 = vmatpush.xpose.msra.mxu0 0.0
    %273 = vmatpush.xpose.msra.mxu0 0.0
    %274 = vmatpush.xpose.msra.mxu0 %v257
    %275 = vmatmul.f32.gmra.mxu0 %v255
    %v276 = vpop.f32.mrf.mxu0
    %v277 = vadd.f32 %v44, %v276
    %278 = vdwg.mxu0
    %279 = vrot.lane.b32.xlu0 %v193, 120
    %v280 = vpop.permute.xlu0 %279
    %v281 = vsel %vm228, %v193, 0
    %v283 = vsel %vm228, %v280, 0
    %285 = vmatpush.xpose.msra.mxu0 0.0
    %286 = vmatpush.xpose.msra.mxu0 0.0
    %287 = vmatpush.xpose.msra.mxu0 0.0
    %288 = vmatpush.xpose.msra.mxu0 0.0
    %289 = vmatpush.xpose.msra.mxu0 0.0
    %290 = vmatpush.xpose.msra.mxu0 0.0
    %291 = vmatpush.xpose.msra.mxu0 0.0
    %292 = vmatpush.xpose.msra.mxu0 0.0
    %293 = vmatpush.xpose.msra.mxu0 0.0
    %294 = vmatpush.xpose.msra.mxu0 0.0
    %295 = vmatpush.xpose.msra.mxu0 0.0
    %296 = vmatpush.xpose.msra.mxu0 0.0
    %297 = vmatpush.xpose.msra.mxu0 0.0
    %298 = vmatpush.xpose.msra.mxu0 0.0
    %299 = vmatpush.xpose.msra.mxu0 0.0
    %300 = vmatpush.xpose.msra.mxu0 %v283
    %301 = vmatmul.f32.gmra.mxu0 %v281
    %v302 = vpop.f32.mrf.mxu0
    %v303 = vadd.f32 %v44, %v302
    %304 = vdwg.mxu0
    %305 = vrot.lane.b32.xlu0 %v196, 120
    %v306 = vpop.permute.xlu0 %305
    %v307 = vsel %vm228, %v196, 0
    %v309 = vsel %vm228, %v306, 0
    %311 = vmatpush.xpose.msra.mxu0 0.0
    %312 = vmatpush.xpose.msra.mxu0 0.0
    %313 = vmatpush.xpose.msra.mxu0 0.0
    %314 = vmatpush.xpose.msra.mxu0 0.0
    %315 = vmatpush.xpose.msra.mxu0 0.0
    %316 = vmatpush.xpose.msra.mxu0 0.0
    %317 = vmatpush.xpose.msra.mxu0 0.0
    %318 = vmatpush.xpose.msra.mxu0 0.0
    %319 = vmatpush.xpose.msra.mxu0 0.0
    %320 = vmatpush.xpose.msra.mxu0 0.0
    %321 = vmatpush.xpose.msra.mxu0 0.0
    %322 = vmatpush.xpose.msra.mxu0 0.0
    %323 = vmatpush.xpose.msra.mxu0 0.0
    %324 = vmatpush.xpose.msra.mxu0 0.0
    %325 = vmatpush.xpose.msra.mxu0 0.0
    %326 = vmatpush.xpose.msra.mxu0 %v309
    %327 = vmatmul.f32.gmra.mxu0 %v307
    %v328 = vpop.f32.mrf.mxu0
    %v329 = vadd.f32 %v44, %v328
    %330 = vdwg.mxu0
    %331 = vrot.lane.b32.xlu0 %v203, 120
    %v332 = vpop.permute.xlu0 %331
    %v333 = vsel %vm228, %v203, 0
    %v335 = vsel %vm228, %v332, 0
    %337 = vmatpush.xpose.msra.mxu0 0.0
    %338 = vmatpush.xpose.msra.mxu0 0.0
    %339 = vmatpush.xpose.msra.mxu0 0.0
    %340 = vmatpush.xpose.msra.mxu0 0.0
    %341 = vmatpush.xpose.msra.mxu0 0.0
    %342 = vmatpush.xpose.msra.mxu0 0.0
    %343 = vmatpush.xpose.msra.mxu0 0.0
    %344 = vmatpush.xpose.msra.mxu0 0.0
    %345 = vmatpush.xpose.msra.mxu0 0.0
    %346 = vmatpush.xpose.msra.mxu0 0.0
    %347 = vmatpush.xpose.msra.mxu0 0.0
    %348 = vmatpush.xpose.msra.mxu0 0.0
    %349 = vmatpush.xpose.msra.mxu0 0.0
    %350 = vmatpush.xpose.msra.mxu0 0.0
    %351 = vmatpush.xpose.msra.mxu0 0.0
    %352 = vmatpush.xpose.msra.mxu0 %v335
    %353 = vmatmul.f32.gmra.mxu0 %v333
    %v354 = vpop.f32.mrf.mxu0
    %v355 = vadd.f32 %v44, %v354
    %356 = vdwg.mxu0
    %357 = vrot.lane.b32.xlu0 %v205, 120
    %v358 = vpop.permute.xlu0 %357
    %v359 = vsel %vm228, %v205, 0
    %v361 = vsel %vm228, %v358, 0
    %363 = vmatpush.xpose.msra.mxu0 0.0
    %364 = vmatpush.xpose.msra.mxu0 0.0
    %365 = vmatpush.xpose.msra.mxu0 0.0
    %366 = vmatpush.xpose.msra.mxu0 0.0
    %367 = vmatpush.xpose.msra.mxu0 0.0
    %368 = vmatpush.xpose.msra.mxu0 0.0
    %369 = vmatpush.xpose.msra.mxu0 0.0
    %370 = vmatpush.xpose.msra.mxu0 0.0
    %371 = vmatpush.xpose.msra.mxu0 0.0
    %372 = vmatpush.xpose.msra.mxu0 0.0
    %373 = vmatpush.xpose.msra.mxu0 0.0
    %374 = vmatpush.xpose.msra.mxu0 0.0
    %375 = vmatpush.xpose.msra.mxu0 0.0
    %376 = vmatpush.xpose.msra.mxu0 0.0
    %377 = vmatpush.xpose.msra.mxu0 0.0
    %378 = vmatpush.xpose.msra.mxu0 %v361
    %379 = vmatmul.f32.gmra.mxu0 %v359
    %v380 = vpop.f32.mrf.mxu0
    %v381 = vadd.f32 %v44, %v380
    %382 = vdwg.mxu0
    %383 = vrot.lane.b32.xlu0 %v207, 120
    %v384 = vpop.permute.xlu0 %383
    %v385 = vsel %vm228, %v207, 0
    %v387 = vsel %vm228, %v384, 0
    %389 = vmatpush.xpose.msra.mxu0 0.0
    %390 = vmatpush.xpose.msra.mxu0 0.0
    %391 = vmatpush.xpose.msra.mxu0 0.0
    %392 = vmatpush.xpose.msra.mxu0 0.0
    %393 = vmatpush.xpose.msra.mxu0 0.0
    %394 = vmatpush.xpose.msra.mxu0 0.0
    %395 = vmatpush.xpose.msra.mxu0 0.0
    %396 = vmatpush.xpose.msra.mxu0 0.0
    %397 = vmatpush.xpose.msra.mxu0 0.0
    %398 = vmatpush.xpose.msra.mxu0 0.0
    %399 = vmatpush.xpose.msra.mxu0 0.0
    %400 = vmatpush.xpose.msra.mxu0 0.0
    %401 = vmatpush.xpose.msra.mxu0 0.0
    %402 = vmatpush.xpose.msra.mxu0 0.0
    %403 = vmatpush.xpose.msra.mxu0 0.0
    %404 = vmatpush.xpose.msra.mxu0 %v387
    %405 = vmatmul.f32.gmra.mxu0 %v385
    %v406 = vpop.f32.mrf.mxu0
    %v407 = vadd.f32 %v44, %v406
    %408 = vdwg.mxu0
    %409 = vrot.lane.b32.xlu0 %v209, 120
    %v410 = vpop.permute.xlu0 %409
    %v411 = vsel %vm228, %v209, 0
    %v413 = vsel %vm228, %v410, 0
    %415 = vmatpush.xpose.msra.mxu0 0.0
    %416 = vmatpush.xpose.msra.mxu0 0.0
    %417 = vmatpush.xpose.msra.mxu0 0.0
    %418 = vmatpush.xpose.msra.mxu0 0.0
    %419 = vmatpush.xpose.msra.mxu0 0.0
    %420 = vmatpush.xpose.msra.mxu0 0.0
    %421 = vmatpush.xpose.msra.mxu0 0.0
    %422 = vmatpush.xpose.msra.mxu0 0.0
    %423 = vmatpush.xpose.msra.mxu0 0.0
    %424 = vmatpush.xpose.msra.mxu0 0.0
    %425 = vmatpush.xpose.msra.mxu0 0.0
    %426 = vmatpush.xpose.msra.mxu0 0.0
    %427 = vmatpush.xpose.msra.mxu0 0.0
    %428 = vmatpush.xpose.msra.mxu0 0.0
    %429 = vmatpush.xpose.msra.mxu0 0.0
    %430 = vmatpush.xpose.msra.mxu0 %v413
    %431 = vmatmul.f32.gmra.mxu0 %v411
    %v432 = vpop.f32.mrf.mxu0
    %v433 = vadd.f32 %v44, %v432
    %434 = vdwg.mxu0
    %435 = vrot.lane.b32.xlu0 %v211, 120
    %v436 = vpop.permute.xlu0 %435
    %v437 = vsel %vm228, %v211, 0
    %v439 = vsel %vm228, %v436, 0
    %441 = vmatpush.xpose.msra.mxu0 0.0
    %442 = vmatpush.xpose.msra.mxu0 0.0
    %443 = vmatpush.xpose.msra.mxu0 0.0
    %444 = vmatpush.xpose.msra.mxu0 0.0
    %445 = vmatpush.xpose.msra.mxu0 0.0
    %446 = vmatpush.xpose.msra.mxu0 0.0
    %447 = vmatpush.xpose.msra.mxu0 0.0
    %448 = vmatpush.xpose.msra.mxu0 0.0
    %449 = vmatpush.xpose.msra.mxu0 0.0
    %450 = vmatpush.xpose.msra.mxu0 0.0
    %451 = vmatpush.xpose.msra.mxu0 0.0
    %452 = vmatpush.xpose.msra.mxu0 0.0
    %453 = vmatpush.xpose.msra.mxu0 0.0
    %454 = vmatpush.xpose.msra.mxu0 0.0
    %455 = vmatpush.xpose.msra.mxu0 0.0
    %456 = vmatpush.xpose.msra.mxu0 %v439
    %457 = vmatmul.f32.gmra.mxu0 %v437
    %v458 = vpop.f32.mrf.mxu0
    %v459 = vadd.f32 %v44, %v458
    %460 = vdwg.mxu0
    %461 = vrot.lane.b32.xlu0 %v213, 120
    %v462 = vpop.permute.xlu0 %461
    %v463 = vsel %vm228, %v213, 0
    %v465 = vsel %vm228, %v462, 0
    %467 = vmatpush.xpose.msra.mxu0 0.0
    %468 = vmatpush.xpose.msra.mxu0 0.0
    %469 = vmatpush.xpose.msra.mxu0 0.0
    %470 = vmatpush.xpose.msra.mxu0 0.0
    %471 = vmatpush.xpose.msra.mxu0 0.0
    %472 = vmatpush.xpose.msra.mxu0 0.0
    %473 = vmatpush.xpose.msra.mxu0 0.0
    %474 = vmatpush.xpose.msra.mxu0 0.0
    %475 = vmatpush.xpose.msra.mxu0 0.0
    %476 = vmatpush.xpose.msra.mxu0 0.0
    %477 = vmatpush.xpose.msra.mxu0 0.0
    %478 = vmatpush.xpose.msra.mxu0 0.0
    %479 = vmatpush.xpose.msra.mxu0 0.0
    %480 = vmatpush.xpose.msra.mxu0 0.0
    %481 = vmatpush.xpose.msra.mxu0 0.0
    %482 = vmatpush.xpose.msra.mxu0 %v465
    %483 = vmatmul.f32.gmra.mxu0 %v463
    %v484 = vpop.f32.mrf.mxu0
    %v485 = vadd.f32 %v44, %v484
    %486 = vdwg.mxu0
    %487 = vrot.lane.b32.xlu0 %v215, 120
    %v488 = vpop.permute.xlu0 %487
    %v489 = vsel %vm228, %v215, 0
    %v491 = vsel %vm228, %v488, 0
    %493 = vmatpush.xpose.msra.mxu0 0.0
    %494 = vmatpush.xpose.msra.mxu0 0.0
    %495 = vmatpush.xpose.msra.mxu0 0.0
    %496 = vmatpush.xpose.msra.mxu0 0.0
    %497 = vmatpush.xpose.msra.mxu0 0.0
    %498 = vmatpush.xpose.msra.mxu0 0.0
    %499 = vmatpush.xpose.msra.mxu0 0.0
    %500 = vmatpush.xpose.msra.mxu0 0.0
    %501 = vmatpush.xpose.msra.mxu0 0.0
    %502 = vmatpush.xpose.msra.mxu0 0.0
    %503 = vmatpush.xpose.msra.mxu0 0.0
    %504 = vmatpush.xpose.msra.mxu0 0.0
    %505 = vmatpush.xpose.msra.mxu0 0.0
    %506 = vmatpush.xpose.msra.mxu0 0.0
    %507 = vmatpush.xpose.msra.mxu0 0.0
    %508 = vmatpush.xpose.msra.mxu0 %v491
    %509 = vmatmul.f32.gmra.mxu0 %v489
    %v510 = vpop.f32.mrf.mxu0
    %v511 = vadd.f32 %v44, %v510
    %512 = vdwg.mxu0
    %513 = vrot.lane.b32.xlu0 %v217, 120
    %v514 = vpop.permute.xlu0 %513
    %v515 = vsel %vm228, %v217, 0
    %v517 = vsel %vm228, %v514, 0
    %519 = vmatpush.xpose.msra.mxu0 0.0
    %520 = vmatpush.xpose.msra.mxu0 0.0
    %521 = vmatpush.xpose.msra.mxu0 0.0
    %522 = vmatpush.xpose.msra.mxu0 0.0
    %523 = vmatpush.xpose.msra.mxu0 0.0
    %524 = vmatpush.xpose.msra.mxu0 0.0
    %525 = vmatpush.xpose.msra.mxu0 0.0
    %526 = vmatpush.xpose.msra.mxu0 0.0
    %527 = vmatpush.xpose.msra.mxu0 0.0
    %528 = vmatpush.xpose.msra.mxu0 0.0
    %529 = vmatpush.xpose.msra.mxu0 0.0
    %530 = vmatpush.xpose.msra.mxu0 0.0
    %531 = vmatpush.xpose.msra.mxu0 0.0
    %532 = vmatpush.xpose.msra.mxu0 0.0
    %533 = vmatpush.xpose.msra.mxu0 0.0
    %534 = vmatpush.xpose.msra.mxu0 %v517
    %535 = vmatmul.f32.gmra.mxu0 %v515
    %v536 = vpop.f32.mrf.mxu0
    %v537 = vadd.f32 %v44, %v536
    %538 = vdwg.mxu0
    %539 = vrot.lane.b32.xlu0 %v219, 120
    %v540 = vpop.permute.xlu0 %539
    %v541 = vsel %vm228, %v219, 0
    %v543 = vsel %vm228, %v540, 0
    %545 = vmatpush.xpose.msra.mxu0 0.0
    %546 = vmatpush.xpose.msra.mxu0 0.0
    %547 = vmatpush.xpose.msra.mxu0 0.0
    %548 = vmatpush.xpose.msra.mxu0 0.0
    %549 = vmatpush.xpose.msra.mxu0 0.0
    %550 = vmatpush.xpose.msra.mxu0 0.0
    %551 = vmatpush.xpose.msra.mxu0 0.0
    %552 = vmatpush.xpose.msra.mxu0 0.0
    %553 = vmatpush.xpose.msra.mxu0 0.0
    %554 = vmatpush.xpose.msra.mxu0 0.0
    %555 = vmatpush.xpose.msra.mxu0 0.0
    %556 = vmatpush.xpose.msra.mxu0 0.0
    %557 = vmatpush.xpose.msra.mxu0 0.0
    %558 = vmatpush.xpose.msra.mxu0 0.0
    %559 = vmatpush.xpose.msra.mxu0 0.0
    %560 = vmatpush.xpose.msra.mxu0 %v543
    %561 = vmatmul.f32.gmra.mxu0 %v541
    %v562 = vpop.f32.mrf.mxu0
    %v563 = vadd.f32 %v44, %v562
    %564 = vdwg.mxu0
    %565 = vrot.lane.b32.xlu0 %v221, 120
    %v566 = vpop.permute.xlu0 %565
    %v567 = vsel %vm228, %v221, 0
    %v569 = vsel %vm228, %v566, 0
    %571 = vmatpush.xpose.msra.mxu0 0.0
    %572 = vmatpush.xpose.msra.mxu0 0.0
    %573 = vmatpush.xpose.msra.mxu0 0.0
    %574 = vmatpush.xpose.msra.mxu0 0.0
    %575 = vmatpush.xpose.msra.mxu0 0.0
    %576 = vmatpush.xpose.msra.mxu0 0.0
    %577 = vmatpush.xpose.msra.mxu0 0.0
    %578 = vmatpush.xpose.msra.mxu0 0.0
    %579 = vmatpush.xpose.msra.mxu0 0.0
    %580 = vmatpush.xpose.msra.mxu0 0.0
    %581 = vmatpush.xpose.msra.mxu0 0.0
    %582 = vmatpush.xpose.msra.mxu0 0.0
    %583 = vmatpush.xpose.msra.mxu0 0.0
    %584 = vmatpush.xpose.msra.mxu0 0.0
    %585 = vmatpush.xpose.msra.mxu0 0.0
    %586 = vmatpush.xpose.msra.mxu0 %v569
    %587 = vmatmul.f32.gmra.mxu0 %v567
    %v588 = vpop.f32.mrf.mxu0
    %v589 = vadd.f32 %v44, %v588
    %590 = vdwg.mxu0
    %591 = vrot.lane.b32.xlu0 %v223, 120
    %v592 = vpop.permute.xlu0 %591
    %v593 = vsel %vm228, %v223, 0
    %v595 = vsel %vm228, %v592, 0
    %597 = vmatpush.xpose.msra.mxu0 0.0
    %598 = vmatpush.xpose.msra.mxu0 0.0
    %599 = vmatpush.xpose.msra.mxu0 0.0
    %600 = vmatpush.xpose.msra.mxu0 0.0
    %601 = vmatpush.xpose.msra.mxu0 0.0
    %602 = vmatpush.xpose.msra.mxu0 0.0
    %603 = vmatpush.xpose.msra.mxu0 0.0
    %604 = vmatpush.xpose.msra.mxu0 0.0
    %605 = vmatpush.xpose.msra.mxu0 0.0
    %606 = vmatpush.xpose.msra.mxu0 0.0
    %607 = vmatpush.xpose.msra.mxu0 0.0
    %608 = vmatpush.xpose.msra.mxu0 0.0
    %609 = vmatpush.xpose.msra.mxu0 0.0
    %610 = vmatpush.xpose.msra.mxu0 0.0
    %611 = vmatpush.xpose.msra.mxu0 0.0
    %612 = vmatpush.xpose.msra.mxu0 %v595
    %613 = vmatmul.f32.gmra.mxu0 %v593
    %v614 = vpop.f32.mrf.mxu0
    %v615 = vadd.f32 %v44, %v614
    %616 = vdwg.mxu0
    %617 = vrot.lane.b32.xlu0 %v225, 120
    %v618 = vpop.permute.xlu0 %617
    %v619 = vsel %vm228, %v225, 0
    %v621 = vsel %vm228, %v618, 0
    %623 = vmatpush.xpose.msra.mxu0 0.0
    %624 = vmatpush.xpose.msra.mxu0 0.0
    %625 = vmatpush.xpose.msra.mxu0 0.0
    %626 = vmatpush.xpose.msra.mxu0 0.0
    %627 = vmatpush.xpose.msra.mxu0 0.0
    %628 = vmatpush.xpose.msra.mxu0 0.0
    %629 = vmatpush.xpose.msra.mxu0 0.0
    %630 = vmatpush.xpose.msra.mxu0 0.0
    %631 = vmatpush.xpose.msra.mxu0 0.0
    %632 = vmatpush.xpose.msra.mxu0 0.0
    %633 = vmatpush.xpose.msra.mxu0 0.0
    %634 = vmatpush.xpose.msra.mxu0 0.0
    %635 = vmatpush.xpose.msra.mxu0 0.0
    %636 = vmatpush.xpose.msra.mxu0 0.0
    %637 = vmatpush.xpose.msra.mxu0 0.0
    %638 = vmatpush.xpose.msra.mxu0 %v621
    %639 = vmatmul.f32.gmra.mxu0 %v619
    %v640 = vpop.f32.mrf.mxu0
    %v641 = vadd.f32 %v44, %v640
    %642 = vdwg.mxu0
    %v643 = vsel %vm228, %v251, -inf
    %644 = vmax.xlane.f32.xlu0 %v643
    %v645 = vpop.xlane.xlu0 %644
    %v646 = vsel %vm228, %v277, -inf
    %647 = vmax.xlane.f32.xlu0 %v646
    %v648 = vpop.xlane.xlu0 %647
    %v649 = vsel %vm228, %v303, -inf
    %650 = vmax.xlane.f32.xlu0 %v649
    %v651 = vpop.xlane.xlu0 %650
    %v652 = vsel %vm228, %v329, -inf
    %653 = vmax.xlane.f32.xlu0 %v652
    %v654 = vpop.xlane.xlu0 %653
    %v655 = vsel %vm228, %v355, -inf
    %656 = vmax.xlane.f32.xlu0 %v655
    %v657 = vpop.xlane.xlu0 %656
    %v658 = vsel %vm228, %v381, -inf
    %659 = vmax.xlane.f32.xlu0 %v658
    %v660 = vpop.xlane.xlu0 %659
    %v661 = vsel %vm228, %v407, -inf
    %662 = vmax.xlane.f32.xlu0 %v661
    %v663 = vpop.xlane.xlu0 %662
    %v664 = vsel %vm228, %v433, -inf
    %665 = vmax.xlane.f32.xlu0 %v664
    %v666 = vpop.xlane.xlu0 %665
    %v667 = vsel %vm228, %v459, -inf
    %668 = vmax.xlane.f32.xlu0 %v667
    %v669 = vpop.xlane.xlu0 %668
    %v670 = vsel %vm228, %v485, -inf
    %671 = vmax.xlane.f32.xlu0 %v670
    %v672 = vpop.xlane.xlu0 %671
    %v673 = vsel %vm228, %v511, -inf
    %674 = vmax.xlane.f32.xlu0 %v673
    %v675 = vpop.xlane.xlu0 %674
    %v676 = vsel %vm228, %v537, -inf
    %677 = vmax.xlane.f32.xlu0 %v676
    %v678 = vpop.xlane.xlu0 %677
    %v679 = vsel %vm228, %v563, -inf
    %680 = vmax.xlane.f32.xlu0 %v679
    %v681 = vpop.xlane.xlu0 %680
    %v682 = vsel %vm228, %v589, -inf
    %683 = vmax.xlane.f32.xlu0 %v682
    %v684 = vpop.xlane.xlu0 %683
    %v685 = vsel %vm228, %v615, -inf
    %686 = vmax.xlane.f32.xlu0 %v685
    %v687 = vpop.xlane.xlu0 %686
    %v688 = vsel %vm228, %v641, -inf
    %689 = vmax.xlane.f32.xlu0 %v688
    %v690 = vpop.xlane.xlu0 %689
    %v691 = vsub.f32 %v251, %v645
    %v692 = vsub.f32 %v277, %v648
    %v693 = vsub.f32 %v303, %v651
    %v694 = vsub.f32 %v329, %v654
    %v695 = vsub.f32 %v355, %v657
    %v696 = vsub.f32 %v381, %v660
    %v697 = vsub.f32 %v407, %v663
    %v698 = vsub.f32 %v433, %v666
    %v699 = vsub.f32 %v459, %v669
    %v700 = vsub.f32 %v485, %v672
    %v701 = vsub.f32 %v511, %v675
    %v702 = vsub.f32 %v537, %v678
    %v703 = vsub.f32 %v563, %v681
    %v704 = vsub.f32 %v589, %v684
    %v705 = vsub.f32 %v615, %v687
    %v706 = vsub.f32 %v641, %v690
    %v707 = vmul.f32 %v691, 1.442695
    %v708 = vpow.pop %v707
    %v709 = vmul.f32 %v692, 1.442695
    %v710 = vpow.pop %v709
    %v711 = vmul.f32 %v693, 1.442695
    %v712 = vpow.pop %v711
    %v713 = vmul.f32 %v694, 1.442695
    %v714 = vpow.pop %v713
    %v715 = vmul.f32 %v695, 1.442695
    %v716 = vpow.pop %v715
    %v717 = vmul.f32 %v696, 1.442695
    %v718 = vpow.pop %v717
    %v719 = vmul.f32 %v697, 1.442695
    %v720 = vpow.pop %v719
    %v721 = vmul.f32 %v698, 1.442695
    %v722 = vpow.pop %v721
    %v723 = vmul.f32 %v699, 1.442695
    %v724 = vpow.pop %v723
    %v725 = vmul.f32 %v700, 1.442695
    %v726 = vpow.pop %v725
    %v727 = vmul.f32 %v701, 1.442695
    %v728 = vpow.pop %v727
    %v729 = vmul.f32 %v702, 1.442695
    %v730 = vpow.pop %v729
    %v731 = vmul.f32 %v703, 1.442695
    %v732 = vpow.pop %v731
    %v733 = vmul.f32 %v704, 1.442695
    %v734 = vpow.pop %v733
    %v735 = vmul.f32 %v705, 1.442695
    %v736 = vpow.pop %v735
    %v737 = vmul.f32 %v706, 1.442695
    %v738 = vpow.pop %v737
    %v739 = vsel %vm228, %v708, 0.0
    %740 = vadd.xlane.f32.xlu0 %v739
    %v741 = vpop.xlane.xlu0 %740
    %v742 = vsel %vm228, %v710, 0.0
    %743 = vadd.xlane.f32.xlu0 %v742
    %v744 = vpop.xlane.xlu0 %743
    %v745 = vsel %vm228, %v712, 0.0
    %746 = vadd.xlane.f32.xlu0 %v745
    %v747 = vpop.xlane.xlu0 %746
    %v748 = vsel %vm228, %v714, 0.0
    %749 = vadd.xlane.f32.xlu0 %v748
    %v750 = vpop.xlane.xlu0 %749
    %v751 = vsel %vm228, %v716, 0.0
    %752 = vadd.xlane.f32.xlu0 %v751
    %v753 = vpop.xlane.xlu0 %752
    %v754 = vsel %vm228, %v718, 0.0
    %755 = vadd.xlane.f32.xlu0 %v754
    %v756 = vpop.xlane.xlu0 %755
    %v757 = vsel %vm228, %v720, 0.0
    %758 = vadd.xlane.f32.xlu0 %v757
    %v759 = vpop.xlane.xlu0 %758
    %v760 = vsel %vm228, %v722, 0.0
    %761 = vadd.xlane.f32.xlu0 %v760
    %v762 = vpop.xlane.xlu0 %761
    %v763 = vsel %vm228, %v724, 0.0
    %764 = vadd.xlane.f32.xlu0 %v763
    %v765 = vpop.xlane.xlu0 %764
    %v766 = vsel %vm228, %v726, 0.0
    %767 = vadd.xlane.f32.xlu0 %v766
    %v768 = vpop.xlane.xlu0 %767
    %v769 = vsel %vm228, %v728, 0.0
    %770 = vadd.xlane.f32.xlu0 %v769
    %v771 = vpop.xlane.xlu0 %770
    %v772 = vsel %vm228, %v730, 0.0
    %773 = vadd.xlane.f32.xlu0 %v772
    %v774 = vpop.xlane.xlu0 %773
    %v775 = vsel %vm228, %v732, 0.0
    %776 = vadd.xlane.f32.xlu0 %v775
    %v777 = vpop.xlane.xlu0 %776
    %v778 = vsel %vm228, %v734, 0.0
    %779 = vadd.xlane.f32.xlu0 %v778
    %v780 = vpop.xlane.xlu0 %779
    %v781 = vsel %vm228, %v736, 0.0
    %782 = vadd.xlane.f32.xlu0 %v781
    %v783 = vpop.xlane.xlu0 %782
    %v784 = vsel %vm228, %v738, 0.0
    %785 = vadd.xlane.f32.xlu0 %v784
    %v786 = vpop.xlane.xlu0 %785
    %v787 = vrcp.pop %v741
    %v788 = vrcp.pop %v744
    %v789 = vrcp.pop %v747
    %v790 = vrcp.pop %v750
    %v791 = vrcp.pop %v753
    %v792 = vrcp.pop %v756
    %v793 = vrcp.pop %v759
    %v794 = vrcp.pop %v762
    %v795 = vrcp.pop %v765
    %v796 = vrcp.pop %v768
    %v797 = vrcp.pop %v771
    %v798 = vrcp.pop %v774
    %v799 = vrcp.pop %v777
    %v800 = vrcp.pop %v780
    %v801 = vrcp.pop %v783
    %v802 = vrcp.pop %v786
    %v803 = vmul.f32 %v708, %v787
    %v804 = vmul.f32 %v710, %v788
    %v805 = vmul.f32 %v712, %v789
    %v806 = vmul.f32 %v714, %v790
    %v807 = vmul.f32 %v716, %v791
    %v808 = vmul.f32 %v718, %v792
    %v809 = vmul.f32 %v720, %v793
    %v810 = vmul.f32 %v722, %v794
    %v811 = vmul.f32 %v724, %v795
    %v812 = vmul.f32 %v726, %v796
    %v813 = vmul.f32 %v728, %v797
    %v814 = vmul.f32 %v730, %v798
    %v815 = vmul.f32 %v732, %v799
    %v816 = vmul.f32 %v734, %v800
    %v817 = vmul.f32 %v736, %v801
    %v818 = vmul.f32 %v738, %v802
    %819 = vrot.lane.b32.xlu0 %v187, 112
    %v820 = vpop.permute.xlu0 %819
    %v823 = vsel %vm228, %v803, 0
    %825 = vmatpush.msra.mxu0 0.0
    %826 = vmatpush.msra.mxu0 0.0
    %827 = vmatpush.msra.mxu0 0.0
    %828 = vmatpush.msra.mxu0 0.0
    %829 = vmatpush.msra.mxu0 0.0
    %830 = vmatpush.msra.mxu0 0.0
    %831 = vmatpush.msra.mxu0 0.0
    %832 = vmatpush.msra.mxu0 0.0
    %833 = vmatpush.msra.mxu0 0.0
    %834 = vmatpush.msra.mxu0 0.0
    %835 = vmatpush.msra.mxu0 0.0
    %836 = vmatpush.msra.mxu0 0.0
    %837 = vmatpush.msra.mxu0 0.0
    %838 = vmatpush.msra.mxu0 0.0
    %839 = vmatpush.msra.mxu0 0.0
    %840 = vmatpush.msra.mxu0 %v820
    %841 = vmatmul.f32.gmra.mxu0 %v823
    %v842 = vpop.f32.mrf.mxu0
    %v843 = vadd.f32 0.0, %v842
    %844 = vdwg.mxu0
    %845 = vrot.lane.b32.xlu0 %v190, 112
    %v846 = vpop.permute.xlu0 %845
    %v849 = vsel %vm228, %v804, 0
    %851 = vmatpush.msra.mxu0 0.0
    %852 = vmatpush.msra.mxu0 0.0
    %853 = vmatpush.msra.mxu0 0.0
    %854 = vmatpush.msra.mxu0 0.0
    %855 = vmatpush.msra.mxu0 0.0
    %856 = vmatpush.msra.mxu0 0.0
    %857 = vmatpush.msra.mxu0 0.0
    %858 = vmatpush.msra.mxu0 0.0
    %859 = vmatpush.msra.mxu0 0.0
    %860 = vmatpush.msra.mxu0 0.0
    %861 = vmatpush.msra.mxu0 0.0
    %862 = vmatpush.msra.mxu0 0.0
    %863 = vmatpush.msra.mxu0 0.0
    %864 = vmatpush.msra.mxu0 0.0
    %865 = vmatpush.msra.mxu0 0.0
    %866 = vmatpush.msra.mxu0 %v846
    %867 = vmatmul.f32.gmra.mxu0 %v849
    %v868 = vpop.f32.mrf.mxu0
    %v869 = vadd.f32 0.0, %v868
    %870 = vdwg.mxu0
    %871 = vrot.lane.b32.xlu0 %v193, 112
    %v872 = vpop.permute.xlu0 %871
    %v875 = vsel %vm228, %v805, 0
    %877 = vmatpush.msra.mxu0 0.0
    %878 = vmatpush.msra.mxu0 0.0
    %879 = vmatpush.msra.mxu0 0.0
    %880 = vmatpush.msra.mxu0 0.0
    %881 = vmatpush.msra.mxu0 0.0
    %882 = vmatpush.msra.mxu0 0.0
    %883 = vmatpush.msra.mxu0 0.0
    %884 = vmatpush.msra.mxu0 0.0
    %885 = vmatpush.msra.mxu0 0.0
    %886 = vmatpush.msra.mxu0 0.0
    %887 = vmatpush.msra.mxu0 0.0
    %888 = vmatpush.msra.mxu0 0.0
    %889 = vmatpush.msra.mxu0 0.0
    %890 = vmatpush.msra.mxu0 0.0
    %891 = vmatpush.msra.mxu0 0.0
    %892 = vmatpush.msra.mxu0 %v872
    %893 = vmatmul.f32.gmra.mxu0 %v875
    %v894 = vpop.f32.mrf.mxu0
    %v895 = vadd.f32 0.0, %v894
    %896 = vdwg.mxu0
    %897 = vrot.lane.b32.xlu0 %v196, 112
    %v898 = vpop.permute.xlu0 %897
    %v901 = vsel %vm228, %v806, 0
    %903 = vmatpush.msra.mxu0 0.0
    %904 = vmatpush.msra.mxu0 0.0
    %905 = vmatpush.msra.mxu0 0.0
    %906 = vmatpush.msra.mxu0 0.0
    %907 = vmatpush.msra.mxu0 0.0
    %908 = vmatpush.msra.mxu0 0.0
    %909 = vmatpush.msra.mxu0 0.0
    %910 = vmatpush.msra.mxu0 0.0
    %911 = vmatpush.msra.mxu0 0.0
    %912 = vmatpush.msra.mxu0 0.0
    %913 = vmatpush.msra.mxu0 0.0
    %914 = vmatpush.msra.mxu0 0.0
    %915 = vmatpush.msra.mxu0 0.0
    %916 = vmatpush.msra.mxu0 0.0
    %917 = vmatpush.msra.mxu0 0.0
    %918 = vmatpush.msra.mxu0 %v898
    %919 = vmatmul.f32.gmra.mxu0 %v901
    %v920 = vpop.f32.mrf.mxu0
    %v921 = vadd.f32 0.0, %v920
    %922 = vdwg.mxu0
    %923 = vrot.lane.b32.xlu0 %v203, 112
    %v924 = vpop.permute.xlu0 %923
    %v927 = vsel %vm228, %v807, 0
    %929 = vmatpush.msra.mxu0 0.0
    %930 = vmatpush.msra.mxu0 0.0
    %931 = vmatpush.msra.mxu0 0.0
    %932 = vmatpush.msra.mxu0 0.0
    %933 = vmatpush.msra.mxu0 0.0
    %934 = vmatpush.msra.mxu0 0.0
    %935 = vmatpush.msra.mxu0 0.0
    %936 = vmatpush.msra.mxu0 0.0
    %937 = vmatpush.msra.mxu0 0.0
    %938 = vmatpush.msra.mxu0 0.0
    %939 = vmatpush.msra.mxu0 0.0
    %940 = vmatpush.msra.mxu0 0.0
    %941 = vmatpush.msra.mxu0 0.0
    %942 = vmatpush.msra.mxu0 0.0
    %943 = vmatpush.msra.mxu0 0.0
    %944 = vmatpush.msra.mxu0 %v924
    %945 = vmatmul.f32.gmra.mxu0 %v927
    %v946 = vpop.f32.mrf.mxu0
    %v947 = vadd.f32 0.0, %v946
    %948 = vdwg.mxu0
    %949 = vrot.lane.b32.xlu0 %v205, 112
    %v950 = vpop.permute.xlu0 %949
    %v953 = vsel %vm228, %v808, 0
    %955 = vmatpush.msra.mxu0 0.0
    %956 = vmatpush.msra.mxu0 0.0
    %957 = vmatpush.msra.mxu0 0.0
    %958 = vmatpush.msra.mxu0 0.0
    %959 = vmatpush.msra.mxu0 0.0
    %960 = vmatpush.msra.mxu0 0.0
    %961 = vmatpush.msra.mxu0 0.0
    %962 = vmatpush.msra.mxu0 0.0
    %963 = vmatpush.msra.mxu0 0.0
    %964 = vmatpush.msra.mxu0 0.0
    %965 = vmatpush.msra.mxu0 0.0
    %966 = vmatpush.msra.mxu0 0.0
    %967 = vmatpush.msra.mxu0 0.0
    %968 = vmatpush.msra.mxu0 0.0
    %969 = vmatpush.msra.mxu0 0.0
    %970 = vmatpush.msra.mxu0 %v950
    %971 = vmatmul.f32.gmra.mxu0 %v953
    %v972 = vpop.f32.mrf.mxu0
    %v973 = vadd.f32 0.0, %v972
    %974 = vdwg.mxu0
    %975 = vrot.lane.b32.xlu0 %v207, 112
    %v976 = vpop.permute.xlu0 %975
    %v979 = vsel %vm228, %v809, 0
    %981 = vmatpush.msra.mxu0 0.0
    %982 = vmatpush.msra.mxu0 0.0
    %983 = vmatpush.msra.mxu0 0.0
    %984 = vmatpush.msra.mxu0 0.0
    %985 = vmatpush.msra.mxu0 0.0
    %986 = vmatpush.msra.mxu0 0.0
    %987 = vmatpush.msra.mxu0 0.0
    %988 = vmatpush.msra.mxu0 0.0
    %989 = vmatpush.msra.mxu0 0.0
    %990 = vmatpush.msra.mxu0 0.0
    %991 = vmatpush.msra.mxu0 0.0
    %992 = vmatpush.msra.mxu0 0.0
    %993 = vmatpush.msra.mxu0 0.0
    %994 = vmatpush.msra.mxu0 0.0
    %995 = vmatpush.msra.mxu0 0.0
    %996 = vmatpush.msra.mxu0 %v976
    %997 = vmatmul.f32.gmra.mxu0 %v979
    %v998 = vpop.f32.mrf.mxu0
    %v999 = vadd.f32 0.0, %v998
    %1000 = vdwg.mxu0
    %1001 = vrot.lane.b32.xlu0 %v209, 112
    %v1002 = vpop.permute.xlu0 %1001
    %v1005 = vsel %vm228, %v810, 0
    %1007 = vmatpush.msra.mxu0 0.0
    %1008 = vmatpush.msra.mxu0 0.0
    %1009 = vmatpush.msra.mxu0 0.0
    %1010 = vmatpush.msra.mxu0 0.0
    %1011 = vmatpush.msra.mxu0 0.0
    %1012 = vmatpush.msra.mxu0 0.0
    %1013 = vmatpush.msra.mxu0 0.0
    %1014 = vmatpush.msra.mxu0 0.0
    %1015 = vmatpush.msra.mxu0 0.0
    %1016 = vmatpush.msra.mxu0 0.0
    %1017 = vmatpush.msra.mxu0 0.0
    %1018 = vmatpush.msra.mxu0 0.0
    %1019 = vmatpush.msra.mxu0 0.0
    %1020 = vmatpush.msra.mxu0 0.0
    %1021 = vmatpush.msra.mxu0 0.0
    %1022 = vmatpush.msra.mxu0 %v1002
    %1023 = vmatmul.f32.gmra.mxu0 %v1005
    %v1024 = vpop.f32.mrf.mxu0
    %v1025 = vadd.f32 0.0, %v1024
    %1026 = vdwg.mxu0
    %1027 = vrot.lane.b32.xlu0 %v211, 112
    %v1028 = vpop.permute.xlu0 %1027
    %v1031 = vsel %vm228, %v811, 0
    %1033 = vmatpush.msra.mxu0 0.0
    %1034 = vmatpush.msra.mxu0 0.0
    %1035 = vmatpush.msra.mxu0 0.0
    %1036 = vmatpush.msra.mxu0 0.0
    %1037 = vmatpush.msra.mxu0 0.0
    %1038 = vmatpush.msra.mxu0 0.0
    %1039 = vmatpush.msra.mxu0 0.0
    %1040 = vmatpush.msra.mxu0 0.0
    %1041 = vmatpush.msra.mxu0 0.0
    %1042 = vmatpush.msra.mxu0 0.0
    %1043 = vmatpush.msra.mxu0 0.0
    %1044 = vmatpush.msra.mxu0 0.0
    %1045 = vmatpush.msra.mxu0 0.0
    %1046 = vmatpush.msra.mxu0 0.0
    %1047 = vmatpush.msra.mxu0 0.0
    %1048 = vmatpush.msra.mxu0 %v1028
    %1049 = vmatmul.f32.gmra.mxu0 %v1031
    %v1050 = vpop.f32.mrf.mxu0
    %v1051 = vadd.f32 0.0, %v1050
    %1052 = vdwg.mxu0
    %1053 = vrot.lane.b32.xlu0 %v213, 112
    %v1054 = vpop.permute.xlu0 %1053
    %v1057 = vsel %vm228, %v812, 0
    %1059 = vmatpush.msra.mxu0 0.0
    %1060 = vmatpush.msra.mxu0 0.0
    %1061 = vmatpush.msra.mxu0 0.0
    %1062 = vmatpush.msra.mxu0 0.0
    %1063 = vmatpush.msra.mxu0 0.0
    %1064 = vmatpush.msra.mxu0 0.0
    %1065 = vmatpush.msra.mxu0 0.0
    %1066 = vmatpush.msra.mxu0 0.0
    %1067 = vmatpush.msra.mxu0 0.0
    %1068 = vmatpush.msra.mxu0 0.0
    %1069 = vmatpush.msra.mxu0 0.0
    %1070 = vmatpush.msra.mxu0 0.0
    %1071 = vmatpush.msra.mxu0 0.0
    %1072 = vmatpush.msra.mxu0 0.0
    %1073 = vmatpush.msra.mxu0 0.0
    %1074 = vmatpush.msra.mxu0 %v1054
    %1075 = vmatmul.f32.gmra.mxu0 %v1057
    %v1076 = vpop.f32.mrf.mxu0
    %v1077 = vadd.f32 0.0, %v1076
    %1078 = vdwg.mxu0
    %1079 = vrot.lane.b32.xlu0 %v215, 112
    %v1080 = vpop.permute.xlu0 %1079
    %v1083 = vsel %vm228, %v813, 0
    %1085 = vmatpush.msra.mxu0 0.0
    %1086 = vmatpush.msra.mxu0 0.0
    %1087 = vmatpush.msra.mxu0 0.0
    %1088 = vmatpush.msra.mxu0 0.0
    %1089 = vmatpush.msra.mxu0 0.0
    %1090 = vmatpush.msra.mxu0 0.0
    %1091 = vmatpush.msra.mxu0 0.0
    %1092 = vmatpush.msra.mxu0 0.0
    %1093 = vmatpush.msra.mxu0 0.0
    %1094 = vmatpush.msra.mxu0 0.0
    %1095 = vmatpush.msra.mxu0 0.0
    %1096 = vmatpush.msra.mxu0 0.0
    %1097 = vmatpush.msra.mxu0 0.0
    %1098 = vmatpush.msra.mxu0 0.0
    %1099 = vmatpush.msra.mxu0 0.0
    %1100 = vmatpush.msra.mxu0 %v1080
    %1101 = vmatmul.f32.gmra.mxu0 %v1083
    %v1102 = vpop.f32.mrf.mxu0
    %v1103 = vadd.f32 0.0, %v1102
    %1104 = vdwg.mxu0
    %1105 = vrot.lane.b32.xlu0 %v217, 112
    %v1106 = vpop.permute.xlu0 %1105
    %v1109 = vsel %vm228, %v814, 0
    %1111 = vmatpush.msra.mxu0 0.0
    %1112 = vmatpush.msra.mxu0 0.0
    %1113 = vmatpush.msra.mxu0 0.0
    %1114 = vmatpush.msra.mxu0 0.0
    %1115 = vmatpush.msra.mxu0 0.0
    %1116 = vmatpush.msra.mxu0 0.0
    %1117 = vmatpush.msra.mxu0 0.0
    %1118 = vmatpush.msra.mxu0 0.0
    %1119 = vmatpush.msra.mxu0 0.0
    %1120 = vmatpush.msra.mxu0 0.0
    %1121 = vmatpush.msra.mxu0 0.0
    %1122 = vmatpush.msra.mxu0 0.0
    %1123 = vmatpush.msra.mxu0 0.0
    %1124 = vmatpush.msra.mxu0 0.0
    %1125 = vmatpush.msra.mxu0 0.0
    %1126 = vmatpush.msra.mxu0 %v1106
    %1127 = vmatmul.f32.gmra.mxu0 %v1109
    %v1128 = vpop.f32.mrf.mxu0
    %v1129 = vadd.f32 0.0, %v1128
    %1130 = vdwg.mxu0
    %1131 = vrot.lane.b32.xlu0 %v219, 112
    %v1132 = vpop.permute.xlu0 %1131
    %v1135 = vsel %vm228, %v815, 0
    %1137 = vmatpush.msra.mxu0 0.0
    %1138 = vmatpush.msra.mxu0 0.0
    %1139 = vmatpush.msra.mxu0 0.0
    %1140 = vmatpush.msra.mxu0 0.0
    %1141 = vmatpush.msra.mxu0 0.0
    %1142 = vmatpush.msra.mxu0 0.0
    %1143 = vmatpush.msra.mxu0 0.0
    %1144 = vmatpush.msra.mxu0 0.0
    %1145 = vmatpush.msra.mxu0 0.0
    %1146 = vmatpush.msra.mxu0 0.0
    %1147 = vmatpush.msra.mxu0 0.0
    %1148 = vmatpush.msra.mxu0 0.0
    %1149 = vmatpush.msra.mxu0 0.0
    %1150 = vmatpush.msra.mxu0 0.0
    %1151 = vmatpush.msra.mxu0 0.0
    %1152 = vmatpush.msra.mxu0 %v1132
    %1153 = vmatmul.f32.gmra.mxu0 %v1135
    %v1154 = vpop.f32.mrf.mxu0
    %v1155 = vadd.f32 0.0, %v1154
    %1156 = vdwg.mxu0
    %1157 = vrot.lane.b32.xlu0 %v221, 112
    %v1158 = vpop.permute.xlu0 %1157
    %v1161 = vsel %vm228, %v816, 0
    %1163 = vmatpush.msra.mxu0 0.0
    %1164 = vmatpush.msra.mxu0 0.0
    %1165 = vmatpush.msra.mxu0 0.0
    %1166 = vmatpush.msra.mxu0 0.0
    %1167 = vmatpush.msra.mxu0 0.0
    %1168 = vmatpush.msra.mxu0 0.0
    %1169 = vmatpush.msra.mxu0 0.0
    %1170 = vmatpush.msra.mxu0 0.0
    %1171 = vmatpush.msra.mxu0 0.0
    %1172 = vmatpush.msra.mxu0 0.0
    %1173 = vmatpush.msra.mxu0 0.0
    %1174 = vmatpush.msra.mxu0 0.0
    %1175 = vmatpush.msra.mxu0 0.0
    %1176 = vmatpush.msra.mxu0 0.0
    %1177 = vmatpush.msra.mxu0 0.0
    %1178 = vmatpush.msra.mxu0 %v1158
    %1179 = vmatmul.f32.gmra.mxu0 %v1161
    %v1180 = vpop.f32.mrf.mxu0
    %v1181 = vadd.f32 0.0, %v1180
    %1182 = vdwg.mxu0
    %1183 = vrot.lane.b32.xlu0 %v223, 112
    %v1184 = vpop.permute.xlu0 %1183
    %v1187 = vsel %vm228, %v817, 0
    %1189 = vmatpush.msra.mxu0 0.0
    %1190 = vmatpush.msra.mxu0 0.0
    %1191 = vmatpush.msra.mxu0 0.0
    %1192 = vmatpush.msra.mxu0 0.0
    %1193 = vmatpush.msra.mxu0 0.0
    %1194 = vmatpush.msra.mxu0 0.0
    %1195 = vmatpush.msra.mxu0 0.0
    %1196 = vmatpush.msra.mxu0 0.0
    %1197 = vmatpush.msra.mxu0 0.0
    %1198 = vmatpush.msra.mxu0 0.0
    %1199 = vmatpush.msra.mxu0 0.0
    %1200 = vmatpush.msra.mxu0 0.0
    %1201 = vmatpush.msra.mxu0 0.0
    %1202 = vmatpush.msra.mxu0 0.0
    %1203 = vmatpush.msra.mxu0 0.0
    %1204 = vmatpush.msra.mxu0 %v1184
    %1205 = vmatmul.f32.gmra.mxu0 %v1187
    %v1206 = vpop.f32.mrf.mxu0
    %v1207 = vadd.f32 0.0, %v1206
    %1208 = vdwg.mxu0
    %1209 = vrot.lane.b32.xlu0 %v225, 112
    %v1210 = vpop.permute.xlu0 %1209
    %v1213 = vsel %vm228, %v818, 0
    %1215 = vmatpush.msra.mxu0 0.0
    %1216 = vmatpush.msra.mxu0 0.0
    %1217 = vmatpush.msra.mxu0 0.0
    %1218 = vmatpush.msra.mxu0 0.0
    %1219 = vmatpush.msra.mxu0 0.0
    %1220 = vmatpush.msra.mxu0 0.0
    %1221 = vmatpush.msra.mxu0 0.0
    %1222 = vmatpush.msra.mxu0 0.0
    %1223 = vmatpush.msra.mxu0 0.0
    %1224 = vmatpush.msra.mxu0 0.0
    %1225 = vmatpush.msra.mxu0 0.0
    %1226 = vmatpush.msra.mxu0 0.0
    %1227 = vmatpush.msra.mxu0 0.0
    %1228 = vmatpush.msra.mxu0 0.0
    %1229 = vmatpush.msra.mxu0 0.0
    %1230 = vmatpush.msra.mxu0 %v1210
    %1231 = vmatmul.f32.gmra.mxu0 %v1213
    %v1232 = vpop.f32.mrf.mxu0
    %v1233 = vadd.f32 0.0, %v1232
    %1234 = vdwg.mxu0
    %v1235 = vld [vmem:[%s3] sm:$0xff]
    %v1236 = vld [vmem:[%s3 + $0x8] sm:$0xff]
    %v1237 = vld [vmem:[%s3 + $0x10] sm:$0xff]
    %v1238 = vld [vmem:[%s3 + $0x18] sm:$0xff]
    %v1240 = vsel %vm228, %v843, 0
    %v1243 = vsel %vm228, %v869, 0
    %v1246 = vsel %vm228, %v895, 0
    %v1249 = vsel %vm228, %v921, 0
    %1251 = vmatpush.msra.mxu0 0.0
    %1252 = vmatpush.msra.mxu0 0.0
    %1253 = vmatpush.msra.mxu0 0.0
    %1254 = vmatpush.msra.mxu0 0.0
    %1255 = vmatpush.msra.mxu0 0.0
    %1256 = vmatpush.msra.mxu0 0.0
    %1257 = vmatpush.msra.mxu0 0.0
    %1258 = vmatpush.msra.mxu0 0.0
    %1259 = vmatpush.msra.mxu0 0.0
    %1260 = vmatpush.msra.mxu0 0.0
    %1261 = vmatpush.msra.mxu0 0.0
    %1262 = vmatpush.msra.mxu0 0.0
    %1263 = vmatpush.msra.mxu0 0.0
    %1264 = vmatpush.msra.mxu0 0.0
    %1265 = vmatpush.msra.mxu0 0.0
    %1266 = vmatpush.msra.mxu0 %v1235
    %1267 = vmatmul.f32.gmra.mxu0 %v1240
    %v1268 = vpop.f32.mrf.mxu0
    %v1269 = vadd.f32 0.0, %v1268
    %1270 = vmatmul.f32.gmra.mxu0 %v1243
    %v1271 = vpop.f32.mrf.mxu0
    %v1272 = vadd.f32 0.0, %v1271
    %1273 = vmatmul.f32.gmra.mxu0 %v1246
    %v1274 = vpop.f32.mrf.mxu0
    %v1275 = vadd.f32 0.0, %v1274
    %1276 = vmatmul.f32.gmra.mxu0 %v1249
    %v1277 = vpop.f32.mrf.mxu0
    %v1278 = vadd.f32 0.0, %v1277
    %1279 = vdwg.mxu0
    %v1281 = vsel %vm228, %v947, 0
    %v1284 = vsel %vm228, %v973, 0
    %v1287 = vsel %vm228, %v999, 0
    %v1290 = vsel %vm228, %v1025, 0
    %1292 = vmatpush.msra.mxu0 0.0
    %1293 = vmatpush.msra.mxu0 0.0
    %1294 = vmatpush.msra.mxu0 0.0
    %1295 = vmatpush.msra.mxu0 0.0
    %1296 = vmatpush.msra.mxu0 0.0
    %1297 = vmatpush.msra.mxu0 0.0
    %1298 = vmatpush.msra.mxu0 0.0
    %1299 = vmatpush.msra.mxu0 0.0
    %1300 = vmatpush.msra.mxu0 0.0
    %1301 = vmatpush.msra.mxu0 0.0
    %1302 = vmatpush.msra.mxu0 0.0
    %1303 = vmatpush.msra.mxu0 0.0
    %1304 = vmatpush.msra.mxu0 0.0
    %1305 = vmatpush.msra.mxu0 0.0
    %1306 = vmatpush.msra.mxu0 0.0
    %1307 = vmatpush.msra.mxu0 %v1236
    %1308 = vmatmul.f32.gmra.mxu0 %v1281
    %v1309 = vpop.f32.mrf.mxu0
    %v1310 = vadd.f32 0.0, %v1309
    %1311 = vmatmul.f32.gmra.mxu0 %v1284
    %v1312 = vpop.f32.mrf.mxu0
    %v1313 = vadd.f32 0.0, %v1312
    %1314 = vmatmul.f32.gmra.mxu0 %v1287
    %v1315 = vpop.f32.mrf.mxu0
    %v1316 = vadd.f32 0.0, %v1315
    %1317 = vmatmul.f32.gmra.mxu0 %v1290
    %v1318 = vpop.f32.mrf.mxu0
    %v1319 = vadd.f32 0.0, %v1318
    %1320 = vdwg.mxu0
    %v1322 = vsel %vm228, %v1051, 0
    %v1325 = vsel %vm228, %v1077, 0
    %v1328 = vsel %vm228, %v1103, 0
    %v1331 = vsel %vm228, %v1129, 0
    %1333 = vmatpush.msra.mxu0 0.0
    %1334 = vmatpush.msra.mxu0 0.0
    %1335 = vmatpush.msra.mxu0 0.0
    %1336 = vmatpush.msra.mxu0 0.0
    %1337 = vmatpush.msra.mxu0 0.0
    %1338 = vmatpush.msra.mxu0 0.0
    %1339 = vmatpush.msra.mxu0 0.0
    %1340 = vmatpush.msra.mxu0 0.0
    %1341 = vmatpush.msra.mxu0 0.0
    %1342 = vmatpush.msra.mxu0 0.0
    %1343 = vmatpush.msra.mxu0 0.0
    %1344 = vmatpush.msra.mxu0 0.0
    %1345 = vmatpush.msra.mxu0 0.0
    %1346 = vmatpush.msra.mxu0 0.0
    %1347 = vmatpush.msra.mxu0 0.0
    %1348 = vmatpush.msra.mxu0 %v1237
    %1349 = vmatmul.f32.gmra.mxu0 %v1322
    %v1350 = vpop.f32.mrf.mxu0
    %v1351 = vadd.f32 0.0, %v1350
    %1352 = vmatmul.f32.gmra.mxu0 %v1325
    %v1353 = vpop.f32.mrf.mxu0
    %v1354 = vadd.f32 0.0, %v1353
    %1355 = vmatmul.f32.gmra.mxu0 %v1328
    %v1356 = vpop.f32.mrf.mxu0
    %v1357 = vadd.f32 0.0, %v1356
    %1358 = vmatmul.f32.gmra.mxu0 %v1331
    %v1359 = vpop.f32.mrf.mxu0
    %v1360 = vadd.f32 0.0, %v1359
    %1361 = vdwg.mxu0
    %v1363 = vsel %vm228, %v1155, 0
    %v1366 = vsel %vm228, %v1181, 0
    %v1369 = vsel %vm228, %v1207, 0
    %v1372 = vsel %vm228, %v1233, 0
    %1374 = vmatpush.msra.mxu0 0.0
    %1375 = vmatpush.msra.mxu0 0.0
    %1376 = vmatpush.msra.mxu0 0.0
    %1377 = vmatpush.msra.mxu0 0.0
    %1378 = vmatpush.msra.mxu0 0.0
    %1379 = vmatpush.msra.mxu0 0.0
    %1380 = vmatpush.msra.mxu0 0.0
    %1381 = vmatpush.msra.mxu0 0.0
    %1382 = vmatpush.msra.mxu0 0.0
    %1383 = vmatpush.msra.mxu0 0.0
    %1384 = vmatpush.msra.mxu0 0.0
    %1385 = vmatpush.msra.mxu0 0.0
    %1386 = vmatpush.msra.mxu0 0.0
    %1387 = vmatpush.msra.mxu0 0.0
    %1388 = vmatpush.msra.mxu0 0.0
    %1389 = vmatpush.msra.mxu0 %v1238
    %1390 = vmatmul.f32.gmra.mxu0 %v1363
    %v1391 = vpop.f32.mrf.mxu0
    %v1392 = vadd.f32 0.0, %v1391
    %1393 = vmatmul.f32.gmra.mxu0 %v1366
    %v1394 = vpop.f32.mrf.mxu0
    %v1395 = vadd.f32 0.0, %v1394
    %1396 = vmatmul.f32.gmra.mxu0 %v1369
    %v1397 = vpop.f32.mrf.mxu0
    %v1398 = vadd.f32 0.0, %v1397
    %1399 = vmatmul.f32.gmra.mxu0 %v1372
    %v1400 = vpop.f32.mrf.mxu0
    %v1401 = vadd.f32 0.0, %v1400
    %1402 = vdwg.mxu0
    %v1403 = vsel %vm46, %v1269, 0.0
    %v1404 = vsel %vm46, %v1310, 0.0
    %v1405 = vadd.f32 %v1403, %v1404
    %v1406 = vsel %vm46, %v1351, 0.0
    %v1407 = vadd.f32 %v1405, %v1406
    %v1408 = vsel %vm46, %v1392, 0.0
    %v1409 = vadd.f32 %v1407, %v1408
    %v1410 = vsel %vm46, %v1272, 0.0
    %v1411 = vsel %vm46, %v1313, 0.0
    %v1412 = vadd.f32 %v1410, %v1411
    %v1413 = vsel %vm46, %v1354, 0.0
    %v1414 = vadd.f32 %v1412, %v1413
    %v1415 = vsel %vm46, %v1395, 0.0
    %v1416 = vadd.f32 %v1414, %v1415
    %v1417 = vsel %vm46, %v1275, 0.0
    %v1418 = vsel %vm46, %v1316, 0.0
    %v1419 = vadd.f32 %v1417, %v1418
    %v1420 = vsel %vm46, %v1357, 0.0
    %v1421 = vadd.f32 %v1419, %v1420
    %v1422 = vsel %vm46, %v1398, 0.0
    %v1423 = vadd.f32 %v1421, %v1422
    %v1424 = vsel %vm46, %v1278, 0.0
    %v1425 = vsel %vm46, %v1319, 0.0
    %v1426 = vadd.f32 %v1424, %v1425
    %v1427 = vsel %vm46, %v1360, 0.0
    %v1428 = vadd.f32 %v1426, %v1427
    %v1429 = vsel %vm46, %v1401, 0.0
    %v1430 = vadd.f32 %v1428, %v1429
    %v1431 = vperm.slane %v45, 5
    %v1432 = vadd.f32 %v1409, %v1431
    %v1433 = vadd.f32 %v1416, %v1431
    %v1434 = vadd.f32 %v1423, %v1431
    %v1435 = vadd.f32 %v1430, %v1431
    %v1436 = vadd.f32 %v35, %v1432
    %v1437 = vadd.f32 %v36, %v1433
    %v1438 = vadd.f32 %v37, %v1434
    %v1439 = vadd.f32 %v38, %v1435
    %v1440 = vsel %vm46, %v1436, 0.0
    %1441 = vadd.xlane.f32.xlu0 %v1440
    %v1442 = vpop.xlane.xlu0 %1441
    %v1443 = vsel %vm46, %v1437, 0.0
    %1444 = vadd.xlane.f32.xlu0 %v1443
    %v1445 = vpop.xlane.xlu0 %1444
    %v1446 = vsel %vm46, %v1438, 0.0
    %1447 = vadd.xlane.f32.xlu0 %v1446
    %v1448 = vpop.xlane.xlu0 %1447
    %v1449 = vsel %vm46, %v1439, 0.0
    %1450 = vadd.xlane.f32.xlu0 %v1449
    %v1451 = vpop.xlane.xlu0 %1450
    %v1452 = vmul.f32 %v1442, %v65
    %v1453 = vmul.f32 %v1445, %v65
    %v1454 = vmul.f32 %v1448, %v65
    %v1455 = vmul.f32 %v1451, %v65
    %v1456 = vsub.f32 %v1436, %v1452
    %v1457 = vsub.f32 %v1437, %v1453
    %v1458 = vsub.f32 %v1438, %v1454
    %v1459 = vsub.f32 %v1439, %v1455
    %v1460 = vmul.f32 %v1456, %v1456
    %v1461 = vmul.f32 %v1457, %v1457
    %v1462 = vmul.f32 %v1458, %v1458
    %v1463 = vmul.f32 %v1459, %v1459
    %v1464 = vsel %vm46, %v1460, 0.0
    %1465 = vadd.xlane.f32.xlu0 %v1464
    %v1466 = vpop.xlane.xlu0 %1465
    %v1467 = vsel %vm46, %v1461, 0.0
    %1468 = vadd.xlane.f32.xlu0 %v1467
    %v1469 = vpop.xlane.xlu0 %1468
    %v1470 = vsel %vm46, %v1462, 0.0
    %1471 = vadd.xlane.f32.xlu0 %v1470
    %v1472 = vpop.xlane.xlu0 %1471
    %v1473 = vsel %vm46, %v1463, 0.0
    %1474 = vadd.xlane.f32.xlu0 %v1473
    %v1475 = vpop.xlane.xlu0 %1474
    %v1476 = vmul.f32 %v1466, %v65
    %v1477 = vmul.f32 %v1469, %v65
    %v1478 = vmul.f32 %v1472, %v65
    %v1479 = vmul.f32 %v1475, %v65
    %v1480 = vadd.f32 %v1476, 1e-05
    %v1481 = vadd.f32 %v1477, 1e-05
    %v1482 = vadd.f32 %v1478, 1e-05
    %v1483 = vadd.f32 %v1479, 1e-05
    %v1484 = vrsqrt.pop %v1480
    %v1485 = vmul.f32 %v1484, %v1480
    %v1486 = vmul.f32 %v1485, %v1484
    %v1487 = vmul.f32 0.5, %v1486
    %v1488 = vsub.f32 1.5, %v1487
    %v1489 = vmul.f32 %v1484, %v1488
    %vm1490 = vweird.f32 %v1480
    %vm1491 = vweird.f32 %v1484
    %vm1492 = vmor %vm1490, %vm1491
    %v1493 = vsel %vm1492, %v1484, %v1489
    %v1494 = vrsqrt.pop %v1481
    %v1495 = vmul.f32 %v1494, %v1481
    %v1496 = vmul.f32 %v1495, %v1494
    %v1497 = vmul.f32 0.5, %v1496
    %v1498 = vsub.f32 1.5, %v1497
    %v1499 = vmul.f32 %v1494, %v1498
    %vm1500 = vweird.f32 %v1481
    %vm1501 = vweird.f32 %v1494
    %vm1502 = vmor %vm1500, %vm1501
    %v1503 = vsel %vm1502, %v1494, %v1499
    %v1504 = vrsqrt.pop %v1482
    %v1505 = vmul.f32 %v1504, %v1482
    %v1506 = vmul.f32 %v1505, %v1504
    %v1507 = vmul.f32 0.5, %v1506
    %v1508 = vsub.f32 1.5, %v1507
    %v1509 = vmul.f32 %v1504, %v1508
    %vm1510 = vweird.f32 %v1482
    %vm1511 = vweird.f32 %v1504
    %vm1512 = vmor %vm1510, %vm1511
    %v1513 = vsel %vm1512, %v1504, %v1509
    %v1514 = vrsqrt.pop %v1483
    %v1515 = vmul.f32 %v1514, %v1483
    %v1516 = vmul.f32 %v1515, %v1514
    %v1517 = vmul.f32 0.5, %v1516
    %v1518 = vsub.f32 1.5, %v1517
    %v1519 = vmul.f32 %v1514, %v1518
    %vm1520 = vweird.f32 %v1483
    %vm1521 = vweird.f32 %v1514
    %vm1522 = vmor %vm1520, %vm1521
    %v1523 = vsel %vm1522, %v1514, %v1519
    %v1524 = vmul.f32 %v1456, %v1493
    %v1525 = vmul.f32 %v1457, %v1503
    %v1526 = vmul.f32 %v1458, %v1513
    %v1527 = vmul.f32 %v1459, %v1523
    %v1528 = vperm.slane %v45, 2
    %v1529 = vmul.f32 %v1524, %v1528
    %v1530 = vmul.f32 %v1525, %v1528
    %v1531 = vmul.f32 %v1526, %v1528
    %v1532 = vmul.f32 %v1527, %v1528
    %v1533 = vperm.slane %v45, 3
    %v1534 = vadd.f32 %v1529, %v1533
    %v1535 = vadd.f32 %v1530, %v1533
    %v1536 = vadd.f32 %v1531, %v1533
    %v1537 = vadd.f32 %v1532, %v1533
    %v1538 = vld [vmem:[%s4] sm:$0xff]
    %v1539 = vld [vmem:[%s4 + $0x8] sm:$0xff]
    %v1540 = vld [vmem:[%s4 + $0x10] sm:$0xff]
    %v1541 = vld [vmem:[%s4 + $0x18] sm:$0xff]
    %v1542 = vperm.slane %v45, 6
    %v1544 = vsel %vm46, %v1534, 0
    %v1547 = vsel %vm46, %v1535, 0
    %v1550 = vsel %vm46, %v1536, 0
    %v1553 = vsel %vm46, %v1537, 0
    %1555 = vmatpush.msra.mxu0 0.0
    %1556 = vmatpush.msra.mxu0 0.0
    %1557 = vmatpush.msra.mxu0 0.0
    %1558 = vmatpush.msra.mxu0 0.0
    %1559 = vmatpush.msra.mxu0 0.0
    %1560 = vmatpush.msra.mxu0 0.0
    %1561 = vmatpush.msra.mxu0 0.0
    %1562 = vmatpush.msra.mxu0 0.0
    %1563 = vmatpush.msra.mxu0 0.0
    %1564 = vmatpush.msra.mxu0 0.0
    %1565 = vmatpush.msra.mxu0 0.0
    %1566 = vmatpush.msra.mxu0 0.0
    %1567 = vmatpush.msra.mxu0 %v1541
    %1568 = vmatpush.msra.mxu0 %v1540
    %1569 = vmatpush.msra.mxu0 %v1539
    %1570 = vmatpush.msra.mxu0 %v1538
    %1571 = vmatmul.f32.gmra.mxu0 %v1544
    %v1572 = vpop.f32.mrf.mxu0
    %v1573 = vadd.f32 %v1542, %v1572
    %1574 = vmatmul.f32.gmra.mxu0 %v1547
    %v1575 = vpop.f32.mrf.mxu0
    %v1576 = vadd.f32 %v1542, %v1575
    %1577 = vmatmul.f32.gmra.mxu0 %v1550
    %v1578 = vpop.f32.mrf.mxu0
    %v1579 = vadd.f32 %v1542, %v1578
    %1580 = vmatmul.f32.gmra.mxu0 %v1553
    %v1581 = vpop.f32.mrf.mxu0
    %v1582 = vadd.f32 %v1542, %v1581
    %1583 = vdwg.mxu0
    %v1584 = vmul.f32 %v1573, 1.702
    %v1585 = vmul.f32 %v1576, 1.702
    %v1586 = vmul.f32 %v1579, 1.702
    %v1587 = vmul.f32 %v1582, 1.702
    %v1588 = vxor.u32 %v1584, 2147483648
    %v1589 = vxor.u32 %v1585, 2147483648
    %v1590 = vxor.u32 %v1586, 2147483648
    %v1591 = vxor.u32 %v1587, 2147483648
    %v1592 = vmul.f32 %v1588, 1.442695
    %v1593 = vpow.pop %v1592
    %v1594 = vmul.f32 %v1589, 1.442695
    %v1595 = vpow.pop %v1594
    %v1596 = vmul.f32 %v1590, 1.442695
    %v1597 = vpow.pop %v1596
    %v1598 = vmul.f32 %v1591, 1.442695
    %v1599 = vpow.pop %v1598
    %v1600 = vadd.f32 %v1593, 1.0
    %v1601 = vadd.f32 %v1595, 1.0
    %v1602 = vadd.f32 %v1597, 1.0
    %v1603 = vadd.f32 %v1599, 1.0
    %v1604 = vrcp.pop %v1600
    %v1605 = vmul.f32 %v1600, %v1604
    %v1606 = vsub.f32 1.0, %v1605
    %v1607 = vmul.f32 %v1604, %v1606
    %v1608 = vadd.f32 %v1604, %v1607
    %vm1609 = vweird.f32 %v1600
    %vm1610 = vweird.f32 %v1604
    %vm1611 = vmor %vm1609, %vm1610
    %v1612 = vsel %vm1611, %v1604, %v1608
    %v1613 = vand.u32 2147483647, %v1600
    %vm1614 = vcmp.eq.f32.partialorder %v1613, 8.507059e+37
    %v1615 = vand.u32 %v1600, 2147483648
    %v1616 = vor.u32 1.1754944e-38, %v1615
    %v1617 = vsel %vm1614, %v1616, %v1612
    %v1618 = vmul.f32 1.0, %v1617
    %v1619 = vrcp.pop %v1601
    %v1620 = vmul.f32 %v1601, %v1619
    %v1621 = vsub.f32 1.0, %v1620
    %v1622 = vmul.f32 %v1619, %v1621
    %v1623 = vadd.f32 %v1619, %v1622
    %vm1624 = vweird.f32 %v1601
    %vm1625 = vweird.f32 %v1619
    %vm1626 = vmor %vm1624, %vm1625
    %v1627 = vsel %vm1626, %v1619, %v1623
    %v1628 = vand.u32 2147483647, %v1601
    %vm1629 = vcmp.eq.f32.partialorder %v1628, 8.507059e+37
    %v1630 = vand.u32 %v1601, 2147483648
    %v1631 = vor.u32 1.1754944e-38, %v1630
    %v1632 = vsel %vm1629, %v1631, %v1627
    %v1633 = vmul.f32 1.0, %v1632
    %v1634 = vrcp.pop %v1602
    %v1635 = vmul.f32 %v1602, %v1634
    %v1636 = vsub.f32 1.0, %v1635
    %v1637 = vmul.f32 %v1634, %v1636
    %v1638 = vadd.f32 %v1634, %v1637
    %vm1639 = vweird.f32 %v1602
    %vm1640 = vweird.f32 %v1634
    %vm1641 = vmor %vm1639, %vm1640
    %v1642 = vsel %vm1641, %v1634, %v1638
    %v1643 = vand.u32 2147483647, %v1602
    %vm1644 = vcmp.eq.f32.partialorder %v1643, 8.507059e+37
    %v1645 = vand.u32 %v1602, 2147483648
    %v1646 = vor.u32 1.1754944e-38, %v1645
    %v1647 = vsel %vm1644, %v1646, %v1642
    %v1648 = vmul.f32 1.0, %v1647
    %v1649 = vrcp.pop %v1603
    %v1650 = vmul.f32 %v1603, %v1649
    %v1651 = vsub.f32 1.0, %v1650
    %v1652 = vmul.f32 %v1649, %v1651
    %v1653 = vadd.f32 %v1649, %v1652
    %vm1654 = vweird.f32 %v1603
    %vm1655 = vweird.f32 %v1649
    %vm1656 = vmor %vm1654, %vm1655
    %v1657 = vsel %vm1656, %v1649, %v1653
    %v1658 = vand.u32 2147483647, %v1603
    %vm1659 = vcmp.eq.f32.partialorder %v1658, 8.507059e+37
    %v1660 = vand.u32 %v1603, 2147483648
    %v1661 = vor.u32 1.1754944e-38, %v1660
    %v1662 = vsel %vm1659, %v1661, %v1657
    %v1663 = vmul.f32 1.0, %v1662
    %v1664 = vmul.f32 %v1573, %v1618
    %v1665 = vmul.f32 %v1576, %v1633
    %v1666 = vmul.f32 %v1579, %v1648
    %v1667 = vmul.f32 %v1582, %v1663
    %v1668 = vld [vmem:[%s5] sm:$0xff]
    %v1669 = vld [vmem:[%s5 + $0x8] sm:$0xff]
    %v1670 = vld [vmem:[%s5 + $0x10] sm:$0xff]
    %v1671 = vld [vmem:[%s5 + $0x18] sm:$0xff]
    %v1672 = vld [vmem:[%s5 + $0x20] sm:$0xff]
    %v1673 = vld [vmem:[%s5 + $0x28] sm:$0xff]
    %v1674 = vld [vmem:[%s5 + $0x30] sm:$0xff]
    %v1675 = vld [vmem:[%s5 + $0x38] sm:$0xff]
    %v1676 = vld [vmem:[%s5 + $0x40] sm:$0xff]
    %v1677 = vld [vmem:[%s5 + $0x48] sm:$0xff]
    %v1678 = vld [vmem:[%s5 + $0x50] sm:$0xff]
    %v1679 = vld [vmem:[%s5 + $0x58] sm:$0xff]
    %v1680 = vld [vmem:[%s5 + $0x60] sm:$0xff]
    %v1681 = vld [vmem:[%s5 + $0x68] sm:$0xff]
    %v1682 = vld [vmem:[%s5 + $0x70] sm:$0xff]
    %v1683 = vld [vmem:[%s5 + $0x78] sm:$0xff]
    %1684 = vmatpush.msra.mxu0 %v1683
    %1685 = vmatpush.msra.mxu0 %v1682
    %1686 = vmatpush.msra.mxu0 %v1681
    %1687 = vmatpush.msra.mxu0 %v1680
    %1688 = vmatpush.msra.mxu0 %v1679
    %1689 = vmatpush.msra.mxu0 %v1678
    %1690 = vmatpush.msra.mxu0 %v1677
    %1691 = vmatpush.msra.mxu0 %v1676
    %1692 = vmatpush.msra.mxu0 %v1675
    %1693 = vmatpush.msra.mxu0 %v1674
    %1694 = vmatpush.msra.mxu0 %v1673
    %1695 = vmatpush.msra.mxu0 %v1672
    %1696 = vmatpush.msra.mxu0 %v1671
    %1697 = vmatpush.msra.mxu0 %v1670
    %1698 = vmatpush.msra.mxu0 %v1669
    %1699 = vmatpush.msra.mxu0 %v1668
    %1700 = vmatmul.f32.gmra.mxu0 %v1664
    %v1701 = vpop.f32.mrf.mxu0
    %v1702 = vadd.f32 0.0, %v1701
    %1703 = vmatmul.f32.gmra.mxu0 %v1665
    %v1704 = vpop.f32.mrf.mxu0
    %v1705 = vadd.f32 0.0, %v1704
    %1706 = vmatmul.f32.gmra.mxu0 %v1666
    %v1707 = vpop.f32.mrf.mxu0
    %v1708 = vadd.f32 0.0, %v1707
    %1709 = vmatmul.f32.gmra.mxu0 %v1667
    %v1710 = vpop.f32.mrf.mxu0
    %v1711 = vadd.f32 0.0, %v1710
    %1712 = vdwg.mxu0
    %v1713 = vadd.f32 %v1436, %v1702
    %v1714 = vadd.f32 %v1437, %v1705
    %v1715 = vadd.f32 %v1438, %v1708
    %v1716 = vadd.f32 %v1439, %v1711
    %v1717 = vperm.slane %v45, 7
    %v1718 = vadd.f32 %v1713, %v1717
    %v1719 = vadd.f32 %v1714, %v1717
    %v1720 = vadd.f32 %v1715, %v1717
    %v1721 = vadd.f32 %v1716, %v1717
    %s1722 = scalar_lea.vmem %s1, 8
    %v1723 = vld [vmem:[%s1722] sm:$0xff]
    %v1724 = vsel %vm46, %v1718, 0.0
    %1725 = vadd.xlane.f32.xlu0 %v1724
    %v1726 = vpop.xlane.xlu0 %1725
    %v1727 = vsel %vm46, %v1719, 0.0
    %1728 = vadd.xlane.f32.xlu0 %v1727
    %v1729 = vpop.xlane.xlu0 %1728
    %v1730 = vsel %vm46, %v1720, 0.0
    %1731 = vadd.xlane.f32.xlu0 %v1730
    %v1732 = vpop.xlane.xlu0 %1731
    %v1733 = vsel %vm46, %v1721, 0.0
    %1734 = vadd.xlane.f32.xlu0 %v1733
    %v1735 = vpop.xlane.xlu0 %1734
    %v1736 = vmul.f32 %v1726, %v65
    %v1737 = vmul.f32 %v1729, %v65
    %v1738 = vmul.f32 %v1732, %v65
    %v1739 = vmul.f32 %v1735, %v65
    %v1740 = vsub.f32 %v1718, %v1736
    %v1741 = vsub.f32 %v1719, %v1737
    %v1742 = vsub.f32 %v1720, %v1738
    %v1743 = vsub.f32 %v1721, %v1739
    %v1744 = vmul.f32 %v1740, %v1740
    %v1745 = vmul.f32 %v1741, %v1741
    %v1746 = vmul.f32 %v1742, %v1742
    %v1747 = vmul.f32 %v1743, %v1743
    %v1748 = vsel %vm46, %v1744, 0.0
    %1749 = vadd.xlane.f32.xlu0 %v1748
    %v1750 = vpop.xlane.xlu0 %1749
    %v1751 = vsel %vm46, %v1745, 0.0
    %1752 = vadd.xlane.f32.xlu0 %v1751
    %v1753 = vpop.xlane.xlu0 %1752
    %v1754 = vsel %vm46, %v1746, 0.0
    %1755 = vadd.xlane.f32.xlu0 %v1754
    %v1756 = vpop.xlane.xlu0 %1755
    %v1757 = vsel %vm46, %v1747, 0.0
    %1758 = vadd.xlane.f32.xlu0 %v1757
    %v1759 = vpop.xlane.xlu0 %1758
    %v1760 = vmul.f32 %v1750, %v65
    %v1761 = vmul.f32 %v1753, %v65
    %v1762 = vmul.f32 %v1756, %v65
    %v1763 = vmul.f32 %v1759, %v65
    %v1764 = vadd.f32 %v1760, 1e-05
    %v1765 = vadd.f32 %v1761, 1e-05
    %v1766 = vadd.f32 %v1762, 1e-05
    %v1767 = vadd.f32 %v1763, 1e-05
    %v1768 = vrsqrt.pop %v1764
    %v1769 = vmul.f32 %v1768, %v1764
    %v1770 = vmul.f32 %v1769, %v1768
    %v1771 = vmul.f32 0.5, %v1770
    %v1772 = vsub.f32 1.5, %v1771
    %v1773 = vmul.f32 %v1768, %v1772
    %vm1774 = vweird.f32 %v1764
    %vm1775 = vweird.f32 %v1768
    %vm1776 = vmor %vm1774, %vm1775
    %v1777 = vsel %vm1776, %v1768, %v1773
    %v1778 = vrsqrt.pop %v1765
    %v1779 = vmul.f32 %v1778, %v1765
    %v1780 = vmul.f32 %v1779, %v1778
    %v1781 = vmul.f32 0.5, %v1780
    %v1782 = vsub.f32 1.5, %v1781
    %v1783 = vmul.f32 %v1778, %v1782
    %vm1784 = vweird.f32 %v1765
    %vm1785 = vweird.f32 %v1778
    %vm1786 = vmor %vm1784, %vm1785
    %v1787 = vsel %vm1786, %v1778, %v1783
    %v1788 = vrsqrt.pop %v1766
    %v1789 = vmul.f32 %v1788, %v1766
    %v1790 = vmul.f32 %v1789, %v1788
    %v1791 = vmul.f32 0.5, %v1790
    %v1792 = vsub.f32 1.5, %v1791
    %v1793 = vmul.f32 %v1788, %v1792
    %vm1794 = vweird.f32 %v1766
    %vm1795 = vweird.f32 %v1788
    %vm1796 = vmor %vm1794, %vm1795
    %v1797 = vsel %vm1796, %v1788, %v1793
    %v1798 = vrsqrt.pop %v1767
    %v1799 = vmul.f32 %v1798, %v1767
    %v1800 = vmul.f32 %v1799, %v1798
    %v1801 = vmul.f32 0.5, %v1800
    %v1802 = vsub.f32 1.5, %v1801
    %v1803 = vmul.f32 %v1798, %v1802
    %vm1804 = vweird.f32 %v1767
    %vm1805 = vweird.f32 %v1798
    %vm1806 = vmor %vm1804, %vm1805
    %v1807 = vsel %vm1806, %v1798, %v1803
    %v1808 = vmul.f32 %v1740, %v1777
    %v1809 = vmul.f32 %v1741, %v1787
    %v1810 = vmul.f32 %v1742, %v1797
    %v1811 = vmul.f32 %v1743, %v1807
    %v1812 = vperm.slane %v1723, 0
    %v1813 = vmul.f32 %v1808, %v1812
    %v1814 = vmul.f32 %v1809, %v1812
    %v1815 = vmul.f32 %v1810, %v1812
    %v1816 = vmul.f32 %v1811, %v1812
    %v1817 = vperm.slane %v1723, 1
    %v1818 = vadd.f32 %v1813, %v1817
    %v1819 = vadd.f32 %v1814, %v1817
    %v1820 = vadd.f32 %v1815, %v1817
    %v1821 = vadd.f32 %v1816, %v1817
    %s1822 = scalar_lea.vmem %s2, 32
    %v1823 = vld [vmem:[%s1822] sm:$0xff]
    %v1824 = vld [vmem:[%s1822 + $0x8] sm:$0xff]
    %v1825 = vld [vmem:[%s1822 + $0x10] sm:$0xff]
    %v1826 = vld [vmem:[%s1822 + $0x18] sm:$0xff]
    %v1827 = vperm.slane %v1723, 4
    %v1829 = vsel %vm46, %v1818, 0
    %v1832 = vsel %vm46, %v1819, 0
    %v1835 = vsel %vm46, %v1820, 0
    %v1838 = vsel %vm46, %v1821, 0
    %1840 = vmatpush.msra.mxu0 0.0
    %1841 = vmatpush.msra.mxu0 0.0
    %1842 = vmatpush.msra.mxu0 0.0
    %1843 = vmatpush.msra.mxu0 0.0
    %1844 = vmatpush.msra.mxu0 0.0
    %1845 = vmatpush.msra.mxu0 0.0
    %1846 = vmatpush.msra.mxu0 0.0
    %1847 = vmatpush.msra.mxu0 0.0
    %1848 = vmatpush.msra.mxu0 0.0
    %1849 = vmatpush.msra.mxu0 0.0
    %1850 = vmatpush.msra.mxu0 0.0
    %1851 = vmatpush.msra.mxu0 0.0
    %1852 = vmatpush.msra.mxu0 %v1826
    %1853 = vmatpush.msra.mxu0 %v1825
    %1854 = vmatpush.msra.mxu0 %v1824
    %1855 = vmatpush.msra.mxu0 %v1823
    %1856 = vmatmul.f32.gmra.mxu0 %v1829
    %v1857 = vpop.f32.mrf.mxu0
    %v1858 = vadd.f32 %v1827, %v1857
    %1859 = vmatmul.f32.gmra.mxu0 %v1832
    %v1860 = vpop.f32.mrf.mxu0
    %v1861 = vadd.f32 %v1827, %v1860
    %1862 = vmatmul.f32.gmra.mxu0 %v1835
    %v1863 = vpop.f32.mrf.mxu0
    %v1864 = vadd.f32 %v1827, %v1863
    %1865 = vmatmul.f32.gmra.mxu0 %v1838
    %v1866 = vpop.f32.mrf.mxu0
    %v1867 = vadd.f32 %v1827, %v1866
    %1868 = vdwg.mxu0
    %1873 = vrot.lane.b32.xlu0 %v1858, 104
    %v1874 = vpop.permute.xlu0 %1873
    %1875 = vrot.lane.b32.xlu0 %v1861, 104
    %v1876 = vpop.permute.xlu0 %1875
    %1877 = vrot.lane.b32.xlu0 %v1864, 104
    %v1878 = vpop.permute.xlu0 %1877
    %1879 = vrot.lane.b32.xlu0 %v1867, 104
    %v1880 = vpop.permute.xlu0 %1879
    %1881 = vrot.lane.b32.xlu0 %v1858, 80
    %v1882 = vpop.permute.xlu0 %1881
    %1883 = vrot.lane.b32.xlu0 %v1861, 80
    %v1884 = vpop.permute.xlu0 %1883
    %1885 = vrot.lane.b32.xlu0 %v1864, 80
    %v1886 = vpop.permute.xlu0 %1885
    %1887 = vrot.lane.b32.xlu0 %v1867, 80
    %v1888 = vpop.permute.xlu0 %1887
    %1889 = vrot.lane.b32.xlu0 %v1858, 56
    %v1890 = vpop.permute.xlu0 %1889
    %1891 = vrot.lane.b32.xlu0 %v1861, 56
    %v1892 = vpop.permute.xlu0 %1891
    %1893 = vrot.lane.b32.xlu0 %v1864, 56
    %v1894 = vpop.permute.xlu0 %1893
    %1895 = vrot.lane.b32.xlu0 %v1867, 56
    %v1896 = vpop.permute.xlu0 %1895
    %1897 = vrot.lane.b32.xlu0 %v1858, 120
    %v1898 = vpop.permute.xlu0 %1897
    %v1899 = vsel %vm228, %v1858, 0
    %v1901 = vsel %vm228, %v1898, 0
    %1903 = vmatpush.xpose.msra.mxu0 0.0
    %1904 = vmatpush.xpose.msra.mxu0 0.0
    %1905 = vmatpush.xpose.msra.mxu0 0.0
    %1906 = vmatpush.xpose.msra.mxu0 0.0
    %1907 = vmatpush.xpose.msra.mxu0 0.0
    %1908 = vmatpush.xpose.msra.mxu0 0.0
    %1909 = vmatpush.xpose.msra.mxu0 0.0
    %1910 = vmatpush.xpose.msra.mxu0 0.0
    %1911 = vmatpush.xpose.msra.mxu0 0.0
    %1912 = vmatpush.xpose.msra.mxu0 0.0
    %1913 = vmatpush.xpose.msra.mxu0 0.0
    %1914 = vmatpush.xpose.msra.mxu0 0.0
    %1915 = vmatpush.xpose.msra.mxu0 0.0
    %1916 = vmatpush.xpose.msra.mxu0 0.0
    %1917 = vmatpush.xpose.msra.mxu0 0.0
    %1918 = vmatpush.xpose.msra.mxu0 %v1901
    %1919 = vmatmul.f32.gmra.mxu0 %v1899
    %v1920 = vpop.f32.mrf.mxu0
    %v1921 = vadd.f32 %v44, %v1920
    %1922 = vdwg.mxu0
    %1923 = vrot.lane.b32.xlu0 %v1861, 120
    %v1924 = vpop.permute.xlu0 %1923
    %v1925 = vsel %vm228, %v1861, 0
    %v1927 = vsel %vm228, %v1924, 0
    %1929 = vmatpush.xpose.msra.mxu0 0.0
    %1930 = vmatpush.xpose.msra.mxu0 0.0
    %1931 = vmatpush.xpose.msra.mxu0 0.0
    %1932 = vmatpush.xpose.msra.mxu0 0.0
    %1933 = vmatpush.xpose.msra.mxu0 0.0
    %1934 = vmatpush.xpose.msra.mxu0 0.0
    %1935 = vmatpush.xpose.msra.mxu0 0.0
    %1936 = vmatpush.xpose.msra.mxu0 0.0
    %1937 = vmatpush.xpose.msra.mxu0 0.0
    %1938 = vmatpush.xpose.msra.mxu0 0.0
    %1939 = vmatpush.xpose.msra.mxu0 0.0
    %1940 = vmatpush.xpose.msra.mxu0 0.0
    %1941 = vmatpush.xpose.msra.mxu0 0.0
    %1942 = vmatpush.xpose.msra.mxu0 0.0
    %1943 = vmatpush.xpose.msra.mxu0 0.0
    %1944 = vmatpush.xpose.msra.mxu0 %v1927
    %1945 = vmatmul.f32.gmra.mxu0 %v1925
    %v1946 = vpop.f32.mrf.mxu0
    %v1947 = vadd.f32 %v44, %v1946
    %1948 = vdwg.mxu0
    %1949 = vrot.lane.b32.xlu0 %v1864, 120
    %v1950 = vpop.permute.xlu0 %1949
    %v1951 = vsel %vm228, %v1864, 0
    %v1953 = vsel %vm228, %v1950, 0
    %1955 = vmatpush.xpose.msra.mxu0 0.0
    %1956 = vmatpush.xpose.msra.mxu0 0.0
    %1957 = vmatpush.xpose.msra.mxu0 0.0
    %1958 = vmatpush.xpose.msra.mxu0 0.0
    %1959 = vmatpush.xpose.msra.mxu0 0.0
    %1960 = vmatpush.xpose.msra.mxu0 0.0
    %1961 = vmatpush.xpose.msra.mxu0 0.0
    %1962 = vmatpush.xpose.msra.mxu0 0.0
    %1963 = vmatpush.xpose.msra.mxu0 0.0
    %1964 = vmatpush.xpose.msra.mxu0 0.0
    %1965 = vmatpush.xpose.msra.mxu0 0.0
    %1966 = vmatpush.xpose.msra.mxu0 0.0
    %1967 = vmatpush.xpose.msra.mxu0 0.0
    %1968 = vmatpush.xpose.msra.mxu0 0.0
    %1969 = vmatpush.xpose.msra.mxu0 0.0
    %1970 = vmatpush.xpose.msra.mxu0 %v1953
    %1971 = vmatmul.f32.gmra.mxu0 %v1951
    %v1972 = vpop.f32.mrf.mxu0
    %v1973 = vadd.f32 %v44, %v1972
    %1974 = vdwg.mxu0
    %1975 = vrot.lane.b32.xlu0 %v1867, 120
    %v1976 = vpop.permute.xlu0 %1975
    %v1977 = vsel %vm228, %v1867, 0
    %v1979 = vsel %vm228, %v1976, 0
    %1981 = vmatpush.xpose.msra.mxu0 0.0
    %1982 = vmatpush.xpose.msra.mxu0 0.0
    %1983 = vmatpush.xpose.msra.mxu0 0.0
    %1984 = vmatpush.xpose.msra.mxu0 0.0
    %1985 = vmatpush.xpose.msra.mxu0 0.0
    %1986 = vmatpush.xpose.msra.mxu0 0.0
    %1987 = vmatpush.xpose.msra.mxu0 0.0
    %1988 = vmatpush.xpose.msra.mxu0 0.0
    %1989 = vmatpush.xpose.msra.mxu0 0.0
    %1990 = vmatpush.xpose.msra.mxu0 0.0
    %1991 = vmatpush.xpose.msra.mxu0 0.0
    %1992 = vmatpush.xpose.msra.mxu0 0.0
    %1993 = vmatpush.xpose.msra.mxu0 0.0
    %1994 = vmatpush.xpose.msra.mxu0 0.0
    %1995 = vmatpush.xpose.msra.mxu0 0.0
    %1996 = vmatpush.xpose.msra.mxu0 %v1979
    %1997 = vmatmul.f32.gmra.mxu0 %v1977
    %v1998 = vpop.f32.mrf.mxu0
    %v1999 = vadd.f32 %v44, %v1998
    %2000 = vdwg.mxu0
    %2001 = vrot.lane.b32.xlu0 %v1874, 120
    %v2002 = vpop.permute.xlu0 %2001
    %v2003 = vsel %vm228, %v1874, 0
    %v2005 = vsel %vm228, %v2002, 0
    %2007 = vmatpush.xpose.msra.mxu0 0.0
    %2008 = vmatpush.xpose.msra.mxu0 0.0
    %2009 = vmatpush.xpose.msra.mxu0 0.0
    %2010 = vmatpush.xpose.msra.mxu0 0.0
    %2011 = vmatpush.xpose.msra.mxu0 0.0
    %2012 = vmatpush.xpose.msra.mxu0 0.0
    %2013 = vmatpush.xpose.msra.mxu0 0.0
    %2014 = vmatpush.xpose.msra.mxu0 0.0
    %2015 = vmatpush.xpose.msra.mxu0 0.0
    %2016 = vmatpush.xpose.msra.mxu0 0.0
    %2017 = vmatpush.xpose.msra.mxu0 0.0
    %2018 = vmatpush.xpose.msra.mxu0 0.0
    %2019 = vmatpush.xpose.msra.mxu0 0.0
    %2020 = vmatpush.xpose.msra.mxu0 0.0
    %2021 = vmatpush.xpose.msra.mxu0 0.0
    %2022 = vmatpush.xpose.msra.mxu0 %v2005
    %2023 = vmatmul.f32.gmra.mxu0 %v2003
    %v2024 = vpop.f32.mrf.mxu0
    %v2025 = vadd.f32 %v44, %v2024
    %2026 = vdwg.mxu0
    %2027 = vrot.lane.b32.xlu0 %v1876, 120
    %v2028 = vpop.permute.xlu0 %2027
    %v2029 = vsel %vm228, %v1876, 0
    %v2031 = vsel %vm228, %v2028, 0
    %2033 = vmatpush.xpose.msra.mxu0 0.0
    %2034 = vmatpush.xpose.msra.mxu0 0.0
    %2035 = vmatpush.xpose.msra.mxu0 0.0
    %2036 = vmatpush.xpose.msra.mxu0 0.0
    %2037 = vmatpush.xpose.msra.mxu0 0.0
    %2038 = vmatpush.xpose.msra.mxu0 0.0
    %2039 = vmatpush.xpose.msra.mxu0 0.0
    %2040 = vmatpush.xpose.msra.mxu0 0.0
    %2041 = vmatpush.xpose.msra.mxu0 0.0
    %2042 = vmatpush.xpose.msra.mxu0 0.0
    %2043 = vmatpush.xpose.msra.mxu0 0.0
    %2044 = vmatpush.xpose.msra.mxu0 0.0
    %2045 = vmatpush.xpose.msra.mxu0 0.0
    %2046 = vmatpush.xpose.msra.mxu0 0.0
    %2047 = vmatpush.xpose.msra.mxu0 0.0
    %2048 = vmatpush.xpose.msra.mxu0 %v2031
    %2049 = vmatmul.f32.gmra.mxu0 %v2029
    %v2050 = vpop.f32.mrf.mxu0
    %v2051 = vadd.f32 %v44, %v2050
    %2052 = vdwg.mxu0
    %2053 = vrot.lane.b32.xlu0 %v1878, 120
    %v2054 = vpop.permute.xlu0 %2053
    %v2055 = vsel %vm228, %v1878, 0
    %v2057 = vsel %vm228, %v2054, 0
    %2059 = vmatpush.xpose.msra.mxu0 0.0
    %2060 = vmatpush.xpose.msra.mxu0 0.0
    %2061 = vmatpush.xpose.msra.mxu0 0.0
    %2062 = vmatpush.xpose.msra.mxu0 0.0
    %2063 = vmatpush.xpose.msra.mxu0 0.0
    %2064 = vmatpush.xpose.msra.mxu0 0.0
    %2065 = vmatpush.xpose.msra.mxu0 0.0
    %2066 = vmatpush.xpose.msra.mxu0 0.0
    %2067 = vmatpush.xpose.msra.mxu0 0.0
    %2068 = vmatpush.xpose.msra.mxu0 0.0
    %2069 = vmatpush.xpose.msra.mxu0 0.0
    %2070 = vmatpush.xpose.msra.mxu0 0.0
    %2071 = vmatpush.xpose.msra.mxu0 0.0
    %2072 = vmatpush.xpose.msra.mxu0 0.0
    %2073 = vmatpush.xpose.msra.mxu0 0.0
    %2074 = vmatpush.xpose.msra.mxu0 %v2057
    %2075 = vmatmul.f32.gmra.mxu0 %v2055
    %v2076 = vpop.f32.mrf.mxu0
    %v2077 = vadd.f32 %v44, %v2076
    %2078 = vdwg.mxu0
    %2079 = vrot.lane.b32.xlu0 %v1880, 120
    %v2080 = vpop.permute.xlu0 %2079
    %v2081 = vsel %vm228, %v1880, 0
    %v2083 = vsel %vm228, %v2080, 0
    %2085 = vmatpush.xpose.msra.mxu0 0.0
    %2086 = vmatpush.xpose.msra.mxu0 0.0
    %2087 = vmatpush.xpose.msra.mxu0 0.0
    %2088 = vmatpush.xpose.msra.mxu0 0.0
    %2089 = vmatpush.xpose.msra.mxu0 0.0
    %2090 = vmatpush.xpose.msra.mxu0 0.0
    %2091 = vmatpush.xpose.msra.mxu0 0.0
    %2092 = vmatpush.xpose.msra.mxu0 0.0
    %2093 = vmatpush.xpose.msra.mxu0 0.0
    %2094 = vmatpush.xpose.msra.mxu0 0.0
    %2095 = vmatpush.xpose.msra.mxu0 0.0
    %2096 = vmatpush.xpose.msra.mxu0 0.0
    %2097 = vmatpush.xpose.msra.mxu0 0.0
    %2098 = vmatpush.xpose.msra.mxu0 0.0
    %2099 = vmatpush.xpose.msra.mxu0 0.0
    %2100 = vmatpush.xpose.msra.mxu0 %v2083
    %2101 = vmatmul.f32.gmra.mxu0 %v2081
    %v2102 = vpop.f32.mrf.mxu0
    %v2103 = vadd.f32 %v44, %v2102
    %2104 = vdwg.mxu0
    %2105 = vrot.lane.b32.xlu0 %v1882, 120
    %v2106 = vpop.permute.xlu0 %2105
    %v2107 = vsel %vm228, %v1882, 0
    %v2109 = vsel %vm228, %v2106, 0
    %2111 = vmatpush.xpose.msra.mxu0 0.0
    %2112 = vmatpush.xpose.msra.mxu0 0.0
    %2113 = vmatpush.xpose.msra.mxu0 0.0
    %2114 = vmatpush.xpose.msra.mxu0 0.0
    %2115 = vmatpush.xpose.msra.mxu0 0.0
    %2116 = vmatpush.xpose.msra.mxu0 0.0
    %2117 = vmatpush.xpose.msra.mxu0 0.0
    %2118 = vmatpush.xpose.msra.mxu0 0.0
    %2119 = vmatpush.xpose.msra.mxu0 0.0
    %2120 = vmatpush.xpose.msra.mxu0 0.0
    %2121 = vmatpush.xpose.msra.mxu0 0.0
    %2122 = vmatpush.xpose.msra.mxu0 0.0
    %2123 = vmatpush.xpose.msra.mxu0 0.0
    %2124 = vmatpush.xpose.msra.mxu0 0.0
    %2125 = vmatpush.xpose.msra.mxu0 0.0
    %2126 = vmatpush.xpose.msra.mxu0 %v2109
    %2127 = vmatmul.f32.gmra.mxu0 %v2107
    %v2128 = vpop.f32.mrf.mxu0
    %v2129 = vadd.f32 %v44, %v2128
    %2130 = vdwg.mxu0
    %2131 = vrot.lane.b32.xlu0 %v1884, 120
    %v2132 = vpop.permute.xlu0 %2131
    %v2133 = vsel %vm228, %v1884, 0
    %v2135 = vsel %vm228, %v2132, 0
    %2137 = vmatpush.xpose.msra.mxu0 0.0
    %2138 = vmatpush.xpose.msra.mxu0 0.0
    %2139 = vmatpush.xpose.msra.mxu0 0.0
    %2140 = vmatpush.xpose.msra.mxu0 0.0
    %2141 = vmatpush.xpose.msra.mxu0 0.0
    %2142 = vmatpush.xpose.msra.mxu0 0.0
    %2143 = vmatpush.xpose.msra.mxu0 0.0
    %2144 = vmatpush.xpose.msra.mxu0 0.0
    %2145 = vmatpush.xpose.msra.mxu0 0.0
    %2146 = vmatpush.xpose.msra.mxu0 0.0
    %2147 = vmatpush.xpose.msra.mxu0 0.0
    %2148 = vmatpush.xpose.msra.mxu0 0.0
    %2149 = vmatpush.xpose.msra.mxu0 0.0
    %2150 = vmatpush.xpose.msra.mxu0 0.0
    %2151 = vmatpush.xpose.msra.mxu0 0.0
    %2152 = vmatpush.xpose.msra.mxu0 %v2135
    %2153 = vmatmul.f32.gmra.mxu0 %v2133
    %v2154 = vpop.f32.mrf.mxu0
    %v2155 = vadd.f32 %v44, %v2154
    %2156 = vdwg.mxu0
    %2157 = vrot.lane.b32.xlu0 %v1886, 120
    %v2158 = vpop.permute.xlu0 %2157
    %v2159 = vsel %vm228, %v1886, 0
    %v2161 = vsel %vm228, %v2158, 0
    %2163 = vmatpush.xpose.msra.mxu0 0.0
    %2164 = vmatpush.xpose.msra.mxu0 0.0
    %2165 = vmatpush.xpose.msra.mxu0 0.0
    %2166 = vmatpush.xpose.msra.mxu0 0.0
    %2167 = vmatpush.xpose.msra.mxu0 0.0
    %2168 = vmatpush.xpose.msra.mxu0 0.0
    %2169 = vmatpush.xpose.msra.mxu0 0.0
    %2170 = vmatpush.xpose.msra.mxu0 0.0
    %2171 = vmatpush.xpose.msra.mxu0 0.0
    %2172 = vmatpush.xpose.msra.mxu0 0.0
    %2173 = vmatpush.xpose.msra.mxu0 0.0
    %2174 = vmatpush.xpose.msra.mxu0 0.0
    %2175 = vmatpush.xpose.msra.mxu0 0.0
    %2176 = vmatpush.xpose.msra.mxu0 0.0
    %2177 = vmatpush.xpose.msra.mxu0 0.0
    %2178 = vmatpush.xpose.msra.mxu0 %v2161
    %2179 = vmatmul.f32.gmra.mxu0 %v2159
    %v2180 = vpop.f32.mrf.mxu0
    %v2181 = vadd.f32 %v44, %v2180
    %2182 = vdwg.mxu0
    %2183 = vrot.lane.b32.xlu0 %v1888, 120
    %v2184 = vpop.permute.xlu0 %2183
    %v2185 = vsel %vm228, %v1888, 0
    %v2187 = vsel %vm228, %v2184, 0
    %2189 = vmatpush.xpose.msra.mxu0 0.0
    %2190 = vmatpush.xpose.msra.mxu0 0.0
    %2191 = vmatpush.xpose.msra.mxu0 0.0
    %2192 = vmatpush.xpose.msra.mxu0 0.0
    %2193 = vmatpush.xpose.msra.mxu0 0.0
    %2194 = vmatpush.xpose.msra.mxu0 0.0
    %2195 = vmatpush.xpose.msra.mxu0 0.0
    %2196 = vmatpush.xpose.msra.mxu0 0.0
    %2197 = vmatpush.xpose.msra.mxu0 0.0
    %2198 = vmatpush.xpose.msra.mxu0 0.0
    %2199 = vmatpush.xpose.msra.mxu0 0.0
    %2200 = vmatpush.xpose.msra.mxu0 0.0
    %2201 = vmatpush.xpose.msra.mxu0 0.0
    %2202 = vmatpush.xpose.msra.mxu0 0.0
    %2203 = vmatpush.xpose.msra.mxu0 0.0
    %2204 = vmatpush.xpose.msra.mxu0 %v2187
    %2205 = vmatmul.f32.gmra.mxu0 %v2185
    %v2206 = vpop.f32.mrf.mxu0
    %v2207 = vadd.f32 %v44, %v2206
    %2208 = vdwg.mxu0
    %2209 = vrot.lane.b32.xlu0 %v1890, 120
    %v2210 = vpop.permute.xlu0 %2209
    %v2211 = vsel %vm228, %v1890, 0
    %v2213 = vsel %vm228, %v2210, 0
    %2215 = vmatpush.xpose.msra.mxu0 0.0
    %2216 = vmatpush.xpose.msra.mxu0 0.0
    %2217 = vmatpush.xpose.msra.mxu0 0.0
    %2218 = vmatpush.xpose.msra.mxu0 0.0
    %2219 = vmatpush.xpose.msra.mxu0 0.0
    %2220 = vmatpush.xpose.msra.mxu0 0.0
    %2221 = vmatpush.xpose.msra.mxu0 0.0
    %2222 = vmatpush.xpose.msra.mxu0 0.0
    %2223 = vmatpush.xpose.msra.mxu0 0.0
    %2224 = vmatpush.xpose.msra.mxu0 0.0
    %2225 = vmatpush.xpose.msra.mxu0 0.0
    %2226 = vmatpush.xpose.msra.mxu0 0.0
    %2227 = vmatpush.xpose.msra.mxu0 0.0
    %2228 = vmatpush.xpose.msra.mxu0 0.0
    %2229 = vmatpush.xpose.msra.mxu0 0.0
    %2230 = vmatpush.xpose.msra.mxu0 %v2213
    %2231 = vmatmul.f32.gmra.mxu0 %v2211
    %v2232 = vpop.f32.mrf.mxu0
    %v2233 = vadd.f32 %v44, %v2232
    %2234 = vdwg.mxu0
    %2235 = vrot.lane.b32.xlu0 %v1892, 120
    %v2236 = vpop.permute.xlu0 %2235
    %v2237 = vsel %vm228, %v1892, 0
    %v2239 = vsel %vm228, %v2236, 0
    %2241 = vmatpush.xpose.msra.mxu0 0.0
    %2242 = vmatpush.xpose.msra.mxu0 0.0
    %2243 = vmatpush.xpose.msra.mxu0 0.0
    %2244 = vmatpush.xpose.msra.mxu0 0.0
    %2245 = vmatpush.xpose.msra.mxu0 0.0
    %2246 = vmatpush.xpose.msra.mxu0 0.0
    %2247 = vmatpush.xpose.msra.mxu0 0.0
    %2248 = vmatpush.xpose.msra.mxu0 0.0
    %2249 = vmatpush.xpose.msra.mxu0 0.0
    %2250 = vmatpush.xpose.msra.mxu0 0.0
    %2251 = vmatpush.xpose.msra.mxu0 0.0
    %2252 = vmatpush.xpose.msra.mxu0 0.0
    %2253 = vmatpush.xpose.msra.mxu0 0.0
    %2254 = vmatpush.xpose.msra.mxu0 0.0
    %2255 = vmatpush.xpose.msra.mxu0 0.0
    %2256 = vmatpush.xpose.msra.mxu0 %v2239
    %2257 = vmatmul.f32.gmra.mxu0 %v2237
    %v2258 = vpop.f32.mrf.mxu0
    %v2259 = vadd.f32 %v44, %v2258
    %2260 = vdwg.mxu0
    %2261 = vrot.lane.b32.xlu0 %v1894, 120
    %v2262 = vpop.permute.xlu0 %2261
    %v2263 = vsel %vm228, %v1894, 0
    %v2265 = vsel %vm228, %v2262, 0
    %2267 = vmatpush.xpose.msra.mxu0 0.0
    %2268 = vmatpush.xpose.msra.mxu0 0.0
    %2269 = vmatpush.xpose.msra.mxu0 0.0
    %2270 = vmatpush.xpose.msra.mxu0 0.0
    %2271 = vmatpush.xpose.msra.mxu0 0.0
    %2272 = vmatpush.xpose.msra.mxu0 0.0
    %2273 = vmatpush.xpose.msra.mxu0 0.0
    %2274 = vmatpush.xpose.msra.mxu0 0.0
    %2275 = vmatpush.xpose.msra.mxu0 0.0
    %2276 = vmatpush.xpose.msra.mxu0 0.0
    %2277 = vmatpush.xpose.msra.mxu0 0.0
    %2278 = vmatpush.xpose.msra.mxu0 0.0
    %2279 = vmatpush.xpose.msra.mxu0 0.0
    %2280 = vmatpush.xpose.msra.mxu0 0.0
    %2281 = vmatpush.xpose.msra.mxu0 0.0
    %2282 = vmatpush.xpose.msra.mxu0 %v2265
    %2283 = vmatmul.f32.gmra.mxu0 %v2263
    %v2284 = vpop.f32.mrf.mxu0
    %v2285 = vadd.f32 %v44, %v2284
    %2286 = vdwg.mxu0
    %2287 = vrot.lane.b32.xlu0 %v1896, 120
    %v2288 = vpop.permute.xlu0 %2287
    %v2289 = vsel %vm228, %v1896, 0
    %v2291 = vsel %vm228, %v2288, 0
    %2293 = vmatpush.xpose.msra.mxu0 0.0
    %2294 = vmatpush.xpose.msra.mxu0 0.0
    %2295 = vmatpush.xpose.msra.mxu0 0.0
    %2296 = vmatpush.xpose.msra.mxu0 0.0
    %2297 = vmatpush.xpose.msra.mxu0 0.0
    %2298 = vmatpush.xpose.msra.mxu0 0.0
    %2299 = vmatpush.xpose.msra.mxu0 0.0
    %2300 = vmatpush.xpose.msra.mxu0 0.0
    %2301 = vmatpush.xpose.msra.mxu0 0.0
    %2302 = vmatpush.xpose.msra.mxu0 0.0
    %2303 = vmatpush.xpose.msra.mxu0 0.0
    %2304 = vmatpush.xpose.msra.mxu0 0.0
    %2305 = vmatpush.xpose.msra.mxu0 0.0
    %2306 = vmatpush.xpose.msra.mxu0 0.0
    %2307 = vmatpush.xpose.msra.mxu0 0.0
    %2308 = vmatpush.xpose.msra.mxu0 %v2291
    %2309 = vmatmul.f32.gmra.mxu0 %v2289
    %v2310 = vpop.f32.mrf.mxu0
    %v2311 = vadd.f32 %v44, %v2310
    %2312 = vdwg.mxu0
    %v2313 = vsel %vm228, %v1921, -inf
    %2314 = vmax.xlane.f32.xlu0 %v2313
    %v2315 = vpop.xlane.xlu0 %2314
    %v2316 = vsel %vm228, %v1947, -inf
    %2317 = vmax.xlane.f32.xlu0 %v2316
    %v2318 = vpop.xlane.xlu0 %2317
    %v2319 = vsel %vm228, %v1973, -inf
    %2320 = vmax.xlane.f32.xlu0 %v2319
    %v2321 = vpop.xlane.xlu0 %2320
    %v2322 = vsel %vm228, %v1999, -inf
    %2323 = vmax.xlane.f32.xlu0 %v2322
    %v2324 = vpop.xlane.xlu0 %2323
    %v2325 = vsel %vm228, %v2025, -inf
    %2326 = vmax.xlane.f32.xlu0 %v2325
    %v2327 = vpop.xlane.xlu0 %2326
    %v2328 = vsel %vm228, %v2051, -inf
    %2329 = vmax.xlane.f32.xlu0 %v2328
    %v2330 = vpop.xlane.xlu0 %2329
    %v2331 = vsel %vm228, %v2077, -inf
    %2332 = vmax.xlane.f32.xlu0 %v2331
    %v2333 = vpop.xlane.xlu0 %2332
    %v2334 = vsel %vm228, %v2103, -inf
    %2335 = vmax.xlane.f32.xlu0 %v2334
    %v2336 = vpop.xlane.xlu0 %2335
    %v2337 = vsel %vm228, %v2129, -inf
    %2338 = vmax.xlane.f32.xlu0 %v2337
    %v2339 = vpop.xlane.xlu0 %2338
    %v2340 = vsel %vm228, %v2155, -inf
    %2341 = vmax.xlane.f32.xlu0 %v2340
    %v2342 = vpop.xlane.xlu0 %2341
    %v2343 = vsel %vm228, %v2181, -inf
    %2344 = vmax.xlane.f32.xlu0 %v2343
    %v2345 = vpop.xlane.xlu0 %2344
    %v2346 = vsel %vm228, %v2207, -inf
    %2347 = vmax.xlane.f32.xlu0 %v2346
    %v2348 = vpop.xlane.xlu0 %2347
    %v2349 = vsel %vm228, %v2233, -inf
    %2350 = vmax.xlane.f32.xlu0 %v2349
    %v2351 = vpop.xlane.xlu0 %2350
    %v2352 = vsel %vm228, %v2259, -inf
    %2353 = vmax.xlane.f32.xlu0 %v2352
    %v2354 = vpop.xlane.xlu0 %2353
    %v2355 = vsel %vm228, %v2285, -inf
    %2356 = vmax.xlane.f32.xlu0 %v2355
    %v2357 = vpop.xlane.xlu0 %2356
    %v2358 = vsel %vm228, %v2311, -inf
    %2359 = vmax.xlane.f32.xlu0 %v2358
    %v2360 = vpop.xlane.xlu0 %2359
    %v2361 = vsub.f32 %v1921, %v2315
    %v2362 = vsub.f32 %v1947, %v2318
    %v2363 = vsub.f32 %v1973, %v2321
    %v2364 = vsub.f32 %v1999, %v2324
    %v2365 = vsub.f32 %v2025, %v2327
    %v2366 = vsub.f32 %v2051, %v2330
    %v2367 = vsub.f32 %v2077, %v2333
    %v2368 = vsub.f32 %v2103, %v2336
    %v2369 = vsub.f32 %v2129, %v2339
    %v2370 = vsub.f32 %v2155, %v2342
    %v2371 = vsub.f32 %v2181, %v2345
    %v2372 = vsub.f32 %v2207, %v2348
    %v2373 = vsub.f32 %v2233, %v2351
    %v2374 = vsub.f32 %v2259, %v2354
    %v2375 = vsub.f32 %v2285, %v2357
    %v2376 = vsub.f32 %v2311, %v2360
    %v2377 = vmul.f32 %v2361, 1.442695
    %v2378 = vpow.pop %v2377
    %v2379 = vmul.f32 %v2362, 1.442695
    %v2380 = vpow.pop %v2379
    %v2381 = vmul.f32 %v2363, 1.442695
    %v2382 = vpow.pop %v2381
    %v2383 = vmul.f32 %v2364, 1.442695
    %v2384 = vpow.pop %v2383
    %v2385 = vmul.f32 %v2365, 1.442695
    %v2386 = vpow.pop %v2385
    %v2387 = vmul.f32 %v2366, 1.442695
    %v2388 = vpow.pop %v2387
    %v2389 = vmul.f32 %v2367, 1.442695
    %v2390 = vpow.pop %v2389
    %v2391 = vmul.f32 %v2368, 1.442695
    %v2392 = vpow.pop %v2391
    %v2393 = vmul.f32 %v2369, 1.442695
    %v2394 = vpow.pop %v2393
    %v2395 = vmul.f32 %v2370, 1.442695
    %v2396 = vpow.pop %v2395
    %v2397 = vmul.f32 %v2371, 1.442695
    %v2398 = vpow.pop %v2397
    %v2399 = vmul.f32 %v2372, 1.442695
    %v2400 = vpow.pop %v2399
    %v2401 = vmul.f32 %v2373, 1.442695
    %v2402 = vpow.pop %v2401
    %v2403 = vmul.f32 %v2374, 1.442695
    %v2404 = vpow.pop %v2403
    %v2405 = vmul.f32 %v2375, 1.442695
    %v2406 = vpow.pop %v2405
    %v2407 = vmul.f32 %v2376, 1.442695
    %v2408 = vpow.pop %v2407
    %v2409 = vsel %vm228, %v2378, 0.0
    %2410 = vadd.xlane.f32.xlu0 %v2409
    %v2411 = vpop.xlane.xlu0 %2410
    %v2412 = vsel %vm228, %v2380, 0.0
    %2413 = vadd.xlane.f32.xlu0 %v2412
    %v2414 = vpop.xlane.xlu0 %2413
    %v2415 = vsel %vm228, %v2382, 0.0
    %2416 = vadd.xlane.f32.xlu0 %v2415
    %v2417 = vpop.xlane.xlu0 %2416
    %v2418 = vsel %vm228, %v2384, 0.0
    %2419 = vadd.xlane.f32.xlu0 %v2418
    %v2420 = vpop.xlane.xlu0 %2419
    %v2421 = vsel %vm228, %v2386, 0.0
    %2422 = vadd.xlane.f32.xlu0 %v2421
    %v2423 = vpop.xlane.xlu0 %2422
    %v2424 = vsel %vm228, %v2388, 0.0
    %2425 = vadd.xlane.f32.xlu0 %v2424
    %v2426 = vpop.xlane.xlu0 %2425
    %v2427 = vsel %vm228, %v2390, 0.0
    %2428 = vadd.xlane.f32.xlu0 %v2427
    %v2429 = vpop.xlane.xlu0 %2428
    %v2430 = vsel %vm228, %v2392, 0.0
    %2431 = vadd.xlane.f32.xlu0 %v2430
    %v2432 = vpop.xlane.xlu0 %2431
    %v2433 = vsel %vm228, %v2394, 0.0
    %2434 = vadd.xlane.f32.xlu0 %v2433
    %v2435 = vpop.xlane.xlu0 %2434
    %v2436 = vsel %vm228, %v2396, 0.0
    %2437 = vadd.xlane.f32.xlu0 %v2436
    %v2438 = vpop.xlane.xlu0 %2437
    %v2439 = vsel %vm228, %v2398, 0.0
    %2440 = vadd.xlane.f32.xlu0 %v2439
    %v2441 = vpop.xlane.xlu0 %2440
    %v2442 = vsel %vm228, %v2400, 0.0
    %2443 = vadd.xlane.f32.xlu0 %v2442
    %v2444 = vpop.xlane.xlu0 %2443
    %v2445 = vsel %vm228, %v2402, 0.0
    %2446 = vadd.xlane.f32.xlu0 %v2445
    %v2447 = vpop.xlane.xlu0 %2446
    %v2448 = vsel %vm228, %v2404, 0.0
    %2449 = vadd.xlane.f32.xlu0 %v2448
    %v2450 = vpop.xlane.xlu0 %2449
    %v2451 = vsel %vm228, %v2406, 0.0
    %2452 = vadd.xlane.f32.xlu0 %v2451
    %v2453 = vpop.xlane.xlu0 %2452
    %v2454 = vsel %vm228, %v2408, 0.0
    %2455 = vadd.xlane.f32.xlu0 %v2454
    %v2456 = vpop.xlane.xlu0 %2455
    %v2457 = vrcp.pop %v2411
    %v2458 = vrcp.pop %v2414
    %v2459 = vrcp.pop %v2417
    %v2460 = vrcp.pop %v2420
    %v2461 = vrcp.pop %v2423
    %v2462 = vrcp.pop %v2426
    %v2463 = vrcp.pop %v2429
    %v2464 = vrcp.pop %v2432
    %v2465 = vrcp.pop %v2435
    %v2466 = vrcp.pop %v2438
    %v2467 = vrcp.pop %v2441
    %v2468 = vrcp.pop %v2444
    %v2469 = vrcp.pop %v2447
    %v2470 = vrcp.pop %v2450
    %v2471 = vrcp.pop %v2453
    %v2472 = vrcp.pop %v2456
    %v2473 = vmul.f32 %v2378, %v2457
    %v2474 = vmul.f32 %v2380, %v2458
    %v2475 = vmul.f32 %v2382, %v2459
    %v2476 = vmul.f32 %v2384, %v2460
    %v2477 = vmul.f32 %v2386, %v2461
    %v2478 = vmul.f32 %v2388, %v2462
    %v2479 = vmul.f32 %v2390, %v2463
    %v2480 = vmul.f32 %v2392, %v2464
    %v2481 = vmul.f32 %v2394, %v2465
    %v2482 = vmul.f32 %v2396, %v2466
    %v2483 = vmul.f32 %v2398, %v2467
    %v2484 = vmul.f32 %v2400, %v2468
    %v2485 = vmul.f32 %v2402, %v2469
    %v2486 = vmul.f32 %v2404, %v2470
    %v2487 = vmul.f32 %v2406, %v2471
    %v2488 = vmul.f32 %v2408, %v2472
    %2489 = vrot.lane.b32.xlu0 %v1858, 112
    %v2490 = vpop.permute.xlu0 %2489
    %v2493 = vsel %vm228, %v2473, 0
    %2495 = vmatpush.msra.mxu0 0.0
    %2496 = vmatpush.msra.mxu0 0.0
    %2497 = vmatpush.msra.mxu0 0.0
    %2498 = vmatpush.msra.mxu0 0.0
    %2499 = vmatpush.msra.mxu0 0.0
    %2500 = vmatpush.msra.mxu0 0.0
    %2501 = vmatpush.msra.mxu0 0.0
    %2502 = vmatpush.msra.mxu0 0.0
    %2503 = vmatpush.msra.mxu0 0.0
    %2504 = vmatpush.msra.mxu0 0.0
    %2505 = vmatpush.msra.mxu0 0.0
    %2506 = vmatpush.msra.mxu0 0.0
    %2507 = vmatpush.msra.mxu0 0.0
    %2508 = vmatpush.msra.mxu0 0.0
    %2509 = vmatpush.msra.mxu0 0.0
    %2510 = vmatpush.msra.mxu0 %v2490
    %2511 = vmatmul.f32.gmra.mxu0 %v2493
    %v2512 = vpop.f32.mrf.mxu0
    %v2513 = vadd.f32 0.0, %v2512
    %2514 = vdwg.mxu0
    %2515 = vrot.lane.b32.xlu0 %v1861, 112
    %v2516 = vpop.permute.xlu0 %2515
    %v2519 = vsel %vm228, %v2474, 0
    %2521 = vmatpush.msra.mxu0 0.0
    %2522 = vmatpush.msra.mxu0 0.0
    %2523 = vmatpush.msra.mxu0 0.0
    %2524 = vmatpush.msra.mxu0 0.0
    %2525 = vmatpush.msra.mxu0 0.0
    %2526 = vmatpush.msra.mxu0 0.0
    %2527 = vmatpush.msra.mxu0 0.0
    %2528 = vmatpush.msra.mxu0 0.0
    %2529 = vmatpush.msra.mxu0 0.0
    %2530 = vmatpush.msra.mxu0 0.0
    %2531 = vmatpush.msra.mxu0 0.0
    %2532 = vmatpush.msra.mxu0 0.0
    %2533 = vmatpush.msra.mxu0 0.0
    %2534 = vmatpush.msra.mxu0 0.0
    %2535 = vmatpush.msra.mxu0 0.0
    %2536 = vmatpush.msra.mxu0 %v2516
    %2537 = vmatmul.f32.gmra.mxu0 %v2519
    %v2538 = vpop.f32.mrf.mxu0
    %v2539 = vadd.f32 0.0, %v2538
    %2540 = vdwg.mxu0
    %2541 = vrot.lane.b32.xlu0 %v1864, 112
    %v2542 = vpop.permute.xlu0 %2541
    %v2545 = vsel %vm228, %v2475, 0
    %2547 = vmatpush.msra.mxu0 0.0
    %2548 = vmatpush.msra.mxu0 0.0
    %2549 = vmatpush.msra.mxu0 0.0
    %2550 = vmatpush.msra.mxu0 0.0
    %2551 = vmatpush.msra.mxu0 0.0
    %2552 = vmatpush.msra.mxu0 0.0
    %2553 = vmatpush.msra.mxu0 0.0
    %2554 = vmatpush.msra.mxu0 0.0
    %2555 = vmatpush.msra.mxu0 0.0
    %2556 = vmatpush.msra.mxu0 0.0
    %2557 = vmatpush.msra.mxu0 0.0
    %2558 = vmatpush.msra.mxu0 0.0
    %2559 = vmatpush.msra.mxu0 0.0
    %2560 = vmatpush.msra.mxu0 0.0
    %2561 = vmatpush.msra.mxu0 0.0
    %2562 = vmatpush.msra.mxu0 %v2542
    %2563 = vmatmul.f32.gmra.mxu0 %v2545
    %v2564 = vpop.f32.mrf.mxu0
    %v2565 = vadd.f32 0.0, %v2564
    %2566 = vdwg.mxu0
    %2567 = vrot.lane.b32.xlu0 %v1867, 112
    %v2568 = vpop.permute.xlu0 %2567
    %v2571 = vsel %vm228, %v2476, 0
    %2573 = vmatpush.msra.mxu0 0.0
    %2574 = vmatpush.msra.mxu0 0.0
    %2575 = vmatpush.msra.mxu0 0.0
    %2576 = vmatpush.msra.mxu0 0.0
    %2577 = vmatpush.msra.mxu0 0.0
    %2578 = vmatpush.msra.mxu0 0.0
    %2579 = vmatpush.msra.mxu0 0.0
    %2580 = vmatpush.msra.mxu0 0.0
    %2581 = vmatpush.msra.mxu0 0.0
    %2582 = vmatpush.msra.mxu0 0.0
    %2583 = vmatpush.msra.mxu0 0.0
    %2584 = vmatpush.msra.mxu0 0.0
    %2585 = vmatpush.msra.mxu0 0.0
    %2586 = vmatpush.msra.mxu0 0.0
    %2587 = vmatpush.msra.mxu0 0.0
    %2588 = vmatpush.msra.mxu0 %v2568
    %2589 = vmatmul.f32.gmra.mxu0 %v2571
    %v2590 = vpop.f32.mrf.mxu0
    %v2591 = vadd.f32 0.0, %v2590
    %2592 = vdwg.mxu0
    %2593 = vrot.lane.b32.xlu0 %v1874, 112
    %v2594 = vpop.permute.xlu0 %2593
    %v2597 = vsel %vm228, %v2477, 0
    %2599 = vmatpush.msra.mxu0 0.0
    %2600 = vmatpush.msra.mxu0 0.0
    %2601 = vmatpush.msra.mxu0 0.0
    %2602 = vmatpush.msra.mxu0 0.0
    %2603 = vmatpush.msra.mxu0 0.0
    %2604 = vmatpush.msra.mxu0 0.0
    %2605 = vmatpush.msra.mxu0 0.0
    %2606 = vmatpush.msra.mxu0 0.0
    %2607 = vmatpush.msra.mxu0 0.0
    %2608 = vmatpush.msra.mxu0 0.0
    %2609 = vmatpush.msra.mxu0 0.0
    %2610 = vmatpush.msra.mxu0 0.0
    %2611 = vmatpush.msra.mxu0 0.0
    %2612 = vmatpush.msra.mxu0 0.0
    %2613 = vmatpush.msra.mxu0 0.0
    %2614 = vmatpush.msra.mxu0 %v2594
    %2615 = vmatmul.f32.gmra.mxu0 %v2597
    %v2616 = vpop.f32.mrf.mxu0
    %v2617 = vadd.f32 0.0, %v2616
    %2618 = vdwg.mxu0
    %2619 = vrot.lane.b32.xlu0 %v1876, 112
    %v2620 = vpop.permute.xlu0 %2619
    %v2623 = vsel %vm228, %v2478, 0
    %2625 = vmatpush.msra.mxu0 0.0
    %2626 = vmatpush.msra.mxu0 0.0
    %2627 = vmatpush.msra.mxu0 0.0
    %2628 = vmatpush.msra.mxu0 0.0
    %2629 = vmatpush.msra.mxu0 0.0
    %2630 = vmatpush.msra.mxu0 0.0
    %2631 = vmatpush.msra.mxu0 0.0
    %2632 = vmatpush.msra.mxu0 0.0
    %2633 = vmatpush.msra.mxu0 0.0
    %2634 = vmatpush.msra.mxu0 0.0
    %2635 = vmatpush.msra.mxu0 0.0
    %2636 = vmatpush.msra.mxu0 0.0
    %2637 = vmatpush.msra.mxu0 0.0
    %2638 = vmatpush.msra.mxu0 0.0
    %2639 = vmatpush.msra.mxu0 0.0
    %2640 = vmatpush.msra.mxu0 %v2620
    %2641 = vmatmul.f32.gmra.mxu0 %v2623
    %v2642 = vpop.f32.mrf.mxu0
    %v2643 = vadd.f32 0.0, %v2642
    %2644 = vdwg.mxu0
    %2645 = vrot.lane.b32.xlu0 %v1878, 112
    %v2646 = vpop.permute.xlu0 %2645
    %v2649 = vsel %vm228, %v2479, 0
    %2651 = vmatpush.msra.mxu0 0.0
    %2652 = vmatpush.msra.mxu0 0.0
    %2653 = vmatpush.msra.mxu0 0.0
    %2654 = vmatpush.msra.mxu0 0.0
    %2655 = vmatpush.msra.mxu0 0.0
    %2656 = vmatpush.msra.mxu0 0.0
    %2657 = vmatpush.msra.mxu0 0.0
    %2658 = vmatpush.msra.mxu0 0.0
    %2659 = vmatpush.msra.mxu0 0.0
    %2660 = vmatpush.msra.mxu0 0.0
    %2661 = vmatpush.msra.mxu0 0.0
    %2662 = vmatpush.msra.mxu0 0.0
    %2663 = vmatpush.msra.mxu0 0.0
    %2664 = vmatpush.msra.mxu0 0.0
    %2665 = vmatpush.msra.mxu0 0.0
    %2666 = vmatpush.msra.mxu0 %v2646
    %2667 = vmatmul.f32.gmra.mxu0 %v2649
    %v2668 = vpop.f32.mrf.mxu0
    %v2669 = vadd.f32 0.0, %v2668
    %2670 = vdwg.mxu0
    %2671 = vrot.lane.b32.xlu0 %v1880, 112
    %v2672 = vpop.permute.xlu0 %2671
    %v2675 = vsel %vm228, %v2480, 0
    %2677 = vmatpush.msra.mxu0 0.0
    %2678 = vmatpush.msra.mxu0 0.0
    %2679 = vmatpush.msra.mxu0 0.0
    %2680 = vmatpush.msra.mxu0 0.0
    %2681 = vmatpush.msra.mxu0 0.0
    %2682 = vmatpush.msra.mxu0 0.0
    %2683 = vmatpush.msra.mxu0 0.0
    %2684 = vmatpush.msra.mxu0 0.0
    %2685 = vmatpush.msra.mxu0 0.0
    %2686 = vmatpush.msra.mxu0 0.0
    %2687 = vmatpush.msra.mxu0 0.0
    %2688 = vmatpush.msra.mxu0 0.0
    %2689 = vmatpush.msra.mxu0 0.0
    %2690 = vmatpush.msra.mxu0 0.0
    %2691 = vmatpush.msra.mxu0 0.0
    %2692 = vmatpush.msra.mxu0 %v2672
    %2693 = vmatmul.f32.gmra.mxu0 %v2675
    %v2694 = vpop.f32.mrf.mxu0
    %v2695 = vadd.f32 0.0, %v2694
    %2696 = vdwg.mxu0
    %2697 = vrot.lane.b32.xlu0 %v1882, 112
    %v2698 = vpop.permute.xlu0 %2697
    %v2701 = vsel %vm228, %v2481, 0
    %2703 = vmatpush.msra.mxu0 0.0
    %2704 = vmatpush.msra.mxu0 0.0
    %2705 = vmatpush.msra.mxu0 0.0
    %2706 = vmatpush.msra.mxu0 0.0
    %2707 = vmatpush.msra.mxu0 0.0
    %2708 = vmatpush.msra.mxu0 0.0
    %2709 = vmatpush.msra.mxu0 0.0
    %2710 = vmatpush.msra.mxu0 0.0
    %2711 = vmatpush.msra.mxu0 0.0
    %2712 = vmatpush.msra.mxu0 0.0
    %2713 = vmatpush.msra.mxu0 0.0
    %2714 = vmatpush.msra.mxu0 0.0
    %2715 = vmatpush.msra.mxu0 0.0
    %2716 = vmatpush.msra.mxu0 0.0
    %2717 = vmatpush.msra.mxu0 0.0
    %2718 = vmatpush.msra.mxu0 %v2698
    %2719 = vmatmul.f32.gmra.mxu0 %v2701
    %v2720 = vpop.f32.mrf.mxu0
    %v2721 = vadd.f32 0.0, %v2720
    %2722 = vdwg.mxu0
    %2723 = vrot.lane.b32.xlu0 %v1884, 112
    %v2724 = vpop.permute.xlu0 %2723
    %v2727 = vsel %vm228, %v2482, 0
    %2729 = vmatpush.msra.mxu0 0.0
    %2730 = vmatpush.msra.mxu0 0.0
    %2731 = vmatpush.msra.mxu0 0.0
    %2732 = vmatpush.msra.mxu0 0.0
    %2733 = vmatpush.msra.mxu0 0.0
    %2734 = vmatpush.msra.mxu0 0.0
    %2735 = vmatpush.msra.mxu0 0.0
    %2736 = vmatpush.msra.mxu0 0.0
    %2737 = vmatpush.msra.mxu0 0.0
    %2738 = vmatpush.msra.mxu0 0.0
    %2739 = vmatpush.msra.mxu0 0.0
    %2740 = vmatpush.msra.mxu0 0.0
    %2741 = vmatpush.msra.mxu0 0.0
    %2742 = vmatpush.msra.mxu0 0.0
    %2743 = vmatpush.msra.mxu0 0.0
    %2744 = vmatpush.msra.mxu0 %v2724
    %2745 = vmatmul.f32.gmra.mxu0 %v2727
    %v2746 = vpop.f32.mrf.mxu0
    %v2747 = vadd.f32 0.0, %v2746
    %2748 = vdwg.mxu0
    %2749 = vrot.lane.b32.xlu0 %v1886, 112
    %v2750 = vpop.permute.xlu0 %2749
    %v2753 = vsel %vm228, %v2483, 0
    %2755 = vmatpush.msra.mxu0 0.0
    %2756 = vmatpush.msra.mxu0 0.0
    %2757 = vmatpush.msra.mxu0 0.0
    %2758 = vmatpush.msra.mxu0 0.0
    %2759 = vmatpush.msra.mxu0 0.0
    %2760 = vmatpush.msra.mxu0 0.0
    %2761 = vmatpush.msra.mxu0 0.0
    %2762 = vmatpush.msra.mxu0 0.0
    %2763 = vmatpush.msra.mxu0 0.0
    %2764 = vmatpush.msra.mxu0 0.0
    %2765 = vmatpush.msra.mxu0 0.0
    %2766 = vmatpush.msra.mxu0 0.0
    %2767 = vmatpush.msra.mxu0 0.0
    %2768 = vmatpush.msra.mxu0 0.0
    %2769 = vmatpush.msra.mxu0 0.0
    %2770 = vmatpush.msra.mxu0 %v2750
    %2771 = vmatmul.f32.gmra.mxu0 %v2753
    %v2772 = vpop.f32.mrf.mxu0
    %v2773 = vadd.f32 0.0, %v2772
    %2774 = vdwg.mxu0
    %2775 = vrot.lane.b32.xlu0 %v1888, 112
    %v2776 = vpop.permute.xlu0 %2775
    %v2779 = vsel %vm228, %v2484, 0
    %2781 = vmatpush.msra.mxu0 0.0
    %2782 = vmatpush.msra.mxu0 0.0
    %2783 = vmatpush.msra.mxu0 0.0
    %2784 = vmatpush.msra.mxu0 0.0
    %2785 = vmatpush.msra.mxu0 0.0
    %2786 = vmatpush.msra.mxu0 0.0
    %2787 = vmatpush.msra.mxu0 0.0
    %2788 = vmatpush.msra.mxu0 0.0
    %2789 = vmatpush.msra.mxu0 0.0
    %2790 = vmatpush.msra.mxu0 0.0
    %2791 = vmatpush.msra.mxu0 0.0
    %2792 = vmatpush.msra.mxu0 0.0
    %2793 = vmatpush.msra.mxu0 0.0
    %2794 = vmatpush.msra.mxu0 0.0
    %2795 = vmatpush.msra.mxu0 0.0
    %2796 = vmatpush.msra.mxu0 %v2776
    %2797 = vmatmul.f32.gmra.mxu0 %v2779
    %v2798 = vpop.f32.mrf.mxu0
    %v2799 = vadd.f32 0.0, %v2798
    %2800 = vdwg.mxu0
    %2801 = vrot.lane.b32.xlu0 %v1890, 112
    %v2802 = vpop.permute.xlu0 %2801
    %v2805 = vsel %vm228, %v2485, 0
    %2807 = vmatpush.msra.mxu0 0.0
    %2808 = vmatpush.msra.mxu0 0.0
    %2809 = vmatpush.msra.mxu0 0.0
    %2810 = vmatpush.msra.mxu0 0.0
    %2811 = vmatpush.msra.mxu0 0.0
    %2812 = vmatpush.msra.mxu0 0.0
    %2813 = vmatpush.msra.mxu0 0.0
    %2814 = vmatpush.msra.mxu0 0.0
    %2815 = vmatpush.msra.mxu0 0.0
    %2816 = vmatpush.msra.mxu0 0.0
    %2817 = vmatpush.msra.mxu0 0.0
    %2818 = vmatpush.msra.mxu0 0.0
    %2819 = vmatpush.msra.mxu0 0.0
    %2820 = vmatpush.msra.mxu0 0.0
    %2821 = vmatpush.msra.mxu0 0.0
    %2822 = vmatpush.msra.mxu0 %v2802
    %2823 = vmatmul.f32.gmra.mxu0 %v2805
    %v2824 = vpop.f32.mrf.mxu0
    %v2825 = vadd.f32 0.0, %v2824
    %2826 = vdwg.mxu0
    %2827 = vrot.lane.b32.xlu0 %v1892, 112
    %v2828 = vpop.permute.xlu0 %2827
    %v2831 = vsel %vm228, %v2486, 0
    %2833 = vmatpush.msra.mxu0 0.0
    %2834 = vmatpush.msra.mxu0 0.0
    %2835 = vmatpush.msra.mxu0 0.0
    %2836 = vmatpush.msra.mxu0 0.0
    %2837 = vmatpush.msra.mxu0 0.0
    %2838 = vmatpush.msra.mxu0 0.0
    %2839 = vmatpush.msra.mxu0 0.0
    %2840 = vmatpush.msra.mxu0 0.0
    %2841 = vmatpush.msra.mxu0 0.0
    %2842 = vmatpush.msra.mxu0 0.0
    %2843 = vmatpush.msra.mxu0 0.0
    %2844 = vmatpush.msra.mxu0 0.0
    %2845 = vmatpush.msra.mxu0 0.0
    %2846 = vmatpush.msra.mxu0 0.0
    %2847 = vmatpush.msra.mxu0 0.0
    %2848 = vmatpush.msra.mxu0 %v2828
    %2849 = vmatmul.f32.gmra.mxu0 %v2831
    %v2850 = vpop.f32.mrf.mxu0
    %v2851 = vadd.f32 0.0, %v2850
    %2852 = vdwg.mxu0
    %2853 = vrot.lane.b32.xlu0 %v1894, 112
    %v2854 = vpop.permute.xlu0 %2853
    %v2857 = vsel %vm228, %v2487, 0
    %2859 = vmatpush.msra.mxu0 0.0
    %2860 = vmatpush.msra.mxu0 0.0
    %2861 = vmatpush.msra.mxu0 0.0
    %2862 = vmatpush.msra.mxu0 0.0
    %2863 = vmatpush.msra.mxu0 0.0
    %2864 = vmatpush.msra.mxu0 0.0
    %2865 = vmatpush.msra.mxu0 0.0
    %2866 = vmatpush.msra.mxu0 0.0
    %2867 = vmatpush.msra.mxu0 0.0
    %2868 = vmatpush.msra.mxu0 0.0
    %2869 = vmatpush.msra.mxu0 0.0
    %2870 = vmatpush.msra.mxu0 0.0
    %2871 = vmatpush.msra.mxu0 0.0
    %2872 = vmatpush.msra.mxu0 0.0
    %2873 = vmatpush.msra.mxu0 0.0
    %2874 = vmatpush.msra.mxu0 %v2854
    %2875 = vmatmul.f32.gmra.mxu0 %v2857
    %v2876 = vpop.f32.mrf.mxu0
    %v2877 = vadd.f32 0.0, %v2876
    %2878 = vdwg.mxu0
    %2879 = vrot.lane.b32.xlu0 %v1896, 112
    %v2880 = vpop.permute.xlu0 %2879
    %v2883 = vsel %vm228, %v2488, 0
    %2885 = vmatpush.msra.mxu0 0.0
    %2886 = vmatpush.msra.mxu0 0.0
    %2887 = vmatpush.msra.mxu0 0.0
    %2888 = vmatpush.msra.mxu0 0.0
    %2889 = vmatpush.msra.mxu0 0.0
    %2890 = vmatpush.msra.mxu0 0.0
    %2891 = vmatpush.msra.mxu0 0.0
    %2892 = vmatpush.msra.mxu0 0.0
    %2893 = vmatpush.msra.mxu0 0.0
    %2894 = vmatpush.msra.mxu0 0.0
    %2895 = vmatpush.msra.mxu0 0.0
    %2896 = vmatpush.msra.mxu0 0.0
    %2897 = vmatpush.msra.mxu0 0.0
    %2898 = vmatpush.msra.mxu0 0.0
    %2899 = vmatpush.msra.mxu0 0.0
    %2900 = vmatpush.msra.mxu0 %v2880
    %2901 = vmatmul.f32.gmra.mxu0 %v2883
    %v2902 = vpop.f32.mrf.mxu0
    %v2903 = vadd.f32 0.0, %v2902
    %2904 = vdwg.mxu0
    %s2905 = scalar_lea.vmem %s3, 32
    %v2906 = vld [vmem:[%s2905] sm:$0xff]
    %v2907 = vld [vmem:[%s2905 + $0x8] sm:$0xff]
    %v2908 = vld [vmem:[%s2905 + $0x10] sm:$0xff]
    %v2909 = vld [vmem:[%s2905 + $0x18] sm:$0xff]
    %v2911 = vsel %vm228, %v2513, 0
    %v2914 = vsel %vm228, %v2539, 0
    %v2917 = vsel %vm228, %v2565, 0
    %v2920 = vsel %vm228, %v2591, 0
    %2922 = vmatpush.msra.mxu0 0.0
    %2923 = vmatpush.msra.mxu0 0.0
    %2924 = vmatpush.msra.mxu0 0.0
    %2925 = vmatpush.msra.mxu0 0.0
    %2926 = vmatpush.msra.mxu0 0.0
    %2927 = vmatpush.msra.mxu0 0.0
    %2928 = vmatpush.msra.mxu0 0.0
    %2929 = vmatpush.msra.mxu0 0.0
    %2930 = vmatpush.msra.mxu0 0.0
    %2931 = vmatpush.msra.mxu0 0.0
    %2932 = vmatpush.msra.mxu0 0.0
    %2933 = vmatpush.msra.mxu0 0.0
    %2934 = vmatpush.msra.mxu0 0.0
    %2935 = vmatpush.msra.mxu0 0.0
    %2936 = vmatpush.msra.mxu0 0.0
    %2937 = vmatpush.msra.mxu0 %v2906
    %2938 = vmatmul.f32.gmra.mxu0 %v2911
    %v2939 = vpop.f32.mrf.mxu0
    %v2940 = vadd.f32 0.0, %v2939
    %2941 = vmatmul.f32.gmra.mxu0 %v2914
    %v2942 = vpop.f32.mrf.mxu0
    %v2943 = vadd.f32 0.0, %v2942
    %2944 = vmatmul.f32.gmra.mxu0 %v2917
    %v2945 = vpop.f32.mrf.mxu0
    %v2946 = vadd.f32 0.0, %v2945
    %2947 = vmatmul.f32.gmra.mxu0 %v2920
    %v2948 = vpop.f32.mrf.mxu0
    %v2949 = vadd.f32 0.0, %v2948
    %2950 = vdwg.mxu0
    %v2952 = vsel %vm228, %v2617, 0
    %v2955 = vsel %vm228, %v2643, 0
    %v2958 = vsel %vm228, %v2669, 0
    %v2961 = vsel %vm228, %v2695, 0
    %2963 = vmatpush.msra.mxu0 0.0
    %2964 = vmatpush.msra.mxu0 0.0
    %2965 = vmatpush.msra.mxu0 0.0
    %2966 = vmatpush.msra.mxu0 0.0
    %2967 = vmatpush.msra.mxu0 0.0
    %2968 = vmatpush.msra.mxu0 0.0
    %2969 = vmatpush.msra.mxu0 0.0
    %2970 = vmatpush.msra.mxu0 0.0
    %2971 = vmatpush.msra.mxu0 0.0
    %2972 = vmatpush.msra.mxu0 0.0
    %2973 = vmatpush.msra.mxu0 0.0
    %2974 = vmatpush.msra.mxu0 0.0
    %2975 = vmatpush.msra.mxu0 0.0
    %2976 = vmatpush.msra.mxu0 0.0
    %2977 = vmatpush.msra.mxu0 0.0
    %2978 = vmatpush.msra.mxu0 %v2907
    %2979 = vmatmul.f32.gmra.mxu0 %v2952
    %v2980 = vpop.f32.mrf.mxu0
    %v2981 = vadd.f32 0.0, %v2980
    %2982 = vmatmul.f32.gmra.mxu0 %v2955
    %v2983 = vpop.f32.mrf.mxu0
    %v2984 = vadd.f32 0.0, %v2983
    %2985 = vmatmul.f32.gmra.mxu0 %v2958
    %v2986 = vpop.f32.mrf.mxu0
    %v2987 = vadd.f32 0.0, %v2986
    %2988 = vmatmul.f32.gmra.mxu0 %v2961
    %v2989 = vpop.f32.mrf.mxu0
    %v2990 = vadd.f32 0.0, %v2989
    %2991 = vdwg.mxu0
    %v2993 = vsel %vm228, %v2721, 0
    %v2996 = vsel %vm228, %v2747, 0
    %v2999 = vsel %vm228, %v2773, 0
    %v3002 = vsel %vm228, %v2799, 0
    %3004 = vmatpush.msra.mxu0 0.0
    %3005 = vmatpush.msra.mxu0 0.0
    %3006 = vmatpush.msra.mxu0 0.0
    %3007 = vmatpush.msra.mxu0 0.0
    %3008 = vmatpush.msra.mxu0 0.0
    %3009 = vmatpush.msra.mxu0 0.0
    %3010 = vmatpush.msra.mxu0 0.0
    %3011 = vmatpush.msra.mxu0 0.0
    %3012 = vmatpush.msra.mxu0 0.0
    %3013 = vmatpush.msra.mxu0 0.0
    %3014 = vmatpush.msra.mxu0 0.0
    %3015 = vmatpush.msra.mxu0 0.0
    %3016 = vmatpush.msra.mxu0 0.0
    %3017 = vmatpush.msra.mxu0 0.0
    %3018 = vmatpush.msra.mxu0 0.0
    %3019 = vmatpush.msra.mxu0 %v2908
    %3020 = vmatmul.f32.gmra.mxu0 %v2993
    %v3021 = vpop.f32.mrf.mxu0
    %v3022 = vadd.f32 0.0, %v3021
    %3023 = vmatmul.f32.gmra.mxu0 %v2996
    %v3024 = vpop.f32.mrf.mxu0
    %v3025 = vadd.f32 0.0, %v3024
    %3026 = vmatmul.f32.gmra.mxu0 %v2999
    %v3027 = vpop.f32.mrf.mxu0
    %v3028 = vadd.f32 0.0, %v3027
    %3029 = vmatmul.f32.gmra.mxu0 %v3002
    %v3030 = vpop.f32.mrf.mxu0
    %v3031 = vadd.f32 0.0, %v3030
    %3032 = vdwg.mxu0
    %v3034 = vsel %vm228, %v2825, 0
    %v3037 = vsel %vm228, %v2851, 0
    %v3040 = vsel %vm228, %v2877, 0
    %v3043 = vsel %vm228, %v2903, 0
    %3045 = vmatpush.msra.mxu0 0.0
    %3046 = vmatpush.msra.mxu0 0.0
    %3047 = vmatpush.msra.mxu0 0.0
    %3048 = vmatpush.msra.mxu0 0.0
    %3049 = vmatpush.msra.mxu0 0.0
    %3050 = vmatpush.msra.mxu0 0.0
    %3051 = vmatpush.msra.mxu0 0.0
    %3052 = vmatpush.msra.mxu0 0.0
    %3053 = vmatpush.msra.mxu0 0.0
    %3054 = vmatpush.msra.mxu0 0.0
    %3055 = vmatpush.msra.mxu0 0.0
    %3056 = vmatpush.msra.mxu0 0.0
    %3057 = vmatpush.msra.mxu0 0.0
    %3058 = vmatpush.msra.mxu0 0.0
    %3059 = vmatpush.msra.mxu0 0.0
    %3060 = vmatpush.msra.mxu0 %v2909
    %3061 = vmatmul.f32.gmra.mxu0 %v3034
    %v3062 = vpop.f32.mrf.mxu0
    %v3063 = vadd.f32 0.0, %v3062
    %3064 = vmatmul.f32.gmra.mxu0 %v3037
    %v3065 = vpop.f32.mrf.mxu0
    %v3066 = vadd.f32 0.0, %v3065
    %3067 = vmatmul.f32.gmra.mxu0 %v3040
    %v3068 = vpop.f32.mrf.mxu0
    %v3069 = vadd.f32 0.0, %v3068
    %3070 = vmatmul.f32.gmra.mxu0 %v3043
    %v3071 = vpop.f32.mrf.mxu0
    %v3072 = vadd.f32 0.0, %v3071
    %3073 = vdwg.mxu0
    %v3074 = vsel %vm46, %v2940, 0.0
    %v3075 = vsel %vm46, %v2981, 0.0
    %v3076 = vadd.f32 %v3074, %v3075
    %v3077 = vsel %vm46, %v3022, 0.0
    %v3078 = vadd.f32 %v3076, %v3077
    %v3079 = vsel %vm46, %v3063, 0.0
    %v3080 = vadd.f32 %v3078, %v3079
    %v3081 = vsel %vm46, %v2943, 0.0
    %v3082 = vsel %vm46, %v2984, 0.0
    %v3083 = vadd.f32 %v3081, %v3082
    %v3084 = vsel %vm46, %v3025, 0.0
    %v3085 = vadd.f32 %v3083, %v3084
    %v3086 = vsel %vm46, %v3066, 0.0
    %v3087 = vadd.f32 %v3085, %v3086
    %v3088 = vsel %vm46, %v2946, 0.0
    %v3089 = vsel %vm46, %v2987, 0.0
    %v3090 = vadd.f32 %v3088, %v3089
    %v3091 = vsel %vm46, %v3028, 0.0
    %v3092 = vadd.f32 %v3090, %v3091
    %v3093 = vsel %vm46, %v3069, 0.0
    %v3094 = vadd.f32 %v3092, %v3093
    %v3095 = vsel %vm46, %v2949, 0.0
    %v3096 = vsel %vm46, %v2990, 0.0
    %v3097 = vadd.f32 %v3095, %v3096
    %v3098 = vsel %vm46, %v3031, 0.0
    %v3099 = vadd.f32 %v3097, %v3098
    %v3100 = vsel %vm46, %v3072, 0.0
    %v3101 = vadd.f32 %v3099, %v3100
    %v3102 = vperm.slane %v1723, 5
    %v3103 = vadd.f32 %v3080, %v3102
    %v3104 = vadd.f32 %v3087, %v3102
    %v3105 = vadd.f32 %v3094, %v3102
    %v3106 = vadd.f32 %v3101, %v3102
    %v3107 = vadd.f32 %v1718, %v3103
    %v3108 = vadd.f32 %v1719, %v3104
    %v3109 = vadd.f32 %v1720, %v3105
    %v3110 = vadd.f32 %v1721, %v3106
    %v3111 = vsel %vm46, %v3107, 0.0
    %3112 = vadd.xlane.f32.xlu0 %v3111
    %v3113 = vpop.xlane.xlu0 %3112
    %v3114 = vsel %vm46, %v3108, 0.0
    %3115 = vadd.xlane.f32.xlu0 %v3114
    %v3116 = vpop.xlane.xlu0 %3115
    %v3117 = vsel %vm46, %v3109, 0.0
    %3118 = vadd.xlane.f32.xlu0 %v3117
    %v3119 = vpop.xlane.xlu0 %3118
    %v3120 = vsel %vm46, %v3110, 0.0
    %3121 = vadd.xlane.f32.xlu0 %v3120
    %v3122 = vpop.xlane.xlu0 %3121
    %v3123 = vmul.f32 %v3113, %v65
    %v3124 = vmul.f32 %v3116, %v65
    %v3125 = vmul.f32 %v3119, %v65
    %v3126 = vmul.f32 %v3122, %v65
    %v3127 = vsub.f32 %v3107, %v3123
    %v3128 = vsub.f32 %v3108, %v3124
    %v3129 = vsub.f32 %v3109, %v3125
    %v3130 = vsub.f32 %v3110, %v3126
    %v3131 = vmul.f32 %v3127, %v3127
    %v3132 = vmul.f32 %v3128, %v3128
    %v3133 = vmul.f32 %v3129, %v3129
    %v3134 = vmul.f32 %v3130, %v3130
    %v3135 = vsel %vm46, %v3131, 0.0
    %3136 = vadd.xlane.f32.xlu0 %v3135
    %v3137 = vpop.xlane.xlu0 %3136
    %v3138 = vsel %vm46, %v3132, 0.0
    %3139 = vadd.xlane.f32.xlu0 %v3138
    %v3140 = vpop.xlane.xlu0 %3139
    %v3141 = vsel %vm46, %v3133, 0.0
    %3142 = vadd.xlane.f32.xlu0 %v3141
    %v3143 = vpop.xlane.xlu0 %3142
    %v3144 = vsel %vm46, %v3134, 0.0
    %3145 = vadd.xlane.f32.xlu0 %v3144
    %v3146 = vpop.xlane.xlu0 %3145
    %v3147 = vmul.f32 %v3137, %v65
    %v3148 = vmul.f32 %v3140, %v65
    %v3149 = vmul.f32 %v3143, %v65
    %v3150 = vmul.f32 %v3146, %v65
    %v3151 = vadd.f32 %v3147, 1e-05
    %v3152 = vadd.f32 %v3148, 1e-05
    %v3153 = vadd.f32 %v3149, 1e-05
    %v3154 = vadd.f32 %v3150, 1e-05
    %v3155 = vrsqrt.pop %v3151
    %v3156 = vmul.f32 %v3155, %v3151
    %v3157 = vmul.f32 %v3156, %v3155
    %v3158 = vmul.f32 0.5, %v3157
    %v3159 = vsub.f32 1.5, %v3158
    %v3160 = vmul.f32 %v3155, %v3159
    %vm3161 = vweird.f32 %v3151
    %vm3162 = vweird.f32 %v3155
    %vm3163 = vmor %vm3161, %vm3162
    %v3164 = vsel %vm3163, %v3155, %v3160
    %v3165 = vrsqrt.pop %v3152
    %v3166 = vmul.f32 %v3165, %v3152
    %v3167 = vmul.f32 %v3166, %v3165
    %v3168 = vmul.f32 0.5, %v3167
    %v3169 = vsub.f32 1.5, %v3168
    %v3170 = vmul.f32 %v3165, %v3169
    %vm3171 = vweird.f32 %v3152
    %vm3172 = vweird.f32 %v3165
    %vm3173 = vmor %vm3171, %vm3172
    %v3174 = vsel %vm3173, %v3165, %v3170
    %v3175 = vrsqrt.pop %v3153
    %v3176 = vmul.f32 %v3175, %v3153
    %v3177 = vmul.f32 %v3176, %v3175
    %v3178 = vmul.f32 0.5, %v3177
    %v3179 = vsub.f32 1.5, %v3178
    %v3180 = vmul.f32 %v3175, %v3179
    %vm3181 = vweird.f32 %v3153
    %vm3182 = vweird.f32 %v3175
    %vm3183 = vmor %vm3181, %vm3182
    %v3184 = vsel %vm3183, %v3175, %v3180
    %v3185 = vrsqrt.pop %v3154
    %v3186 = vmul.f32 %v3185, %v3154
    %v3187 = vmul.f32 %v3186, %v3185
    %v3188 = vmul.f32 0.5, %v3187
    %v3189 = vsub.f32 1.5, %v3188
    %v3190 = vmul.f32 %v3185, %v3189
    %vm3191 = vweird.f32 %v3154
    %vm3192 = vweird.f32 %v3185
    %vm3193 = vmor %vm3191, %vm3192
    %v3194 = vsel %vm3193, %v3185, %v3190
    %v3195 = vmul.f32 %v3127, %v3164
    %v3196 = vmul.f32 %v3128, %v3174
    %v3197 = vmul.f32 %v3129, %v3184
    %v3198 = vmul.f32 %v3130, %v3194
    %v3199 = vperm.slane %v1723, 2
    %v3200 = vmul.f32 %v3195, %v3199
    %v3201 = vmul.f32 %v3196, %v3199
    %v3202 = vmul.f32 %v3197, %v3199
    %v3203 = vmul.f32 %v3198, %v3199
    %v3204 = vperm.slane %v1723, 3
    %v3205 = vadd.f32 %v3200, %v3204
    %v3206 = vadd.f32 %v3201, %v3204
    %v3207 = vadd.f32 %v3202, %v3204
    %v3208 = vadd.f32 %v3203, %v3204
    %s3209 = scalar_lea.vmem %s4, 32
    %v3210 = vld [vmem:[%s3209] sm:$0xff]
    %v3211 = vld [vmem:[%s3209 + $0x8] sm:$0xff]
    %v3212 = vld [vmem:[%s3209 + $0x10] sm:$0xff]
    %v3213 = vld [vmem:[%s3209 + $0x18] sm:$0xff]
    %v3214 = vperm.slane %v1723, 6
    %v3216 = vsel %vm46, %v3205, 0
    %v3219 = vsel %vm46, %v3206, 0
    %v3222 = vsel %vm46, %v3207, 0
    %v3225 = vsel %vm46, %v3208, 0
    %3227 = vmatpush.msra.mxu0 0.0
    %3228 = vmatpush.msra.mxu0 0.0
    %3229 = vmatpush.msra.mxu0 0.0
    %3230 = vmatpush.msra.mxu0 0.0
    %3231 = vmatpush.msra.mxu0 0.0
    %3232 = vmatpush.msra.mxu0 0.0
    %3233 = vmatpush.msra.mxu0 0.0
    %3234 = vmatpush.msra.mxu0 0.0
    %3235 = vmatpush.msra.mxu0 0.0
    %3236 = vmatpush.msra.mxu0 0.0
    %3237 = vmatpush.msra.mxu0 0.0
    %3238 = vmatpush.msra.mxu0 0.0
    %3239 = vmatpush.msra.mxu0 %v3213
    %3240 = vmatpush.msra.mxu0 %v3212
    %3241 = vmatpush.msra.mxu0 %v3211
    %3242 = vmatpush.msra.mxu0 %v3210
    %3243 = vmatmul.f32.gmra.mxu0 %v3216
    %v3244 = vpop.f32.mrf.mxu0
    %v3245 = vadd.f32 %v3214, %v3244
    %3246 = vmatmul.f32.gmra.mxu0 %v3219
    %v3247 = vpop.f32.mrf.mxu0
    %v3248 = vadd.f32 %v3214, %v3247
    %3249 = vmatmul.f32.gmra.mxu0 %v3222
    %v3250 = vpop.f32.mrf.mxu0
    %v3251 = vadd.f32 %v3214, %v3250
    %3252 = vmatmul.f32.gmra.mxu0 %v3225
    %v3253 = vpop.f32.mrf.mxu0
    %v3254 = vadd.f32 %v3214, %v3253
    %3255 = vdwg.mxu0
    %v3256 = vmul.f32 %v3245, 1.702
    %v3257 = vmul.f32 %v3248, 1.702
    %v3258 = vmul.f32 %v3251, 1.702
    %v3259 = vmul.f32 %v3254, 1.702
    %v3260 = vxor.u32 %v3256, 2147483648
    %v3261 = vxor.u32 %v3257, 2147483648
    %v3262 = vxor.u32 %v3258, 2147483648
    %v3263 = vxor.u32 %v3259, 2147483648
    %v3264 = vmul.f32 %v3260, 1.442695
    %v3265 = vpow.pop %v3264
    %v3266 = vmul.f32 %v3261, 1.442695
    %v3267 = vpow.pop %v3266
    %v3268 = vmul.f32 %v3262, 1.442695
    %v3269 = vpow.pop %v3268
    %v3270 = vmul.f32 %v3263, 1.442695
    %v3271 = vpow.pop %v3270
    %v3272 = vadd.f32 %v3265, 1.0
    %v3273 = vadd.f32 %v3267, 1.0
    %v3274 = vadd.f32 %v3269, 1.0
    %v3275 = vadd.f32 %v3271, 1.0
    %v3276 = vrcp.pop %v3272
    %v3277 = vmul.f32 %v3272, %v3276
    %v3278 = vsub.f32 1.0, %v3277
    %v3279 = vmul.f32 %v3276, %v3278
    %v3280 = vadd.f32 %v3276, %v3279
    %vm3281 = vweird.f32 %v3272
    %vm3282 = vweird.f32 %v3276
    %vm3283 = vmor %vm3281, %vm3282
    %v3284 = vsel %vm3283, %v3276, %v3280
    %v3285 = vand.u32 2147483647, %v3272
    %vm3286 = vcmp.eq.f32.partialorder %v3285, 8.507059e+37
    %v3287 = vand.u32 %v3272, 2147483648
    %v3288 = vor.u32 1.1754944e-38, %v3287
    %v3289 = vsel %vm3286, %v3288, %v3284
    %v3290 = vmul.f32 1.0, %v3289
    %v3291 = vrcp.pop %v3273
    %v3292 = vmul.f32 %v3273, %v3291
    %v3293 = vsub.f32 1.0, %v3292
    %v3294 = vmul.f32 %v3291, %v3293
    %v3295 = vadd.f32 %v3291, %v3294
    %vm3296 = vweird.f32 %v3273
    %vm3297 = vweird.f32 %v3291
    %vm3298 = vmor %vm3296, %vm3297
    %v3299 = vsel %vm3298, %v3291, %v3295
    %v3300 = vand.u32 2147483647, %v3273
    %vm3301 = vcmp.eq.f32.partialorder %v3300, 8.507059e+37
    %v3302 = vand.u32 %v3273, 2147483648
    %v3303 = vor.u32 1.1754944e-38, %v3302
    %v3304 = vsel %vm3301, %v3303, %v3299
    %v3305 = vmul.f32 1.0, %v3304
    %v3306 = vrcp.pop %v3274
    %v3307 = vmul.f32 %v3274, %v3306
    %v3308 = vsub.f32 1.0, %v3307
    %v3309 = vmul.f32 %v3306, %v3308
    %v3310 = vadd.f32 %v3306, %v3309
    %vm3311 = vweird.f32 %v3274
    %vm3312 = vweird.f32 %v3306
    %vm3313 = vmor %vm3311, %vm3312
    %v3314 = vsel %vm3313, %v3306, %v3310
    %v3315 = vand.u32 2147483647, %v3274
    %vm3316 = vcmp.eq.f32.partialorder %v3315, 8.507059e+37
    %v3317 = vand.u32 %v3274, 2147483648
    %v3318 = vor.u32 1.1754944e-38, %v3317
    %v3319 = vsel %vm3316, %v3318, %v3314
    %v3320 = vmul.f32 1.0, %v3319
    %v3321 = vrcp.pop %v3275
    %v3322 = vmul.f32 %v3275, %v3321
    %v3323 = vsub.f32 1.0, %v3322
    %v3324 = vmul.f32 %v3321, %v3323
    %v3325 = vadd.f32 %v3321, %v3324
    %vm3326 = vweird.f32 %v3275
    %vm3327 = vweird.f32 %v3321
    %vm3328 = vmor %vm3326, %vm3327
    %v3329 = vsel %vm3328, %v3321, %v3325
    %v3330 = vand.u32 2147483647, %v3275
    %vm3331 = vcmp.eq.f32.partialorder %v3330, 8.507059e+37
    %v3332 = vand.u32 %v3275, 2147483648
    %v3333 = vor.u32 1.1754944e-38, %v3332
    %v3334 = vsel %vm3331, %v3333, %v3329
    %v3335 = vmul.f32 1.0, %v3334
    %v3336 = vmul.f32 %v3245, %v3290
    %v3337 = vmul.f32 %v3248, %v3305
    %v3338 = vmul.f32 %v3251, %v3320
    %v3339 = vmul.f32 %v3254, %v3335
    %s3340 = scalar_lea.vmem %s5, 128
    %v3341 = vld [vmem:[%s3340] sm:$0xff]
    %v3342 = vld [vmem:[%s3340 + $0x8] sm:$0xff]
    %v3343 = vld [vmem:[%s3340 + $0x10] sm:$0xff]
    %v3344 = vld [vmem:[%s3340 + $0x18] sm:$0xff]
    %v3345 = vld [vmem:[%s3340 + $0x20] sm:$0xff]
    %v3346 = vld [vmem:[%s3340 + $0x28] sm:$0xff]
    %v3347 = vld [vmem:[%s3340 + $0x30] sm:$0xff]
    %v3348 = vld [vmem:[%s3340 + $0x38] sm:$0xff]
    %v3349 = vld [vmem:[%s3340 + $0x40] sm:$0xff]
    %v3350 = vld [vmem:[%s3340 + $0x48] sm:$0xff]
    %v3351 = vld [vmem:[%s3340 + $0x50] sm:$0xff]
    %v3352 = vld [vmem:[%s3340 + $0x58] sm:$0xff]
    %v3353 = vld [vmem:[%s3340 + $0x60] sm:$0xff]
    %v3354 = vld [vmem:[%s3340 + $0x68] sm:$0xff]
    %v3355 = vld [vmem:[%s3340 + $0x70] sm:$0xff]
    %v3356 = vld [vmem:[%s3340 + $0x78] sm:$0xff]
    %3357 = vmatpush.msra.mxu0 %v3356
    %3358 = vmatpush.msra.mxu0 %v3355
    %3359 = vmatpush.msra.mxu0 %v3354
    %3360 = vmatpush.msra.mxu0 %v3353
    %3361 = vmatpush.msra.mxu0 %v3352
    %3362 = vmatpush.msra.mxu0 %v3351
    %3363 = vmatpush.msra.mxu0 %v3350
    %3364 = vmatpush.msra.mxu0 %v3349
    %3365 = vmatpush.msra.mxu0 %v3348
    %3366 = vmatpush.msra.mxu0 %v3347
    %3367 = vmatpush.msra.mxu0 %v3346
    %3368 = vmatpush.msra.mxu0 %v3345
    %3369 = vmatpush.msra.mxu0 %v3344
    %3370 = vmatpush.msra.mxu0 %v3343
    %3371 = vmatpush.msra.mxu0 %v3342
    %3372 = vmatpush.msra.mxu0 %v3341
    %3373 = vmatmul.f32.gmra.mxu0 %v3336
    %v3374 = vpop.f32.mrf.mxu0
    %v3375 = vadd.f32 0.0, %v3374
    %3376 = vmatmul.f32.gmra.mxu0 %v3337
    %v3377 = vpop.f32.mrf.mxu0
    %v3378 = vadd.f32 0.0, %v3377
    %3379 = vmatmul.f32.gmra.mxu0 %v3338
    %v3380 = vpop.f32.mrf.mxu0
    %v3381 = vadd.f32 0.0, %v3380
    %3382 = vmatmul.f32.gmra.mxu0 %v3339
    %v3383 = vpop.f32.mrf.mxu0
    %v3384 = vadd.f32 0.0, %v3383
    %3385 = vdwg.mxu0
    %v3386 = vadd.f32 %v3107, %v3375
    %v3387 = vadd.f32 %v3108, %v3378
    %v3388 = vadd.f32 %v3109, %v3381
    %v3389 = vadd.f32 %v3110, %v3384
    %v3390 = vperm.slane %v1723, 7
    %v3391 = vadd.f32 %v3386, %v3390
    %v3392 = vadd.f32 %v3387, %v3390
    %v3393 = vadd.f32 %v3388, %v3390
    %v3394 = vadd.f32 %v3389, %v3390
    %v3395 = vld [vmem:[%s6 + $0x8] sm:$0x1]
    %v3396 = vld [vmem:[%s6 + $0x9] sm:$0x1]
    %v3401 = vrot.slane %v3392, 7
    %v3402 = vrot.slane %v3393, 6
    %vm3403 = vcmask 1041409
    %v3404 = vsel %vm3403, %v3402, %v3401
    %v3405 = vrot.slane %v3394, 5
    %vm3406 = vcmask 1042434
    %v3407 = vsel %vm3406, %v3405, %v3404
    %vm3410 = vcmask 261127
    %v3411 = vsel %vm3410, %v3391, 0.0
    %3412 = vadd.xlane.f32.xlu0 %v3411
    %v3413 = vpop.xlane.xlu0 %3412
    %vm3414 = vcmask 256000
    %v3415 = vsel %vm3414, %v3407, 0.0
    %3416 = vadd.xlane.f32.xlu0 %v3415
    %v3417 = vpop.xlane.xlu0 %3416
    %v3418 = vmul.f32 %v3413, %v65
    %v3419 = vmul.f32 %v3417, %v65
    %v3422 = vrot.slane %v3419, 1
    %v3423 = vrot.slane %v3419, 2
    %v3424 = vrot.slane %v3419, 3
    %v3429 = vsub.f32 %v3391, %v3418
    %v3430 = vsub.f32 %v3392, %v3422
    %v3431 = vsub.f32 %v3393, %v3423
    %v3432 = vsub.f32 %v3394, %v3424
    %v3433 = vmul.f32 %v3429, %v3429
    %v3434 = vmul.f32 %v3430, %v3430
    %v3435 = vmul.f32 %v3431, %v3431
    %v3436 = vmul.f32 %v3432, %v3432
    %v3441 = vrot.slane %v3434, 7
    %v3442 = vrot.slane %v3435, 6
    %v3443 = vsel %vm3403, %v3442, %v3441
    %v3444 = vrot.slane %v3436, 5
    %v3445 = vsel %vm3406, %v3444, %v3443
    %v3448 = vsel %vm3410, %v3433, 0.0
    %3449 = vadd.xlane.f32.xlu0 %v3448
    %v3450 = vpop.xlane.xlu0 %3449
    %v3451 = vsel %vm3414, %v3445, 0.0
    %3452 = vadd.xlane.f32.xlu0 %v3451
    %v3453 = vpop.xlane.xlu0 %3452
    %v3454 = vmul.f32 %v3450, %v65
    %v3455 = vmul.f32 %v3453, %v65
    %v3456 = vadd.f32 %v3454, 1e-05
    %v3457 = vadd.f32 %v3455, 1e-05
    %v3458 = vrsqrt.pop %v3456
    %v3459 = vmul.f32 %v3458, %v3456
    %v3460 = vmul.f32 %v3459, %v3458
    %v3461 = vmul.f32 0.5, %v3460
    %v3462 = vsub.f32 1.5, %v3461
    %v3463 = vmul.f32 %v3458, %v3462
    %vm3464 = vweird.f32 %v3456
    %vm3465 = vweird.f32 %v3458
    %vm3466 = vmor %vm3464, %vm3465
    %v3467 = vsel %vm3466, %v3458, %v3463
    %v3468 = vrsqrt.pop %v3457
    %v3469 = vmul.f32 %v3468, %v3457
    %v3470 = vmul.f32 %v3469, %v3468
    %v3471 = vmul.f32 0.5, %v3470
    %v3472 = vsub.f32 1.5, %v3471
    %v3473 = vmul.f32 %v3468, %v3472
    %vm3474 = vweird.f32 %v3457
    %vm3475 = vweird.f32 %v3468
    %vm3476 = vmor %vm3474, %vm3475
    %v3477 = vsel %vm3476, %v3468, %v3473
    %v3480 = vrot.slane %v3477, 1
    %v3481 = vrot.slane %v3477, 2
    %v3482 = vrot.slane %v3477, 3
    %v3487 = vmul.f32 %v3429, %v3467
    %v3488 = vmul.f32 %v3430, %v3480
    %v3489 = vmul.f32 %v3431, %v3481
    %v3490 = vmul.f32 %v3432, %v3482
    %v3491 = vperm.slane %v3395, 0
    %v3492 = vmul.f32 %v3487, %v3491
    %v3493 = vmul.f32 %v3488, %v3491
    %v3494 = vmul.f32 %v3489, %v3491
    %v3495 = vmul.f32 %v3490, %v3491
    %v3496 = vperm.slane %v3396, 0
    %v3497 = vadd.f32 %v3492, %v3496
    %v3498 = vadd.f32 %v3493, %v3496
    %v3499 = vadd.f32 %v3494, %v3496
    %v3500 = vadd.f32 %v3495, %v3496
    %v3501 = vld [vmem:[%s7] sm:$0xff]
    %v3502 = vld [vmem:[%s7 + $0x8] sm:$0xff]
    %v3503 = vld [vmem:[%s7 + $0x10] sm:$0xff]
    %v3504 = vld [vmem:[%s7 + $0x18] sm:$0xff]
    %v3509 = vrot.slane %v3497, 7
    %v3510 = vrot.slane %v3498, 6
    %v3511 = vsel %vm3403, %v3510, %v3509
    %v3512 = vrot.slane %v3499, 5
    %v3513 = vsel %vm3406, %v3512, %v3511
    %v3514 = vrot.slane %v3500, 4
    %vm3515 = vcmask 1043459
    %v3516 = vsel %vm3515, %v3514, %v3513
    %v3517 = vsel %vm46, %v3516, 0
    %3519 = vmatpush.msra.mxu0 0.0
    %3520 = vmatpush.msra.mxu0 0.0
    %3521 = vmatpush.msra.mxu0 0.0
    %3522 = vmatpush.msra.mxu0 0.0
    %3523 = vmatpush.msra.mxu0 0.0
    %3524 = vmatpush.msra.mxu0 0.0
    %3525 = vmatpush.msra.mxu0 0.0
    %3526 = vmatpush.msra.mxu0 0.0
    %3527 = vmatpush.msra.mxu0 0.0
    %3528 = vmatpush.msra.mxu0 0.0
    %3529 = vmatpush.msra.mxu0 0.0
    %3530 = vmatpush.msra.mxu0 0.0
    %3531 = vmatpush.msra.mxu0 %v3504
    %3532 = vmatpush.msra.mxu0 %v3503
    %3533 = vmatpush.msra.mxu0 %v3502
    %3534 = vmatpush.msra.mxu0 %v3501
    %3535 = vmatmul.f32.gmra.mxu0 %v3517
    %v3536 = vpop.f32.mrf.mxu0
    %v3537 = vadd.f32 0.0, %v3536
    %3538 = vdwg.mxu0
    %3539 = vst [vmem:[#allocation2] sm:$0xf] %v3537
    // Predicated region
    $region34: #{tpu_custom_call.1} parent=1 // pred_check
      _
    $region35: #{tpu_custom_call.1} parent=1 // pred_check_branch
      %3541 = sbr.rel (0) target = $region37
    $region36: #{tpu_custom_call.1} parent=1 // pred_region
      %3543 = vsyncadd [#allocation3], 0
      %s3545 = sshll.u32 [#allocation2], 4
      %s3546 = int_to_ptr.vmem [resolvable:$true] %s3545
      %s3547 = sshll.u32 %s8, 4
      %s3548 = int_to_ptr.hbm [resolvable:$true] %s3547
      %3550 = dma.vmem_to_hbm [thread:$0]  %s3546, 64, %s3548, [#allocation3]
    $region37: #{tpu_custom_call.1} parent=1 // pred_fallthru
      _
    // Predicated region
    $region38: #{tpu_custom_call.1} parent=1 // pred_check
      _
    $region39: #{tpu_custom_call.1} parent=1 // pred_check_branch
      %3552 = sbr.rel (0) target = $region41
    $region40: #{tpu_custom_call.1} parent=1 // pred_region
      %3554 = dma.done [#allocation3], 64
    $region41: #{tpu_custom_call.1} parent=1 // pred_fallthru
      _
    %3555 = vsyncpa [#allocation3], 1

</llo_original>
